<compile_context>
chip_gen: v7x
topology: tpu7x:2x2x1
jax: 0.10.0
libtpu: 0.0.40
codegen_flags: <defaults>
</compile_context>

<pallas_src>
import jax
import jax.numpy as jnp
import numpy as np
from jax.experimental import pallas as pl
from jax.experimental.pallas import tpu as pltpu


# ----------------------------------------------------------------------------
# Pallas kernel
# ----------------------------------------------------------------------------
def _make_kernel(HW, hd, att, Cout):
    # row offsets inside the packed attention-weight slab (width = 2*hd, bf16)
    r_wh = 0                       # [wq; wk; wv]   (2*att + hd, hd)
    r_wm = r_wh + 2 * att + hd     # [wk2; wv2]     (att + hd,  hd)
    r_za = r_wm + att + hd         # wz[:, :hd]     (2*hd, hd)
    r_zb = r_za + 2 * hd           # wz[:, hd:]     (2*hd, hd)
    r_ma = r_zb + 2 * hd           # wm[:, :2*hd]   (3*hd, 2*hd)
    r_mb = r_ma + 3 * hd           # wm[:, 2*hd:]   (3*hd, hd)

    # row offsets inside the packed bias/affine slab (shape (n, 1), f32)
    b_gamma = 0
    b_beta = b_gamma + Cout
    b_h = b_beta + Cout            # [bq; bk; bv]
    b_m = b_h + 2 * att + hd       # [bk2; bv2]
    b_z = b_m + att + hd
    b_mm = b_z + 2 * hd

    def kernel(patches_ref, c_ref, m_ref, wconv_ref, watt_ref, bias_ref,
               h_out_ref, c_out_ref, m_out_ref):
        f32 = jnp.float32
        bf16 = jnp.bfloat16

        # ---- 3x3 conv as ONE im2col matmul on the MXU ----------------------
        #   wconv : (Cout, Kp) bf16,  patches : (Kp, HW) bf16  ->  (Cout, HW) f32
        acc = jnp.dot(wconv_ref[...], patches_ref[0],
                      preferred_element_type=f32)

        # ---- GroupNorm(num_groups == num_channels) -------------------------
        # Per-channel stats over the HW lanes.  (The conv bias cancels exactly
        # against the per-channel mean subtraction, so it is not applied here.)
        mean = jnp.mean(acc, axis=1, keepdims=True)
        xc = acc - mean
        var = jnp.mean(xc * xc, axis=1, keepdims=True)
        gamma = bias_ref[b_gamma:b_gamma + Cout]             # (Cout, 1)
        beta = bias_ref[b_beta:b_beta + Cout]
        gn = xc * (jax.lax.rsqrt(var + 1e-5) * gamma) + beta  # (Cout, HW)

        # ---- ConvLSTM gates (sublane slices, cheap) -------------------------
        i = jax.nn.sigmoid(gn[0 * hd:1 * hd])
        f = jax.nn.sigmoid(gn[1 * hd:2 * hd])
        o = jax.nn.sigmoid(gn[2 * hd:3 * hd])
        g = jnp.tanh(gn[3 * hd:4 * hd])

        c_prev = c_ref[0]                                    # (hd, HW) f32
        m_prev = m_ref[0]
        c_next = f * c_prev + i * g
        h_mid = o * jnp.tanh(c_next)                         # (hd, HW) f32

        h_b = h_mid.astype(bf16)
        m_b = m_prev.astype(bf16)

        # ---- self-attention memory module -----------------------------------
        # fused 1x1-conv projections: [q;k;v] from h_mid, [k2;v2] from m_prev
        proj_h = (jnp.dot(watt_ref[r_wh:r_wh + 2 * att + hd, 0:hd], h_b,
                          preferred_element_type=f32)
                  + bias_ref[b_h:b_h + 2 * att + hd])        # (2*att+hd, HW)
        proj_m = (jnp.dot(watt_ref[r_wm:r_wm + att + hd, 0:hd], m_b,
                          preferred_element_type=f32)
                  + bias_ref[b_m:b_m + att + hd])            # (att+hd, HW)

        q_t = jnp.transpose(proj_h[0:att]).astype(bf16)      # (HW, att)
        k_b = proj_h[att:2 * att].astype(bf16)               # (att, HW)
        v = proj_h[2 * att:2 * att + hd]                     # (hd, HW) f32
        k2_b = proj_m[0:att].astype(bf16)
        v2 = proj_m[att:att + hd]

        def _softmax(s):                                     # rows = query pixels
            mx = jnp.max(s, axis=-1, keepdims=True)
            e = jnp.exp(s - mx)
            return e * pl.reciprocal(jnp.sum(e, axis=-1, keepdims=True),
                                     approx=True)

        def _nt(a, b):   # a @ b^T :  a (M,K), b (N,K) -> (M,N), f32 accum
            return jax.lax.dot_general(a.astype(bf16), b.astype(bf16),
                                       (((1,), (1,)), ((), ())),
                                       preferred_element_type=f32)

        a_h = _softmax(jnp.dot(q_t, k_b, preferred_element_type=f32))   # (HW, HW)
        a_m = _softmax(jnp.dot(q_t, k2_b, preferred_element_type=f32))  # (HW, HW)
        z_h = _nt(v, a_h)                                    # (hd, HW)
        z_m = _nt(v2, a_m)                                   # (hd, HW)

        # z = wz @ [z_h; z_m]  ==  wz_a @ z_h + wz_b @ z_m   (no lane concat)
        z = (jnp.dot(watt_ref[r_za:r_za + 2 * hd, 0:hd], z_h.astype(bf16),
                     preferred_element_type=f32)
             + jnp.dot(watt_ref[r_zb:r_zb + 2 * hd, 0:hd], z_m.astype(bf16),
                       preferred_element_type=f32)
             + bias_ref[b_z:b_z + 2 * hd])                   # (2*hd, HW)

        # combined = wm @ [z; h_mid]
        comb = (jnp.dot(watt_ref[r_ma:r_ma + 3 * hd, 0:2 * hd], z.astype(bf16),
                        preferred_element_type=f32)
                + jnp.dot(watt_ref[r_mb:r_mb + 3 * hd, 0:hd], h_b,
                          preferred_element_type=f32)
                + bias_ref[b_mm:b_mm + 3 * hd])              # (3*hd, HW)

        mo = comb[0 * hd:1 * hd]
        mg = comb[1 * hd:2 * hd]
        mi = jax.nn.sigmoid(comb[2 * hd:3 * hd])
        new_m = (1.0 - mi) * m_prev + mi * jnp.tanh(mg)
        new_h = jax.nn.sigmoid(mo) * new_m

        # lane-dense (HW = 256 lanes) output stores
        h_out_ref[0] = new_h
        c_out_ref[0] = c_next
        m_out_ref[0] = new_m

    return kernel


# ----------------------------------------------------------------------------
# Wrapper (NCHW in / NCHW out, like the PyTorch module)
# ----------------------------------------------------------------------------
@jax.jit
def sa_convlstm_cell_forward(x, h, c, m, params):
    B, Cx, H, W = x.shape
    hd = h.shape[1]
    att = params["wq"].shape[0]
    Cin = Cx + hd
    Cout = 4 * hd
    HW = H * W
    K = 9 * Cin
    Kp = ((K + 127) // 128) * 128          # pad contraction dim (324 -> 384)
    bf16 = jnp.bfloat16

    # ---- im2col in the wrapper (pure layout plumbing, runs in XLA) ---------
    comb = jnp.concatenate([x, h], axis=1)                       # (B,Cin,H,W)
    comb_p = jnp.pad(comb, ((0, 0), (0, 0), (1, 1), (1, 1)))
    taps = [comb_p[:, :, dy:dy + H, dx:dx + W]
            for dy in range(3) for dx in range(3)]
    patches = jnp.stack(taps, axis=2).reshape(B, K, HW)          # (B,9*Cin,HW)
    patches = jnp.pad(patches, ((0, 0), (0, Kp - K), (0, 0))).astype(bf16)

    # ---- pack the 18 parameter tensors into 3 slabs (3 DMAs total) ---------
    wconv = params["wconv"].reshape(Cout, K)                     # OIHW -> (Cout, Cin*9)
    wconv = jnp.pad(wconv, ((0, 0), (0, Kp - K))).astype(bf16)   # (Cout, Kp)

    def pad_w(w):                                                # pad in-dim to 2*hd
        return jnp.pad(w, ((0, 0), (0, 2 * hd - w.shape[1])))

    wz, wm = params["wz"], params["wm"]
    watt = jnp.concatenate(
        [pad_w(jnp.concatenate([params["wq"], params["wk"], params["wv"]], 0)),
         pad_w(jnp.concatenate([params["wk2"], params["wv2"]], 0)),
         pad_w(wz[:, :hd]), pad_w(wz[:, hd:]),
         wm[:, :2 * hd], pad_w(wm[:, 2 * hd:])], axis=0).astype(bf16)

    bias = jnp.concatenate(
        [params["gamma"], params["beta"],
         params["bq"], params["bk"], params["bv"],
         params["bk2"], params["bv2"],
         params["bz"], params["bm"]]).astype(jnp.float32)[:, None]   # (n, 1)

    c_flat = c.reshape(B, hd, HW).astype(jnp.float32)
    m_flat = m.reshape(B, hd, HW).astype(jnp.float32)

    kernel = _make_kernel(HW, hd, att, Cout)

    state_spec = pl.BlockSpec((1, hd, HW), lambda b: (b, 0, 0))
    in_specs = [
        pl.BlockSpec((1, Kp, HW), lambda b: (b, 0, 0)),          # im2col patches
        state_spec, state_spec,                                  # c, m
        pl.BlockSpec(wconv.shape, lambda b: (0, 0)),             # conv weight slab
        pl.BlockSpec(watt.shape, lambda b: (0, 0)),              # attn weight slab
        pl.BlockSpec(bias.shape, lambda b: (0, 0)),              # bias / GN slab
    ]
    out_specs = [state_spec, state_spec, state_spec]
    out_shape = [jax.ShapeDtypeStruct((B, hd, HW), jnp.float32)] * 3

    h_new, c_new, m_new = pl.pallas_call(
        kernel,
        grid=(B,),
        in_specs=in_specs,
        out_specs=out_specs,
        out_shape=out_shape,
        compiler_params=pltpu.CompilerParams(
            dimension_semantics=("parallel",)),
    )(patches, c_flat, m_flat, wconv, watt, bias)

    def to_nchw(a):
        return a.reshape(B, hd, H, W)

    h_new = to_nchw(h_new)
    return h_new, (h_new, to_nchw(c_new), to_nchw(m_new))


# ----------------------------------------------------------------------------
# Pure-JAX reference (mirrors the PyTorch forward) for correctness check
# ----------------------------------------------------------------------------
def reference_forward(x, h, c, m, params):
    B, Cx, H, W = x.shape
    hd = h.shape[1]
    HW = H * W
    hp = jax.lax.Precision.HIGHEST

    comb = jnp.concatenate([x, h], axis=1)
    conv = jax.lax.conv_general_dilated(
        comb, params["wconv"], (1, 1), "SAME",
        dimension_numbers=("NCHW", "OIHW", "NCHW"), precision=hp)
    conv = conv + params["bconv"][None, :, None, None]
    mean = jnp.mean(conv, axis=(2, 3), keepdims=True)
    var = jnp.mean((conv - mean) ** 2, axis=(2, 3), keepdims=True)
    gn = (conv - mean) * jax.lax.rsqrt(var + 1e-5)
    gn = gn * params["gamma"][None, :, None, None] + params["beta"][None, :, None, None]

    i = jax.nn.sigmoid(gn[:, 0 * hd:1 * hd])
    f = jax.nn.sigmoid(gn[:, 1 * hd:2 * hd])
    o = jax.nn.sigmoid(gn[:, 2 * hd:3 * hd])
    g = jnp.tanh(gn[:, 3 * hd:4 * hd])
    c_next = f * c + i * g
    h_mid = o * jnp.tanh(c_next)                           # (B, hd, H, W)

    def c1x1(w, b, t):                                     # 1x1 conv on (B, C, HW)
        return jnp.einsum('oc,bcp->bop', w, t, precision=hp) + b[None, :, None]

    hf = h_mid.reshape(B, hd, HW)
    mf = m.reshape(B, hd, HW)
    q = c1x1(params["wq"], params["bq"], hf)               # (B, att, HW)
    k = c1x1(params["wk"], params["bk"], hf)
    v = c1x1(params["wv"], params["bv"], hf)               # (B, hd, HW)
    k2 = c1x1(params["wk2"], params["bk2"], mf)
    v2 = c1x1(params["wv2"], params["bv2"], mf)

    a_h = jax.nn.softmax(jnp.einsum('bap,baq->bpq', q, k, precision=hp), axis=-1)
    z_h = jnp.einsum('bpq,bcq->bcp', a_h, v, precision=hp)
    a_m = jax.nn.softmax(jnp.einsum('bap,baq->bpq', q, k2, precision=hp), axis=-1)
    z_m = jnp.einsum('bpq,bcq->bcp', a_m, v2, precision=hp)

    zcat = jnp.concatenate([z_h, z_m], axis=1)
    z = c1x1(params["wz"], params["bz"], zcat)
    combm = c1x1(params["wm"], params["bm"], jnp.concatenate([z, hf], axis=1))
    mo = combm[:, 0 * hd:1 * hd]
    mg = combm[:, 1 * hd:2 * hd]
    mi = jax.nn.sigmoid(combm[:, 2 * hd:3 * hd])
    new_m = (1.0 - mi) * mf + mi * jnp.tanh(mg)
    new_h = jax.nn.sigmoid(mo) * new_m

    new_h = new_h.reshape(B, hd, H, W)
    new_m = new_m.reshape(B, hd, H, W)
    return new_h, (new_h, c_next, new_m)


# ----------------------------------------------------------------------------
# Main
# ----------------------------------------------------------------------------
if __name__ == "__main__":
    B, input_dim, hidden_dim, att_dim, H, W = 2, 4, 32, 16, 16, 16
    Cin = input_dim + hidden_dim
    Cout = 4 * hidden_dim

    key = jax.random.PRNGKey(0)
    ks = jax.random.split(key, 24)

    def init(k, shape, scale=0.1):
        return scale * jax.random.normal(k, shape, jnp.float32)

    # Parameters in PyTorch-style shapes (Conv2d OIHW; 1x1 convs as (out, in)).
    params = {
        "wconv": init(ks[0], (Cout, Cin, 3, 3)),
        "bconv": init(ks[1], (Cout,)),
        "gamma": 1.0 + init(ks[2], (Cout,)),
        "beta": init(ks[3], (Cout,)),
        "wq": init(ks[4], (att_dim, hidden_dim)), "bq": init(ks[5], (att_dim,)),
        "wk": init(ks[6], (att_dim, hidden_dim)), "bk": init(ks[7], (att_dim,)),
        "wk2": init(ks[8], (att_dim, hidden_dim)), "bk2": init(ks[9], (att_dim,)),
        "wv": init(ks[10], (hidden_dim, hidden_dim)), "bv": init(ks[11], (hidden_dim,)),
        "wv2": init(ks[12], (hidden_dim, hidden_dim)), "bv2": init(ks[13], (hidden_dim,)),
        "wz": init(ks[14], (2 * hidden_dim, 2 * hidden_dim)), "bz": init(ks[15], (2 * hidden_dim,)),
        "wm": init(ks[16], (3 * hidden_dim, 3 * hidden_dim)), "bm": init(ks[17], (3 * hidden_dim,)),
    }

    x = jax.random.normal(ks[18], (B, input_dim, H, W), jnp.float32)
    h0 = jax.random.normal(ks[19], (B, hidden_dim, H, W), jnp.float32)
    c0 = jax.random.normal(ks[20], (B, hidden_dim, H, W), jnp.float32)
    m0 = jax.random.normal(ks[21], (B, hidden_dim, H, W), jnp.float32)

    h_next, (h_n2, c_next, m_next) = sa_convlstm_cell_forward(x, h0, c0, m0, params)
    jax.block_until_ready((h_next, c_next, m_next))

    # correctness check vs. pure-JAX reference (bf16 matmuls -> loose tolerance)
    h_ref, (_, c_ref, m_ref) = reference_forward(x, h0, c0, m0, params)
    for got, ref in ((h_next, h_ref), (c_next, c_ref), (m_next, m_ref)):
        assert got.shape == ref.shape
        np.testing.assert_allclose(np.asarray(got), np.asarray(ref),
                                   rtol=5e-2, atol=5e-2)

    print("KERNEL_OK")
</pallas_src>

<mosaic_0001>
module attributes {stable_mosaic.version = 11 : i64} {
  func.func @kernel(%arg0: i32, %arg1: memref<1x384x256xbf16, #tpu.memory_space<vmem>>, %arg2: memref<1x32x256xf32, #tpu.memory_space<vmem>>, %arg3: memref<1x32x256xf32, #tpu.memory_space<vmem>>, %arg4: memref<128x384xbf16, #tpu.memory_space<vmem>>, %arg5: memref<432x64xbf16, #tpu.memory_space<vmem>>, %arg6: memref<528x1xf32, #tpu.memory_space<vmem>>, %arg7: memref<1x32x256xf32, #tpu.memory_space<vmem>>, %arg8: memref<1x32x256xf32, #tpu.memory_space<vmem>>, %arg9: memref<1x32x256xf32, #tpu.memory_space<vmem>>) attributes {dimension_semantics = [#tpu.dimension_semantics<parallel>], iteration_bounds = array<i64: 2>, scalar_prefetch = 0 : i64, scratch_operands = 0 : i64, tpu.core_type = #tpu.core_type<tc>, window_params = [{transform_indices = @transform_0, window_bounds = array<i64: 1, 384, 256>}, {transform_indices = @transform_1, window_bounds = array<i64: 1, 32, 256>}, {transform_indices = @transform_2, window_bounds = array<i64: 1, 32, 256>}, {pipeline_mode = #tpu.pipeline_mode<synchronous>, transform_indices = @transform_3, window_bounds = array<i64: 128, 384>}, {pipeline_mode = #tpu.pipeline_mode<synchronous>, transform_indices = @transform_4, window_bounds = array<i64: 432, 64>}, {pipeline_mode = #tpu.pipeline_mode<synchronous>, transform_indices = @transform_5, window_bounds = array<i64: 528, 1>}, {transform_indices = @transform_6, window_bounds = array<i64: 1, 32, 256>}, {transform_indices = @transform_7, window_bounds = array<i64: 1, 32, 256>}, {transform_indices = @transform_8, window_bounds = array<i64: 1, 32, 256>}]} {
    %c0 = arith.constant 0 : index
    %c0_0 = arith.constant 0 : index
    %0 = vector.load %arg4[%c0, %c0_0] : memref<128x384xbf16, #tpu.memory_space<vmem>>, vector<128x384xbf16>
    %c0_1 = arith.constant 0 : index
    %c0_2 = arith.constant 0 : index
    %c0_3 = arith.constant 0 : index
    %1 = vector.load %arg1[%c0_1, %c0_2, %c0_3] : memref<1x384x256xbf16, #tpu.memory_space<vmem>>, vector<1x384x256xbf16>
    %2 = vector.shape_cast %1 : vector<1x384x256xbf16> to vector<384x256xbf16>
    %cst = arith.constant dense<0.000000e+00> : vector<128x256xf32>
    %3 = tpu.matmul %0, %2, %cst {dimension_numbers = #tpu.dot_dimension_numbers<[1], [0], [0], [1], [0, 0, 1, 1], [], []>} : vector<128x384xbf16>, vector<384x256xbf16>, vector<128x256xf32> -> vector<128x256xf32>
    %cst_4 = arith.constant dense<0.000000e+00> : vector<128xf32>
    %4 = vector.multi_reduction <add>, %3, %cst_4 [1] : vector<128x256xf32> to vector<128xf32>
    %5 = vector.shape_cast %4 : vector<128xf32> to vector<128x1xf32>
    %cst_5 = arith.constant 2.560000e+02 : f32
    %6 = vector.broadcast %cst_5 : f32 to vector<128x1xf32>
    %7 = arith.divf %5, %6 : vector<128x1xf32>
    %8 = vector.broadcast %7 : vector<128x1xf32> to vector<128x256xf32>
    %9 = arith.subf %3, %8 : vector<128x256xf32>
    %10 = arith.mulf %9, %9 : vector<128x256xf32>
    %cst_6 = arith.constant dense<0.000000e+00> : vector<128xf32>
    %11 = vector.multi_reduction <add>, %10, %cst_6 [1] : vector<128x256xf32> to vector<128xf32>
    %12 = vector.shape_cast %11 : vector<128xf32> to vector<128x1xf32>
    %cst_7 = arith.constant 2.560000e+02 : f32
    %13 = vector.broadcast %cst_7 : f32 to vector<128x1xf32>
    %14 = arith.divf %12, %13 : vector<128x1xf32>
    %c0_8 = arith.constant 0 : index
    %c0_9 = arith.constant 0 : index
    %15 = vector.load %arg6[%c0_8, %c0_9] : memref<528x1xf32, #tpu.memory_space<vmem>>, vector<128x1xf32>
    %c128 = arith.constant 128 : index
    %c0_10 = arith.constant 0 : index
    %16 = vector.load %arg6[%c128, %c0_10] : memref<528x1xf32, #tpu.memory_space<vmem>>, vector<128x1xf32>
    %cst_11 = arith.constant 9.99999974E-6 : f32
    %17 = vector.broadcast %cst_11 : f32 to vector<128x1xf32>
    %18 = arith.addf %14, %17 : vector<128x1xf32>
    %19 = math.rsqrt %18 : vector<128x1xf32>
    %20 = arith.mulf %19, %15 : vector<128x1xf32>
    %21 = vector.broadcast %20 : vector<128x1xf32> to vector<128x256xf32>
    %22 = arith.mulf %9, %21 : vector<128x256xf32>
    %23 = vector.broadcast %16 : vector<128x1xf32> to vector<128x256xf32>
    %24 = arith.addf %22, %23 : vector<128x256xf32>
    %25 = vector.extract_strided_slice %24 {offsets = [0, 0], sizes = [32, 256], strides = [1, 1]} : vector<128x256xf32> to vector<32x256xf32>
    %26 = arith.negf %25 : vector<32x256xf32>
    %27 = math.exp %26 : vector<32x256xf32>
    %cst_12 = arith.constant 1.000000e+00 : f32
    %28 = vector.broadcast %cst_12 : f32 to vector<32x256xf32>
    %29 = arith.addf %28, %27 : vector<32x256xf32>
    %30 = arith.divf %28, %29 : vector<32x256xf32>
    %31 = vector.extract_strided_slice %24 {offsets = [32, 0], sizes = [32, 256], strides = [1, 1]} : vector<128x256xf32> to vector<32x256xf32>
    %32 = arith.negf %31 : vector<32x256xf32>
    %33 = math.exp %32 : vector<32x256xf32>
    %cst_13 = arith.constant 1.000000e+00 : f32
    %34 = vector.broadcast %cst_13 : f32 to vector<32x256xf32>
    %35 = arith.addf %34, %33 : vector<32x256xf32>
    %36 = arith.divf %34, %35 : vector<32x256xf32>
    %37 = vector.extract_strided_slice %24 {offsets = [64, 0], sizes = [32, 256], strides = [1, 1]} : vector<128x256xf32> to vector<32x256xf32>
    %38 = arith.negf %37 : vector<32x256xf32>
    %39 = math.exp %38 : vector<32x256xf32>
    %cst_14 = arith.constant 1.000000e+00 : f32
    %40 = vector.broadcast %cst_14 : f32 to vector<32x256xf32>
    %41 = arith.addf %40, %39 : vector<32x256xf32>
    %42 = arith.divf %40, %41 : vector<32x256xf32>
    %43 = vector.extract_strided_slice %24 {offsets = [96, 0], sizes = [32, 256], strides = [1, 1]} : vector<128x256xf32> to vector<32x256xf32>
    %44 = math.tanh %43 : vector<32x256xf32>
    %c0_15 = arith.constant 0 : index
    %c0_16 = arith.constant 0 : index
    %c0_17 = arith.constant 0 : index
    %45 = vector.load %arg2[%c0_15, %c0_16, %c0_17] : memref<1x32x256xf32, #tpu.memory_space<vmem>>, vector<1x32x256xf32>
    %46 = vector.shape_cast %45 : vector<1x32x256xf32> to vector<32x256xf32>
    %c0_18 = arith.constant 0 : index
    %c0_19 = arith.constant 0 : index
    %c0_20 = arith.constant 0 : index
    %47 = vector.load %arg3[%c0_18, %c0_19, %c0_20] : memref<1x32x256xf32, #tpu.memory_space<vmem>>, vector<1x32x256xf32>
    %48 = vector.shape_cast %47 : vector<1x32x256xf32> to vector<32x256xf32>
    %49 = arith.mulf %36, %46 : vector<32x256xf32>
    %50 = arith.mulf %30, %44 : vector<32x256xf32>
    %51 = arith.addf %49, %50 : vector<32x256xf32>
    %52 = math.tanh %51 : vector<32x256xf32>
    %53 = arith.mulf %42, %52 : vector<32x256xf32>
    %54 = arith.truncf %53 : vector<32x256xf32> to vector<32x256xbf16>
    %55 = arith.truncf %48 : vector<32x256xf32> to vector<32x256xbf16>
    %c0_21 = arith.constant 0 : index
    %c0_22 = arith.constant 0 : index
    %56 = vector.load %arg5[%c0_21, %c0_22] : memref<432x64xbf16, #tpu.memory_space<vmem>>, vector<64x32xbf16>
    %cst_23 = arith.constant dense<0.000000e+00> : vector<64x256xf32>
    %57 = tpu.matmul %56, %54, %cst_23 {dimension_numbers = #tpu.dot_dimension_numbers<[1], [0], [0], [1], [0, 0, 1, 1], [], []>} : vector<64x32xbf16>, vector<32x256xbf16>, vector<64x256xf32> -> vector<64x256xf32>
    %c256 = arith.constant 256 : index
    %c0_24 = arith.constant 0 : index
    %58 = vector.load %arg6[%c256, %c0_24] : memref<528x1xf32, #tpu.memory_space<vmem>>, vector<64x1xf32>
    %59 = vector.broadcast %58 : vector<64x1xf32> to vector<64x256xf32>
    %60 = arith.addf %57, %59 : vector<64x256xf32>
    %c64 = arith.constant 64 : index
    %c0_25 = arith.constant 0 : index
    %61 = vector.load %arg5[%c64, %c0_25] : memref<432x64xbf16, #tpu.memory_space<vmem>>, vector<48x32xbf16>
    %cst_26 = arith.constant dense<0.000000e+00> : vector<48x256xf32>
    %62 = tpu.matmul %61, %55, %cst_26 {dimension_numbers = #tpu.dot_dimension_numbers<[1], [0], [0], [1], [0, 0, 1, 1], [], []>} : vector<48x32xbf16>, vector<32x256xbf16>, vector<48x256xf32> -> vector<48x256xf32>
    %c320 = arith.constant 320 : index
    %c0_27 = arith.constant 0 : index
    %63 = vector.load %arg6[%c320, %c0_27] : memref<528x1xf32, #tpu.memory_space<vmem>>, vector<48x1xf32>
    %64 = vector.broadcast %63 : vector<48x1xf32> to vector<48x256xf32>
    %65 = arith.addf %62, %64 : vector<48x256xf32>
    %66 = vector.extract_strided_slice %60 {offsets = [0, 0], sizes = [16, 256], strides = [1, 1]} : vector<64x256xf32> to vector<16x256xf32>
    %67 = tpu.transpose %66, [1, 0] : vector<16x256xf32> -> vector<256x16xf32>
    %68 = arith.truncf %67 : vector<256x16xf32> to vector<256x16xbf16>
    %69 = vector.extract_strided_slice %60 {offsets = [16, 0], sizes = [16, 256], strides = [1, 1]} : vector<64x256xf32> to vector<16x256xf32>
    %70 = arith.truncf %69 : vector<16x256xf32> to vector<16x256xbf16>
    %71 = vector.extract_strided_slice %60 {offsets = [32, 0], sizes = [32, 256], strides = [1, 1]} : vector<64x256xf32> to vector<32x256xf32>
    %72 = vector.extract_strided_slice %65 {offsets = [0, 0], sizes = [16, 256], strides = [1, 1]} : vector<48x256xf32> to vector<16x256xf32>
    %73 = arith.truncf %72 : vector<16x256xf32> to vector<16x256xbf16>
    %74 = vector.extract_strided_slice %65 {offsets = [16, 0], sizes = [32, 256], strides = [1, 1]} : vector<48x256xf32> to vector<32x256xf32>
    %cst_28 = arith.constant dense<0.000000e+00> : vector<256x256xf32>
    %75 = tpu.matmul %68, %70, %cst_28 {dimension_numbers = #tpu.dot_dimension_numbers<[1], [0], [0], [1], [0, 0, 1, 1], [], []>} : vector<256x16xbf16>, vector<16x256xbf16>, vector<256x256xf32> -> vector<256x256xf32>
    %cst_29 = arith.constant dense<0xFF800000> : vector<256xf32>
    %76 = vector.multi_reduction <maximumf>, %75, %cst_29 [1] : vector<256x256xf32> to vector<256xf32>
    %77 = vector.shape_cast %76 : vector<256xf32> to vector<256x1xf32>
    %78 = vector.broadcast %77 : vector<256x1xf32> to vector<256x256xf32>
    %79 = arith.subf %75, %78 : vector<256x256xf32>
    %80 = math.exp %79 : vector<256x256xf32>
    %cst_30 = arith.constant dense<0.000000e+00> : vector<256xf32>
    %81 = vector.multi_reduction <add>, %80, %cst_30 [1] : vector<256x256xf32> to vector<256xf32>
    %82 = vector.shape_cast %81 : vector<256xf32> to vector<256x1xf32>
    %83 = tpu.reciprocal %82 {approx = true} : vector<256x1xf32> -> vector<256x1xf32>
    %84 = vector.broadcast %83 : vector<256x1xf32> to vector<256x256xf32>
    %85 = arith.mulf %80, %84 : vector<256x256xf32>
    %cst_31 = arith.constant dense<0.000000e+00> : vector<256x256xf32>
    %86 = tpu.matmul %68, %73, %cst_31 {dimension_numbers = #tpu.dot_dimension_numbers<[1], [0], [0], [1], [0, 0, 1, 1], [], []>} : vector<256x16xbf16>, vector<16x256xbf16>, vector<256x256xf32> -> vector<256x256xf32>
    %cst_32 = arith.constant dense<0xFF800000> : vector<256xf32>
    %87 = vector.multi_reduction <maximumf>, %86, %cst_32 [1] : vector<256x256xf32> to vector<256xf32>
    %88 = vector.shape_cast %87 : vector<256xf32> to vector<256x1xf32>
    %89 = vector.broadcast %88 : vector<256x1xf32> to vector<256x256xf32>
    %90 = arith.subf %86, %89 : vector<256x256xf32>
    %91 = math.exp %90 : vector<256x256xf32>
    %cst_33 = arith.constant dense<0.000000e+00> : vector<256xf32>
    %92 = vector.multi_reduction <add>, %91, %cst_33 [1] : vector<256x256xf32> to vector<256xf32>
    %93 = vector.shape_cast %92 : vector<256xf32> to vector<256x1xf32>
    %94 = tpu.reciprocal %93 {approx = true} : vector<256x1xf32> -> vector<256x1xf32>
    %95 = vector.broadcast %94 : vector<256x1xf32> to vector<256x256xf32>
    %96 = arith.mulf %91, %95 : vector<256x256xf32>
    %97 = arith.truncf %71 : vector<32x256xf32> to vector<32x256xbf16>
    %98 = arith.truncf %85 : vector<256x256xf32> to vector<256x256xbf16>
    %cst_34 = arith.constant dense<0.000000e+00> : vector<32x256xf32>
    %99 = tpu.matmul %97, %98, %cst_34 {dimension_numbers = #tpu.dot_dimension_numbers<[1], [1], [0], [0], [0, 0, 1, 0], [], []>} : vector<32x256xbf16>, vector<256x256xbf16>, vector<32x256xf32> -> vector<32x256xf32>
    %100 = arith.truncf %74 : vector<32x256xf32> to vector<32x256xbf16>
    %101 = arith.truncf %96 : vector<256x256xf32> to vector<256x256xbf16>
    %cst_35 = arith.constant dense<0.000000e+00> : vector<32x256xf32>
    %102 = tpu.matmul %100, %101, %cst_35 {dimension_numbers = #tpu.dot_dimension_numbers<[1], [1], [0], [0], [0, 0, 1, 0], [], []>} : vector<32x256xbf16>, vector<256x256xbf16>, vector<32x256xf32> -> vector<32x256xf32>
    %c112 = arith.constant 112 : index
    %c0_36 = arith.constant 0 : index
    %103 = vector.load %arg5[%c112, %c0_36] : memref<432x64xbf16, #tpu.memory_space<vmem>>, vector<64x32xbf16>
    %104 = arith.truncf %99 : vector<32x256xf32> to vector<32x256xbf16>
    %cst_37 = arith.constant dense<0.000000e+00> : vector<64x256xf32>
    %105 = tpu.matmul %103, %104, %cst_37 {dimension_numbers = #tpu.dot_dimension_numbers<[1], [0], [0], [1], [0, 0, 1, 1], [], []>} : vector<64x32xbf16>, vector<32x256xbf16>, vector<64x256xf32> -> vector<64x256xf32>
    %c176 = arith.constant 176 : index
    %c0_38 = arith.constant 0 : index
    %106 = vector.load %arg5[%c176, %c0_38] : memref<432x64xbf16, #tpu.memory_space<vmem>>, vector<64x32xbf16>
    %107 = arith.truncf %102 : vector<32x256xf32> to vector<32x256xbf16>
    %cst_39 = arith.constant dense<0.000000e+00> : vector<64x256xf32>
    %108 = tpu.matmul %106, %107, %cst_39 {dimension_numbers = #tpu.dot_dimension_numbers<[1], [0], [0], [1], [0, 0, 1, 1], [], []>} : vector<64x32xbf16>, vector<32x256xbf16>, vector<64x256xf32> -> vector<64x256xf32>
    %109 = arith.addf %105, %108 : vector<64x256xf32>
    %c368 = arith.constant 368 : index
    %c0_40 = arith.constant 0 : index
    %110 = vector.load %arg6[%c368, %c0_40] : memref<528x1xf32, #tpu.memory_space<vmem>>, vector<64x1xf32>
    %111 = vector.broadcast %110 : vector<64x1xf32> to vector<64x256xf32>
    %112 = arith.addf %109, %111 : vector<64x256xf32>
    %c240 = arith.constant 240 : index
    %c0_41 = arith.constant 0 : index
    %113 = vector.load %arg5[%c240, %c0_41] : memref<432x64xbf16, #tpu.memory_space<vmem>>, vector<96x64xbf16>
    %114 = arith.truncf %112 : vector<64x256xf32> to vector<64x256xbf16>
    %cst_42 = arith.constant dense<0.000000e+00> : vector<96x256xf32>
    %115 = tpu.matmul %113, %114, %cst_42 {dimension_numbers = #tpu.dot_dimension_numbers<[1], [0], [0], [1], [0, 0, 1, 1], [], []>} : vector<96x64xbf16>, vector<64x256xbf16>, vector<96x256xf32> -> vector<96x256xf32>
    %c336 = arith.constant 336 : index
    %c0_43 = arith.constant 0 : index
    %116 = vector.load %arg5[%c336, %c0_43] : memref<432x64xbf16, #tpu.memory_space<vmem>>, vector<96x32xbf16>
    %cst_44 = arith.constant dense<0.000000e+00> : vector<96x256xf32>
    %117 = tpu.matmul %116, %54, %cst_44 {dimension_numbers = #tpu.dot_dimension_numbers<[1], [0], [0], [1], [0, 0, 1, 1], [], []>} : vector<96x32xbf16>, vector<32x256xbf16>, vector<96x256xf32> -> vector<96x256xf32>
    %118 = arith.addf %115, %117 : vector<96x256xf32>
    %c432 = arith.constant 432 : index
    %c0_45 = arith.constant 0 : index
    %119 = vector.load %arg6[%c432, %c0_45] : memref<528x1xf32, #tpu.memory_space<vmem>>, vector<96x1xf32>
    %120 = vector.broadcast %119 : vector<96x1xf32> to vector<96x256xf32>
    %121 = arith.addf %118, %120 : vector<96x256xf32>
    %122 = vector.extract_strided_slice %121 {offsets = [0, 0], sizes = [32, 256], strides = [1, 1]} : vector<96x256xf32> to vector<32x256xf32>
    %123 = vector.extract_strided_slice %121 {offsets = [32, 0], sizes = [32, 256], strides = [1, 1]} : vector<96x256xf32> to vector<32x256xf32>
    %124 = vector.extract_strided_slice %121 {offsets = [64, 0], sizes = [32, 256], strides = [1, 1]} : vector<96x256xf32> to vector<32x256xf32>
    %125 = arith.negf %124 : vector<32x256xf32>
    %126 = math.exp %125 : vector<32x256xf32>
    %cst_46 = arith.constant 1.000000e+00 : f32
    %127 = vector.broadcast %cst_46 : f32 to vector<32x256xf32>
    %128 = arith.addf %127, %126 : vector<32x256xf32>
    %129 = arith.divf %127, %128 : vector<32x256xf32>
    %cst_47 = arith.constant 1.000000e+00 : f32
    %130 = vector.broadcast %cst_47 : f32 to vector<32x256xf32>
    %131 = arith.subf %130, %129 : vector<32x256xf32>
    %132 = arith.mulf %131, %48 : vector<32x256xf32>
    %133 = math.tanh %123 : vector<32x256xf32>
    %134 = arith.mulf %129, %133 : vector<32x256xf32>
    %135 = arith.addf %132, %134 : vector<32x256xf32>
    %136 = arith.negf %122 : vector<32x256xf32>
    %137 = math.exp %136 : vector<32x256xf32>
    %cst_48 = arith.constant 1.000000e+00 : f32
    %138 = vector.broadcast %cst_48 : f32 to vector<32x256xf32>
    %139 = arith.addf %138, %137 : vector<32x256xf32>
    %140 = arith.divf %138, %139 : vector<32x256xf32>
    %141 = arith.mulf %140, %135 : vector<32x256xf32>
    %c0_49 = arith.constant 0 : index
    %c0_50 = arith.constant 0 : index
    %c0_51 = arith.constant 0 : index
    %142 = vector.load %arg7[%c0_49, %c0_50, %c0_51] : memref<1x32x256xf32, #tpu.memory_space<vmem>>, vector<1x32x256xf32>
    %143 = vector.shape_cast %142 : vector<1x32x256xf32> to vector<32x256xf32>
    %144 = vector.shape_cast %141 : vector<32x256xf32> to vector<1x32x256xf32>
    tpu.vector_store %arg7[%c0_49, %c0_50, %c0_51], %144 {strides = array<i32>} : memref<1x32x256xf32, #tpu.memory_space<vmem>>, vector<1x32x256xf32>,
    %c0_52 = arith.constant 0 : index
    %c0_53 = arith.constant 0 : index
    %c0_54 = arith.constant 0 : index
    %145 = vector.load %arg8[%c0_52, %c0_53, %c0_54] : memref<1x32x256xf32, #tpu.memory_space<vmem>>, vector<1x32x256xf32>
    %146 = vector.shape_cast %145 : vector<1x32x256xf32> to vector<32x256xf32>
    %147 = vector.shape_cast %51 : vector<32x256xf32> to vector<1x32x256xf32>
    tpu.vector_store %arg8[%c0_52, %c0_53, %c0_54], %147 {strides = array<i32>} : memref<1x32x256xf32, #tpu.memory_space<vmem>>, vector<1x32x256xf32>,
    %c0_55 = arith.constant 0 : index
    %c0_56 = arith.constant 0 : index
    %c0_57 = arith.constant 0 : index
    %148 = vector.load %arg9[%c0_55, %c0_56, %c0_57] : memref<1x32x256xf32, #tpu.memory_space<vmem>>, vector<1x32x256xf32>
    %149 = vector.shape_cast %148 : vector<1x32x256xf32> to vector<32x256xf32>
    %150 = vector.shape_cast %135 : vector<32x256xf32> to vector<1x32x256xf32>
    tpu.vector_store %arg9[%c0_55, %c0_56, %c0_57], %150 {strides = array<i32>} : memref<1x32x256xf32, #tpu.memory_space<vmem>>, vector<1x32x256xf32>,
    return
  }
  func.func @transform_0(%arg0: i32) -> (i32, i32, i32) {
    %c0_i32 = arith.constant 0 : i32
    %c0_i32_0 = arith.constant 0 : i32
    %c0_i32_1 = arith.constant 0 : i32
    return %arg0, %c0_i32, %c0_i32_0 : i32, i32, i32
  }
  func.func @transform_1(%arg0: i32) -> (i32, i32, i32) {
    %c0_i32 = arith.constant 0 : i32
    %c0_i32_0 = arith.constant 0 : i32
    %c0_i32_1 = arith.constant 0 : i32
    return %arg0, %c0_i32, %c0_i32_0 : i32, i32, i32
  }
  func.func @transform_2(%arg0: i32) -> (i32, i32, i32) {
    %c0_i32 = arith.constant 0 : i32
    %c0_i32_0 = arith.constant 0 : i32
    %c0_i32_1 = arith.constant 0 : i32
    return %arg0, %c0_i32, %c0_i32_0 : i32, i32, i32
  }
  func.func @transform_3(%arg0: i32) -> (i32, i32) {
    %c0_i32 = arith.constant 0 : i32
    %c0_i32_0 = arith.constant 0 : i32
    %c0_i32_1 = arith.constant 0 : i32
    return %c0_i32, %c0_i32_0 : i32, i32
  }
  func.func @transform_4(%arg0: i32) -> (i32, i32) {
    %c0_i32 = arith.constant 0 : i32
    %c0_i32_0 = arith.constant 0 : i32
    %c0_i32_1 = arith.constant 0 : i32
    return %c0_i32, %c0_i32_0 : i32, i32
  }
  func.func @transform_5(%arg0: i32) -> (i32, i32) {
    %c0_i32 = arith.constant 0 : i32
    %c0_i32_0 = arith.constant 0 : i32
    %c0_i32_1 = arith.constant 0 : i32
    return %c0_i32, %c0_i32_0 : i32, i32
  }
  func.func @transform_6(%arg0: i32) -> (i32, i32, i32) {
    %c0_i32 = arith.constant 0 : i32
    %c0_i32_0 = arith.constant 0 : i32
    %c0_i32_1 = arith.constant 0 : i32
    return %arg0, %c0_i32, %c0_i32_0 : i32, i32, i32
  }
  func.func @transform_7(%arg0: i32) -> (i32, i32, i32) {
    %c0_i32 = arith.constant 0 : i32
    %c0_i32_0 = arith.constant 0 : i32
    %c0_i32_1 = arith.constant 0 : i32
    return %arg0, %c0_i32, %c0_i32_0 : i32, i32, i32
  }
  func.func @transform_8(%arg0: i32) -> (i32, i32, i32) {
    %c0_i32 = arith.constant 0 : i32
    %c0_i32_0 = arith.constant 0 : i32
    %c0_i32_1 = arith.constant 0 : i32
    return %arg0, %c0_i32, %c0_i32_0 : i32, i32, i32
  }
}

</mosaic_0001>

<llo_original>
// kernel: sa_convlstm_cell_forward.1
$region0: #{sa_convlstm_cell_forward.1}
  #allocation0 [shape = 'u32[]', space=smem, size = 0x4, offset = 0x4, fixed_abs, tag = 'smem constant byte address 0x4 - core index']
  #allocation1 [shape = 'u32[144,128]{1,0:T(1,128)}', space=vmem, size = 0x12000, scoped, tag = 'internal scratch']
  %s0 = inlined_call_operand.vmem [shape: bf16[2,384,256], index: 0, kind: input, shape index: {}]
  %s1 = inlined_call_operand.vmem [shape: f32[2,32,256], index: 1, kind: input, shape index: {}]
  %s2 = inlined_call_operand.vmem [shape: f32[2,32,256], index: 2, kind: input, shape index: {}]
  %s3 = inlined_call_operand.vmem [shape: bf16[128,384], index: 3, kind: input, shape index: {}]
  %s4 = inlined_call_operand.vmem [shape: bf16[432,64], index: 4, kind: input, shape index: {}]
  %s5 = inlined_call_operand.vmem [shape: f32[528,1], index: 5, kind: input, shape index: {}]
  %s6 = inlined_call_operand.vmem [shape: f32[2,32,256], index: 6, kind: output, shape index: {0}]
  %s7 = inlined_call_operand.vmem [shape: f32[2,32,256], index: 7, kind: output, shape index: {1}]
  %s8 = inlined_call_operand.vmem [shape: f32[2,32,256], index: 8, kind: output, shape index: {2}]
  %9 = xla_tuple %s6, %s7, %s8
  %s10 = sld [smem:[#allocation0]]
  $region73: #{sa_convlstm_cell_forward.1} parent=0
    _
  %s12 = ssub.s32 1, %s10
  %s13 = scalar_select 0, %s12, %s10
  loop: start=0, step=1, limit=4
  $region2: #{sa_convlstm_cell_forward.1} parent=0 // loop_pre_header
    _
  $region3: #{sa_convlstm_cell_forward.1} parent=0 // loop_header
    %s15 = sphi 0, %s19
    %p16 = scmp.ge.s32.totalorder %s15, 4
    %s25 = sphi 0, %s27
    %s28 = sphi 0, %s25
    %s29 = sphi 0, %s28
    %s45 = sphi 0, %s29
    %s51 = sphi 0, %s53
    %s54 = sphi 0, %s51
    %s55 = sphi 0, %s54
    %s71 = sphi 0, %s55
    %s77 = sphi 0, %s79
    %s80 = sphi 0, %s77
    %s81 = sphi 0, %s80
    %s97 = sphi 0, %s81
    %s101 = sphi 0, %s101
    %s103 = sphi 0, %s101
    %s104 = sphi 0, %s103
    %s118 = sphi 0, %s104
    %s122 = sphi 0, %s122
    %s124 = sphi 0, %s122
    %s125 = sphi 0, %s124
    %s139 = sphi 0, %s125
    %s143 = sphi 0, %s143
    %s145 = sphi 0, %s143
    %s146 = sphi 0, %s145
    %s160 = sphi 0, %s146
    %s166 = sphi 0, %s168
    %s169 = sphi 0, %s166
    %s170 = sphi 0, %s169
    %s186 = sphi 0, %s170
    %s192 = sphi 0, %s194
    %s195 = sphi 0, %s192
    %s196 = sphi 0, %s195
    %s212 = sphi 0, %s196
    %s218 = sphi 0, %s220
    %s221 = sphi 0, %s218
    %s222 = sphi 0, %s221
    %s238 = sphi 0, %s222
  $region4: #{sa_convlstm_cell_forward.1} parent=0 // loop_header_branch
    %18 = sbr.rel (%p16) target = $region8
  $region5: #{sa_convlstm_cell_forward.1} parent=0 // loop_body
    %s20 = ssub.s32 %s15, 1
    %s21 = ssub.s32 %s15, 2
    %s22 = sadd.s32 %s15, 1
    %s23 = ssub.s32 %s15, %s22
    %p24 = scmp.eq.s32.totalorder %s23, 0
    %s26 = sadd.s32 %s25, 1
    %s27 = scalar_select %p24, %s25, %s26
    %p30 = pneg %p24
    %p31 = scmp.eq.s32.totalorder %s15, 1
    %p32 = por %p30, %p31
    %p33 = scmp.ne.s32.totalorder %s25, %s28
    %p34 = scmp.eq.s32.totalorder %s15, 0
    %p35 = por %p33, %p34
    %p36 = scmp.ne.s32.totalorder %s25, %s28
    %p37 = scmp.eq.s32.totalorder %s20, 1
    %p38 = por %p36, %p37
    %p39 = scmp.ne.s32.totalorder %s28, %s29
    %p40 = scmp.eq.s32.totalorder %s20, 0
    %p41 = por %p39, %p40
    %p42 = scmp.ne.s32.totalorder %s28, %s29
    %p43 = scmp.eq.s32.totalorder %s21, 1
    %p44 = por %p42, %p43
    %p46 = scmp.ne.s32.totalorder %s29, %s45
    %p47 = scmp.eq.s32.totalorder %s21, 0
    %p48 = por %p46, %p47
    %s49 = ssub.s32 %s15, %s22
    %p50 = scmp.eq.s32.totalorder %s49, 0
    %s52 = sadd.s32 %s51, 1
    %s53 = scalar_select %p50, %s51, %s52
    %p56 = pneg %p50
    %p57 = scmp.eq.s32.totalorder %s15, 1
    %p58 = por %p56, %p57
    %p59 = scmp.ne.s32.totalorder %s51, %s54
    %p60 = scmp.eq.s32.totalorder %s15, 0
    %p61 = por %p59, %p60
    %p62 = scmp.ne.s32.totalorder %s51, %s54
    %p63 = scmp.eq.s32.totalorder %s20, 1
    %p64 = por %p62, %p63
    %p65 = scmp.ne.s32.totalorder %s54, %s55
    %p66 = scmp.eq.s32.totalorder %s20, 0
    %p67 = por %p65, %p66
    %p68 = scmp.ne.s32.totalorder %s54, %s55
    %p69 = scmp.eq.s32.totalorder %s21, 1
    %p70 = por %p68, %p69
    %p72 = scmp.ne.s32.totalorder %s55, %s71
    %p73 = scmp.eq.s32.totalorder %s21, 0
    %p74 = por %p72, %p73
    %s75 = ssub.s32 %s15, %s22
    %p76 = scmp.eq.s32.totalorder %s75, 0
    %s78 = sadd.s32 %s77, 1
    %s79 = scalar_select %p76, %s77, %s78
    %p82 = pneg %p76
    %p83 = scmp.eq.s32.totalorder %s15, 1
    %p84 = por %p82, %p83
    %p85 = scmp.ne.s32.totalorder %s77, %s80
    %p86 = scmp.eq.s32.totalorder %s15, 0
    %p87 = por %p85, %p86
    %p88 = scmp.ne.s32.totalorder %s77, %s80
    %p89 = scmp.eq.s32.totalorder %s20, 1
    %p90 = por %p88, %p89
    %p91 = scmp.ne.s32.totalorder %s80, %s81
    %p92 = scmp.eq.s32.totalorder %s20, 0
    %p93 = por %p91, %p92
    %p94 = scmp.ne.s32.totalorder %s80, %s81
    %p95 = scmp.eq.s32.totalorder %s21, 1
    %p96 = por %p94, %p95
    %p98 = scmp.ne.s32.totalorder %s81, %s97
    %p99 = scmp.eq.s32.totalorder %s21, 0
    %p100 = por %p98, %p99
    %s102 = sadd.s32 %s101, 1
    %p105 = scmp.eq.s32.totalorder %s15, 1
    %p106 = scmp.ne.s32.totalorder %s101, %s103
    %p107 = scmp.eq.s32.totalorder %s15, 0
    %p108 = por %p106, %p107
    %p109 = scmp.ne.s32.totalorder %s101, %s103
    %p110 = scmp.eq.s32.totalorder %s20, 1
    %p111 = por %p109, %p110
    %p112 = scmp.ne.s32.totalorder %s103, %s104
    %p113 = scmp.eq.s32.totalorder %s20, 0
    %p114 = por %p112, %p113
    %p115 = scmp.ne.s32.totalorder %s103, %s104
    %p116 = scmp.eq.s32.totalorder %s21, 1
    %p117 = por %p115, %p116
    %p119 = scmp.ne.s32.totalorder %s104, %s118
    %p120 = scmp.eq.s32.totalorder %s21, 0
    %p121 = por %p119, %p120
    %s123 = sadd.s32 %s122, 1
    %p126 = scmp.eq.s32.totalorder %s15, 1
    %p127 = scmp.ne.s32.totalorder %s122, %s124
    %p128 = scmp.eq.s32.totalorder %s15, 0
    %p129 = por %p127, %p128
    %p130 = scmp.ne.s32.totalorder %s122, %s124
    %p131 = scmp.eq.s32.totalorder %s20, 1
    %p132 = por %p130, %p131
    %p133 = scmp.ne.s32.totalorder %s124, %s125
    %p134 = scmp.eq.s32.totalorder %s20, 0
    %p135 = por %p133, %p134
    %p136 = scmp.ne.s32.totalorder %s124, %s125
    %p137 = scmp.eq.s32.totalorder %s21, 1
    %p138 = por %p136, %p137
    %p140 = scmp.ne.s32.totalorder %s125, %s139
    %p141 = scmp.eq.s32.totalorder %s21, 0
    %p142 = por %p140, %p141
    %s144 = sadd.s32 %s143, 1
    %p147 = scmp.eq.s32.totalorder %s15, 1
    %p148 = scmp.ne.s32.totalorder %s143, %s145
    %p149 = scmp.eq.s32.totalorder %s15, 0
    %p150 = por %p148, %p149
    %p151 = scmp.ne.s32.totalorder %s143, %s145
    %p152 = scmp.eq.s32.totalorder %s20, 1
    %p153 = por %p151, %p152
    %p154 = scmp.ne.s32.totalorder %s145, %s146
    %p155 = scmp.eq.s32.totalorder %s20, 0
    %p156 = por %p154, %p155
    %p157 = scmp.ne.s32.totalorder %s145, %s146
    %p158 = scmp.eq.s32.totalorder %s21, 1
    %p159 = por %p157, %p158
    %p161 = scmp.ne.s32.totalorder %s146, %s160
    %p162 = scmp.eq.s32.totalorder %s21, 0
    %p163 = por %p161, %p162
    %s164 = ssub.s32 %s15, %s22
    %p165 = scmp.eq.s32.totalorder %s164, 0
    %s167 = sadd.s32 %s166, 1
    %s168 = scalar_select %p165, %s166, %s167
    %p171 = pneg %p165
    %p172 = scmp.eq.s32.totalorder %s15, 1
    %p173 = por %p171, %p172
    %p174 = scmp.ne.s32.totalorder %s166, %s169
    %p175 = scmp.eq.s32.totalorder %s15, 0
    %p176 = por %p174, %p175
    %p177 = scmp.ne.s32.totalorder %s166, %s169
    %p178 = scmp.eq.s32.totalorder %s20, 1
    %p179 = por %p177, %p178
    %p180 = scmp.ne.s32.totalorder %s169, %s170
    %p181 = scmp.eq.s32.totalorder %s20, 0
    %p182 = por %p180, %p181
    %p183 = scmp.ne.s32.totalorder %s169, %s170
    %p184 = scmp.eq.s32.totalorder %s21, 1
    %p185 = por %p183, %p184
    %p187 = scmp.ne.s32.totalorder %s170, %s186
    %p188 = scmp.eq.s32.totalorder %s21, 0
    %p189 = por %p187, %p188
    %s190 = ssub.s32 %s15, %s22
    %p191 = scmp.eq.s32.totalorder %s190, 0
    %s193 = sadd.s32 %s192, 1
    %s194 = scalar_select %p191, %s192, %s193
    %p197 = pneg %p191
    %p198 = scmp.eq.s32.totalorder %s15, 1
    %p199 = por %p197, %p198
    %p200 = scmp.ne.s32.totalorder %s192, %s195
    %p201 = scmp.eq.s32.totalorder %s15, 0
    %p202 = por %p200, %p201
    %p203 = scmp.ne.s32.totalorder %s192, %s195
    %p204 = scmp.eq.s32.totalorder %s20, 1
    %p205 = por %p203, %p204
    %p206 = scmp.ne.s32.totalorder %s195, %s196
    %p207 = scmp.eq.s32.totalorder %s20, 0
    %p208 = por %p206, %p207
    %p209 = scmp.ne.s32.totalorder %s195, %s196
    %p210 = scmp.eq.s32.totalorder %s21, 1
    %p211 = por %p209, %p210
    %p213 = scmp.ne.s32.totalorder %s196, %s212
    %p214 = scmp.eq.s32.totalorder %s21, 0
    %p215 = por %p213, %p214
    %s216 = ssub.s32 %s15, %s22
    %p217 = scmp.eq.s32.totalorder %s216, 0
    %s219 = sadd.s32 %s218, 1
    %s220 = scalar_select %p217, %s218, %s219
    %p223 = pneg %p217
    %p224 = scmp.eq.s32.totalorder %s15, 1
    %p225 = por %p223, %p224
    %p226 = scmp.ne.s32.totalorder %s218, %s221
    %p227 = scmp.eq.s32.totalorder %s15, 0
    %p228 = por %p226, %p227
    %p229 = scmp.ne.s32.totalorder %s218, %s221
    %p230 = scmp.eq.s32.totalorder %s20, 1
    %p231 = por %p229, %p230
    %p232 = scmp.ne.s32.totalorder %s221, %s222
    %p233 = scmp.eq.s32.totalorder %s20, 0
    %p234 = por %p232, %p233
    %p235 = scmp.ne.s32.totalorder %s221, %s222
    %p236 = scmp.eq.s32.totalorder %s21, 1
    %p237 = por %p235, %p236
    %p239 = scmp.ne.s32.totalorder %s222, %s238
    %p240 = scmp.eq.s32.totalorder %s21, 0
    %p241 = por %p239, %p240
    %p242 = scmp.le.s32.totalorder 1, %s15
    %p243 = scmp.lt.s32.totalorder %s15, 3
    %p244 = pnand %p242, %p243
    %p245 = pneg %p244
    // Predicated region
    $region9: #{sa_convlstm_cell_forward.1} parent=5 // pred_check
      _
    $region10: #{sa_convlstm_cell_forward.1} parent=5 // pred_check_branch
      %247 = sbr.rel (%p244) target = $region12
    $region11: #{sa_convlstm_cell_forward.1} parent=5 // pred_region
      %s248 = ssub.s32 %s15, 1
      // Predicated region
      $region13: #{sa_convlstm_cell_forward.1} parent=11 // pred_check
        %p249 = pneg %p114
      $region14: #{sa_convlstm_cell_forward.1} parent=11 // pred_check_branch
        %251 = sbr.rel (%p249) target = $region16
      $region15: #{sa_convlstm_cell_forward.1} parent=11 // pred_region
        _
      $region16: #{sa_convlstm_cell_forward.1} parent=11 // pred_fallthru
        _
      // Predicated region
      $region17: #{sa_convlstm_cell_forward.1} parent=11 // pred_check
        %p252 = pneg %p135
      $region18: #{sa_convlstm_cell_forward.1} parent=11 // pred_check_branch
        %254 = sbr.rel (%p252) target = $region20
      $region19: #{sa_convlstm_cell_forward.1} parent=11 // pred_region
        _
      $region20: #{sa_convlstm_cell_forward.1} parent=11 // pred_fallthru
        _
      // Predicated region
      $region21: #{sa_convlstm_cell_forward.1} parent=11 // pred_check
        %p255 = pneg %p156
      $region22: #{sa_convlstm_cell_forward.1} parent=11 // pred_check_branch
        %257 = sbr.rel (%p255) target = $region24
      $region23: #{sa_convlstm_cell_forward.1} parent=11 // pred_region
        _
      $region24: #{sa_convlstm_cell_forward.1} parent=11 // pred_fallthru
        _
    $region12: #{sa_convlstm_cell_forward.1} parent=5 // pred_fallthru
      _
    %p258 = scmp.lt.s32.totalorder %s15, 2
    // Predicated region
    $region25: #{sa_convlstm_cell_forward.1} parent=5 // pred_check
      %p259 = pneg %p258
    $region26: #{sa_convlstm_cell_forward.1} parent=5 // pred_check_branch
      %261 = sbr.rel (%p259) target = $region28
    $region27: #{sa_convlstm_cell_forward.1} parent=5 // pred_region
      // Predicated region
      $region29: #{sa_convlstm_cell_forward.1} parent=27 // pred_check
        %p262 = pneg %p35
      $region30: #{sa_convlstm_cell_forward.1} parent=27 // pred_check_branch
        %264 = sbr.rel (%p262) target = $region32
      $region31: #{sa_convlstm_cell_forward.1} parent=27 // pred_region
        %p265 = scmp.lt.s32.totalorder %s15, 1
        %s266 = scalar_select %p265, %s15, 1
        %s267 = smul.addr %s266, 96
        %s268 = smul.addr %s267, 4
        %s269 = scalar_lea.vmem %s0, %s268
      $region32: #{sa_convlstm_cell_forward.1} parent=27 // pred_fallthru
        _
      // Predicated region
      $region33: #{sa_convlstm_cell_forward.1} parent=27 // pred_check
        %p270 = pneg %p61
      $region34: #{sa_convlstm_cell_forward.1} parent=27 // pred_check_branch
        %272 = sbr.rel (%p270) target = $region36
      $region35: #{sa_convlstm_cell_forward.1} parent=27 // pred_region
        %p273 = scmp.lt.s32.totalorder %s15, 1
        %s274 = scalar_select %p273, %s15, 1
        %s275 = smul.addr %s274, 8
        %s276 = smul.addr %s275, 8
        %s277 = scalar_lea.vmem %s1, %s276
      $region36: #{sa_convlstm_cell_forward.1} parent=27 // pred_fallthru
        _
      // Predicated region
      $region37: #{sa_convlstm_cell_forward.1} parent=27 // pred_check
        %p278 = pneg %p87
      $region38: #{sa_convlstm_cell_forward.1} parent=27 // pred_check_branch
        %280 = sbr.rel (%p278) target = $region40
      $region39: #{sa_convlstm_cell_forward.1} parent=27 // pred_region
        %p281 = scmp.lt.s32.totalorder %s15, 1
        %s282 = scalar_select %p281, %s15, 1
        %s283 = smul.addr %s282, 8
        %s284 = smul.addr %s283, 8
        %s285 = scalar_lea.vmem %s2, %s284
      $region40: #{sa_convlstm_cell_forward.1} parent=27 // pred_fallthru
        _
    $region28: #{sa_convlstm_cell_forward.1} parent=5 // pred_fallthru
      _
    %p286 = scmp.le.s32.totalorder 1, %s15
    %p287 = scmp.lt.s32.totalorder %s15, 3
    %p288 = pnand %p286, %p287
    %p289 = pneg %p288
    // Predicated region
    $region41: #{sa_convlstm_cell_forward.1} parent=5 // pred_check
      _
    $region42: #{sa_convlstm_cell_forward.1} parent=5 // pred_check_branch
      %291 = sbr.rel (%p288) target = $region44
    $region43: #{sa_convlstm_cell_forward.1} parent=5 // pred_region
      %s292 = ssub.s32 %s15, 1
      %p293 = scmp.lt.s32.totalorder %s20, 1
      %s294 = scalar_select %p293, %s20, 1
      %s295 = smul.addr %s294, 96
      %s296 = smul.addr %s295, 4
      %s297 = scalar_lea.vmem %s0, %s296
      %p298 = pneg %p41
      %p299 = pneg %p38
      %p300 = scmp.lt.s32.totalorder %s20, 1
      %s301 = scalar_select %p300, %s20, 1
      %s302 = smul.addr %s301, 8
      %s303 = smul.addr %s302, 8
      %s304 = scalar_lea.vmem %s1, %s303
      %p305 = pneg %p67
      %p306 = pneg %p64
      %p307 = scmp.lt.s32.totalorder %s20, 1
      %s308 = scalar_select %p307, %s20, 1
      %s309 = smul.addr %s308, 8
      %s310 = smul.addr %s309, 8
      %s311 = scalar_lea.vmem %s2, %s310
      %p312 = pneg %p93
      %p313 = pneg %p90
      %p314 = pneg %p114
      %p315 = pneg %p111
      %p316 = pneg %p135
      %p317 = pneg %p132
      %p318 = pneg %p156
      %p319 = pneg %p153
      %p320 = pneg %p182
      %p321 = pneg %p179
      %p322 = scmp.lt.s32.totalorder %s20, 1
      %s323 = scalar_select %p322, %s20, 1
      %s324 = smul.addr %s323, 8
      %s325 = smul.addr %s324, 8
      %s326 = scalar_lea.vmem %s6, %s325
      %p327 = pneg %p208
      %p328 = pneg %p205
      %p329 = scmp.lt.s32.totalorder %s20, 1
      %s330 = scalar_select %p329, %s20, 1
      %s331 = smul.addr %s330, 8
      %s332 = smul.addr %s331, 8
      %s333 = scalar_lea.vmem %s7, %s332
      %p334 = pneg %p234
      %p335 = pneg %p231
      %p336 = scmp.lt.s32.totalorder %s20, 1
      %s337 = scalar_select %p336, %s20, 1
      %s338 = smul.addr %s337, 8
      %s339 = smul.addr %s338, 8
      %s340 = scalar_lea.vmem %s8, %s339
      %p341 = scmp.lt.s32.totalorder %s20, 1
      %s342 = scalar_select %p341, %s20, 1
      %s343 = smul.addr %s342, 96
      %s344 = smul.addr %s343, 4
      %s345 = scalar_lea.vmem %s0, %s344
      %p346 = scmp.lt.s32.totalorder %s20, 1
      %s347 = scalar_select %p346, %s20, 1
      %s348 = smul.addr %s347, 8
      %s349 = smul.addr %s348, 8
      %s350 = scalar_lea.vmem %s1, %s349
      %p351 = scmp.lt.s32.totalorder %s20, 1
      %s352 = scalar_select %p351, %s20, 1
      %s353 = smul.addr %s352, 8
      %s354 = smul.addr %s353, 8
      %s355 = scalar_lea.vmem %s2, %s354
      %p356 = scmp.lt.s32.totalorder %s20, 1
      %s357 = scalar_select %p356, %s20, 1
      %s358 = smul.addr %s357, 8
      %s359 = smul.addr %s358, 8
      %s360 = scalar_lea.vmem %s6, %s359
      %p361 = scmp.lt.s32.totalorder %s20, 1
      %s362 = scalar_select %p361, %s20, 1
      %s363 = smul.addr %s362, 8
      %s364 = smul.addr %s363, 8
      %s365 = scalar_lea.vmem %s7, %s364
      %p366 = scmp.lt.s32.totalorder %s20, 1
      %s367 = scalar_select %p366, %s20, 1
      %s368 = smul.addr %s367, 8
      %s369 = smul.addr %s368, 8
      %s370 = scalar_lea.vmem %s8, %s369
      %v372 = vld [vmem:[%s3] sm:$0xff]
      %v373 = vld [vmem:[%s3 + $0x8] sm:$0xf]
      %v374 = vld [vmem:[%s3 + $0xc] sm:$0xff]
      %v375 = vld [vmem:[%s3 + $0x14] sm:$0xf]
      %v376 = vld [vmem:[%s3 + $0x18] sm:$0xff]
      %v377 = vld [vmem:[%s3 + $0x20] sm:$0xf]
      %v378 = vld [vmem:[%s3 + $0x24] sm:$0xff]
      %v379 = vld [vmem:[%s3 + $0x2c] sm:$0xf]
      %v380 = vld [vmem:[%s3 + $0x30] sm:$0xff]
      %v381 = vld [vmem:[%s3 + $0x38] sm:$0xf]
      %v382 = vld [vmem:[%s3 + $0x3c] sm:$0xff]
      %v383 = vld [vmem:[%s3 + $0x44] sm:$0xf]
      %v384 = vld [vmem:[%s3 + $0x48] sm:$0xff]
      %v385 = vld [vmem:[%s3 + $0x50] sm:$0xf]
      %v386 = vld [vmem:[%s3 + $0x54] sm:$0xff]
      %v387 = vld [vmem:[%s3 + $0x5c] sm:$0xf]
      %v388 = vld [vmem:[%s3 + $0x60] sm:$0xff]
      %v389 = vld [vmem:[%s3 + $0x68] sm:$0xf]
      %v390 = vld [vmem:[%s3 + $0x6c] sm:$0xff]
      %v391 = vld [vmem:[%s3 + $0x74] sm:$0xf]
      %v392 = vld [vmem:[%s3 + $0x78] sm:$0xff]
      %v393 = vld [vmem:[%s3 + $0x80] sm:$0xf]
      %v394 = vld [vmem:[%s3 + $0x84] sm:$0xff]
      %v395 = vld [vmem:[%s3 + $0x8c] sm:$0xf]
      %v396 = vld [vmem:[%s3 + $0x90] sm:$0xff]
      %v397 = vld [vmem:[%s3 + $0x98] sm:$0xf]
      %v398 = vld [vmem:[%s3 + $0x9c] sm:$0xff]
      %v399 = vld [vmem:[%s3 + $0xa4] sm:$0xf]
      %v400 = vld [vmem:[%s3 + $0xa8] sm:$0xff]
      %v401 = vld [vmem:[%s3 + $0xb0] sm:$0xf]
      %v402 = vld [vmem:[%s3 + $0xb4] sm:$0xff]
      %v403 = vld [vmem:[%s3 + $0xbc] sm:$0xf]
      %v404 = vld [vmem:[%s345] sm:$0xff]
      %v405 = vld [vmem:[%s345 + $0x8] sm:$0xff]
      %v406 = vld [vmem:[%s345 + $0x10] sm:$0xff]
      %v407 = vld [vmem:[%s345 + $0x18] sm:$0xff]
      %v408 = vld [vmem:[%s345 + $0x20] sm:$0xff]
      %v409 = vld [vmem:[%s345 + $0x28] sm:$0xff]
      %v410 = vld [vmem:[%s345 + $0x30] sm:$0xff]
      %v411 = vld [vmem:[%s345 + $0x38] sm:$0xff]
      %v412 = vld [vmem:[%s345 + $0x40] sm:$0xff]
      %v413 = vld [vmem:[%s345 + $0x48] sm:$0xff]
      %v414 = vld [vmem:[%s345 + $0x50] sm:$0xff]
      %v415 = vld [vmem:[%s345 + $0x58] sm:$0xff]
      %v416 = vld [vmem:[%s345 + $0x60] sm:$0xff]
      %v417 = vld [vmem:[%s345 + $0x68] sm:$0xff]
      %v418 = vld [vmem:[%s345 + $0x70] sm:$0xff]
      %v419 = vld [vmem:[%s345 + $0x78] sm:$0xff]
      %v420 = vld [vmem:[%s345 + $0x80] sm:$0xff]
      %v421 = vld [vmem:[%s345 + $0x88] sm:$0xff]
      %v422 = vld [vmem:[%s345 + $0x90] sm:$0xff]
      %v423 = vld [vmem:[%s345 + $0x98] sm:$0xff]
      %v424 = vld [vmem:[%s345 + $0xa0] sm:$0xff]
      %v425 = vld [vmem:[%s345 + $0xa8] sm:$0xff]
      %v426 = vld [vmem:[%s345 + $0xb0] sm:$0xff]
      %v427 = vld [vmem:[%s345 + $0xb8] sm:$0xff]
      %v428 = vld [vmem:[%s345 + $0xc0] sm:$0xff]
      %v429 = vld [vmem:[%s345 + $0xc8] sm:$0xff]
      %v430 = vld [vmem:[%s345 + $0xd0] sm:$0xff]
      %v431 = vld [vmem:[%s345 + $0xd8] sm:$0xff]
      %v432 = vld [vmem:[%s345 + $0xe0] sm:$0xff]
      %v433 = vld [vmem:[%s345 + $0xe8] sm:$0xff]
      %v434 = vld [vmem:[%s345 + $0xf0] sm:$0xff]
      %v435 = vld [vmem:[%s345 + $0xf8] sm:$0xff]
      %v436 = vld [vmem:[%s345 + $0x100] sm:$0xff]
      %v437 = vld [vmem:[%s345 + $0x108] sm:$0xff]
      %v438 = vld [vmem:[%s345 + $0x110] sm:$0xff]
      %v439 = vld [vmem:[%s345 + $0x118] sm:$0xff]
      %v440 = vld [vmem:[%s345 + $0x120] sm:$0xff]
      %v441 = vld [vmem:[%s345 + $0x128] sm:$0xff]
      %v442 = vld [vmem:[%s345 + $0x130] sm:$0xff]
      %v443 = vld [vmem:[%s345 + $0x138] sm:$0xff]
      %v444 = vld [vmem:[%s345 + $0x140] sm:$0xff]
      %v445 = vld [vmem:[%s345 + $0x148] sm:$0xff]
      %v446 = vld [vmem:[%s345 + $0x150] sm:$0xff]
      %v447 = vld [vmem:[%s345 + $0x158] sm:$0xff]
      %v448 = vld [vmem:[%s345 + $0x160] sm:$0xff]
      %v449 = vld [vmem:[%s345 + $0x168] sm:$0xff]
      %v450 = vld [vmem:[%s345 + $0x170] sm:$0xff]
      %v451 = vld [vmem:[%s345 + $0x178] sm:$0xff]
      %v484 = vunpack.c.l.b16 %v372
      %v485 = vunpack.c.h.b16 %v372
      %v486 = vunpack.c.l.b16 %v373
      %v487 = vunpack.c.l.b16 %v374
      %v488 = vunpack.c.h.b16 %v374
      %v489 = vunpack.c.l.b16 %v375
      %v490 = vunpack.c.l.b16 %v376
      %v491 = vunpack.c.h.b16 %v376
      %v492 = vunpack.c.l.b16 %v377
      %v493 = vunpack.c.l.b16 %v378
      %v494 = vunpack.c.h.b16 %v378
      %v495 = vunpack.c.l.b16 %v379
      %v496 = vunpack.c.l.b16 %v380
      %v497 = vunpack.c.h.b16 %v380
      %v498 = vunpack.c.l.b16 %v381
      %v499 = vunpack.c.l.b16 %v382
      %v500 = vunpack.c.h.b16 %v382
      %v501 = vunpack.c.l.b16 %v383
      %v502 = vunpack.c.l.b16 %v384
      %v503 = vunpack.c.h.b16 %v384
      %v504 = vunpack.c.l.b16 %v385
      %v505 = vunpack.c.l.b16 %v386
      %v506 = vunpack.c.h.b16 %v386
      %v507 = vunpack.c.l.b16 %v387
      %v508 = vunpack.c.l.b16 %v388
      %v509 = vunpack.c.h.b16 %v388
      %v510 = vunpack.c.l.b16 %v389
      %v511 = vunpack.c.l.b16 %v390
      %v512 = vunpack.c.h.b16 %v390
      %v513 = vunpack.c.l.b16 %v391
      %v514 = vunpack.c.l.b16 %v392
      %v515 = vunpack.c.h.b16 %v392
      %v516 = vunpack.c.l.b16 %v393
      %v517 = vunpack.c.l.b16 %v394
      %v518 = vunpack.c.h.b16 %v394
      %v519 = vunpack.c.l.b16 %v395
      %v520 = vunpack.c.l.b16 %v396
      %v521 = vunpack.c.h.b16 %v396
      %v522 = vunpack.c.l.b16 %v397
      %v523 = vunpack.c.l.b16 %v398
      %v524 = vunpack.c.h.b16 %v398
      %v525 = vunpack.c.l.b16 %v399
      %v526 = vunpack.c.l.b16 %v400
      %v527 = vunpack.c.h.b16 %v400
      %v528 = vunpack.c.l.b16 %v401
      %v529 = vunpack.c.l.b16 %v402
      %v530 = vunpack.c.h.b16 %v402
      %v531 = vunpack.c.l.b16 %v403
      %v532 = vpack.c.b16 %v487, %v484
      %v533 = vpack.c.b16 %v488, %v485
      %v534 = vpack.c.b16 %v489, %v486
      %v535 = vpack.c.b16 %v493, %v490
      %v536 = vpack.c.b16 %v494, %v491
      %v537 = vpack.c.b16 %v495, %v492
      %v538 = vpack.c.b16 %v499, %v496
      %v539 = vpack.c.b16 %v500, %v497
      %v540 = vpack.c.b16 %v501, %v498
      %v541 = vpack.c.b16 %v505, %v502
      %v542 = vpack.c.b16 %v506, %v503
      %v543 = vpack.c.b16 %v507, %v504
      %v544 = vpack.c.b16 %v511, %v508
      %v545 = vpack.c.b16 %v512, %v509
      %v546 = vpack.c.b16 %v513, %v510
      %v547 = vpack.c.b16 %v517, %v514
      %v548 = vpack.c.b16 %v518, %v515
      %v549 = vpack.c.b16 %v519, %v516
      %v550 = vpack.c.b16 %v523, %v520
      %v551 = vpack.c.b16 %v524, %v521
      %v552 = vpack.c.b16 %v525, %v522
      %v553 = vpack.c.b16 %v529, %v526
      %v554 = vpack.c.b16 %v530, %v527
      %v555 = vpack.c.b16 %v531, %v528
      %v628 = vunpack.c.l.b16 %v404
      %v629 = vunpack.c.h.b16 %v404
      %v630 = vunpack.c.l.b16 %v405
      %v631 = vunpack.c.h.b16 %v405
      %v632 = vunpack.c.l.b16 %v406
      %v633 = vunpack.c.h.b16 %v406
      %v634 = vunpack.c.l.b16 %v407
      %v635 = vunpack.c.h.b16 %v407
      %v636 = vunpack.c.l.b16 %v408
      %v637 = vunpack.c.h.b16 %v408
      %v638 = vunpack.c.l.b16 %v409
      %v639 = vunpack.c.h.b16 %v409
      %v640 = vunpack.c.l.b16 %v410
      %v641 = vunpack.c.h.b16 %v410
      %v642 = vunpack.c.l.b16 %v411
      %v643 = vunpack.c.h.b16 %v411
      %v644 = vunpack.c.l.b16 %v412
      %v645 = vunpack.c.h.b16 %v412
      %v646 = vunpack.c.l.b16 %v413
      %v647 = vunpack.c.h.b16 %v413
      %v648 = vunpack.c.l.b16 %v414
      %v649 = vunpack.c.h.b16 %v414
      %v650 = vunpack.c.l.b16 %v415
      %v651 = vunpack.c.h.b16 %v415
      %v652 = vunpack.c.l.b16 %v416
      %v653 = vunpack.c.h.b16 %v416
      %v654 = vunpack.c.l.b16 %v417
      %v655 = vunpack.c.h.b16 %v417
      %v656 = vunpack.c.l.b16 %v418
      %v657 = vunpack.c.h.b16 %v418
      %v658 = vunpack.c.l.b16 %v419
      %v659 = vunpack.c.h.b16 %v419
      %v660 = vunpack.c.l.b16 %v420
      %v661 = vunpack.c.h.b16 %v420
      %v662 = vunpack.c.l.b16 %v421
      %v663 = vunpack.c.h.b16 %v421
      %v664 = vunpack.c.l.b16 %v422
      %v665 = vunpack.c.h.b16 %v422
      %v666 = vunpack.c.l.b16 %v423
      %v667 = vunpack.c.h.b16 %v423
      %v668 = vunpack.c.l.b16 %v424
      %v669 = vunpack.c.h.b16 %v424
      %v670 = vunpack.c.l.b16 %v425
      %v671 = vunpack.c.h.b16 %v425
      %v672 = vunpack.c.l.b16 %v426
      %v673 = vunpack.c.h.b16 %v426
      %v674 = vunpack.c.l.b16 %v427
      %v675 = vunpack.c.h.b16 %v427
      %v676 = vunpack.c.l.b16 %v428
      %v677 = vunpack.c.h.b16 %v428
      %v678 = vunpack.c.l.b16 %v429
      %v679 = vunpack.c.h.b16 %v429
      %v680 = vunpack.c.l.b16 %v430
      %v681 = vunpack.c.h.b16 %v430
      %v682 = vunpack.c.l.b16 %v431
      %v683 = vunpack.c.h.b16 %v431
      %v684 = vunpack.c.l.b16 %v432
      %v685 = vunpack.c.h.b16 %v432
      %v686 = vunpack.c.l.b16 %v433
      %v687 = vunpack.c.h.b16 %v433
      %v688 = vunpack.c.l.b16 %v434
      %v689 = vunpack.c.h.b16 %v434
      %v690 = vunpack.c.l.b16 %v435
      %v691 = vunpack.c.h.b16 %v435
      %v692 = vunpack.c.l.b16 %v436
      %v693 = vunpack.c.h.b16 %v436
      %v694 = vunpack.c.l.b16 %v437
      %v695 = vunpack.c.h.b16 %v437
      %v696 = vunpack.c.l.b16 %v438
      %v697 = vunpack.c.h.b16 %v438
      %v698 = vunpack.c.l.b16 %v439
      %v699 = vunpack.c.h.b16 %v439
      %v700 = vunpack.c.l.b16 %v440
      %v701 = vunpack.c.h.b16 %v440
      %v702 = vunpack.c.l.b16 %v441
      %v703 = vunpack.c.h.b16 %v441
      %v704 = vunpack.c.l.b16 %v442
      %v705 = vunpack.c.h.b16 %v442
      %v706 = vunpack.c.l.b16 %v443
      %v707 = vunpack.c.h.b16 %v443
      %v708 = vunpack.c.l.b16 %v444
      %v709 = vunpack.c.h.b16 %v444
      %v710 = vunpack.c.l.b16 %v445
      %v711 = vunpack.c.h.b16 %v445
      %v712 = vunpack.c.l.b16 %v446
      %v713 = vunpack.c.h.b16 %v446
      %v714 = vunpack.c.l.b16 %v447
      %v715 = vunpack.c.h.b16 %v447
      %v716 = vunpack.c.l.b16 %v448
      %v717 = vunpack.c.h.b16 %v448
      %v718 = vunpack.c.l.b16 %v449
      %v719 = vunpack.c.h.b16 %v449
      %v720 = vunpack.c.l.b16 %v450
      %v721 = vunpack.c.h.b16 %v450
      %v722 = vunpack.c.l.b16 %v451
      %v723 = vunpack.c.h.b16 %v451
      %v724 = vpack.c.b16 %v630, %v628
      %v725 = vpack.c.b16 %v631, %v629
      %v726 = vpack.c.b16 %v634, %v632
      %v727 = vpack.c.b16 %v635, %v633
      %v728 = vpack.c.b16 %v638, %v636
      %v729 = vpack.c.b16 %v639, %v637
      %v730 = vpack.c.b16 %v642, %v640
      %v731 = vpack.c.b16 %v643, %v641
      %v732 = vpack.c.b16 %v646, %v644
      %v733 = vpack.c.b16 %v647, %v645
      %v734 = vpack.c.b16 %v650, %v648
      %v735 = vpack.c.b16 %v651, %v649
      %v736 = vpack.c.b16 %v654, %v652
      %v737 = vpack.c.b16 %v655, %v653
      %v738 = vpack.c.b16 %v658, %v656
      %v739 = vpack.c.b16 %v659, %v657
      %v740 = vpack.c.b16 %v662, %v660
      %v741 = vpack.c.b16 %v663, %v661
      %v742 = vpack.c.b16 %v666, %v664
      %v743 = vpack.c.b16 %v667, %v665
      %v744 = vpack.c.b16 %v670, %v668
      %v745 = vpack.c.b16 %v671, %v669
      %v746 = vpack.c.b16 %v674, %v672
      %v747 = vpack.c.b16 %v675, %v673
      %v748 = vpack.c.b16 %v678, %v676
      %v749 = vpack.c.b16 %v679, %v677
      %v750 = vpack.c.b16 %v682, %v680
      %v751 = vpack.c.b16 %v683, %v681
      %v752 = vpack.c.b16 %v686, %v684
      %v753 = vpack.c.b16 %v687, %v685
      %v754 = vpack.c.b16 %v690, %v688
      %v755 = vpack.c.b16 %v691, %v689
      %v756 = vpack.c.b16 %v694, %v692
      %v757 = vpack.c.b16 %v695, %v693
      %v758 = vpack.c.b16 %v698, %v696
      %v759 = vpack.c.b16 %v699, %v697
      %v760 = vpack.c.b16 %v702, %v700
      %v761 = vpack.c.b16 %v703, %v701
      %v762 = vpack.c.b16 %v706, %v704
      %v763 = vpack.c.b16 %v707, %v705
      %v764 = vpack.c.b16 %v710, %v708
      %v765 = vpack.c.b16 %v711, %v709
      %v766 = vpack.c.b16 %v714, %v712
      %v767 = vpack.c.b16 %v715, %v713
      %v768 = vpack.c.b16 %v718, %v716
      %v769 = vpack.c.b16 %v719, %v717
      %v770 = vpack.c.b16 %v722, %v720
      %v771 = vpack.c.b16 %v723, %v721
      %820 = vmatprep.subr.bf16.mxu0 %v725
      %821 = vmatpush1.bf16.msra.mxu0 %v724
      %822 = vmatprep.subr.bf16.mxu0 %v727
      %823 = vmatpush1.bf16.msra.mxu0 %v726
      %824 = vmatprep.subr.bf16.mxu0 %v729
      %825 = vmatpush1.bf16.msra.mxu0 %v728
      %826 = vmatprep.subr.bf16.mxu0 %v731
      %827 = vmatpush1.bf16.msra.mxu0 %v730
      %828 = vmatprep.subr.bf16.mxu0 %v733
      %829 = vmatpush1.bf16.msra.mxu0 %v732
      %830 = vmatprep.subr.bf16.mxu0 %v735
      %831 = vmatpush1.bf16.msra.mxu0 %v734
      %832 = vmatprep.subr.bf16.mxu0 %v737
      %833 = vmatpush1.bf16.msra.mxu0 %v736
      %834 = vmatprep.subr.bf16.mxu0 %v739
      %835 = vmatpush1.bf16.msra.mxu0 %v738
      %836 = vmatprep.subr.bf16.mxu0 %v741
      %837 = vmatpush1.bf16.msra.mxu0 %v740
      %838 = vmatprep.subr.bf16.mxu0 %v743
      %839 = vmatpush1.bf16.msra.mxu0 %v742
      %840 = vmatprep.subr.bf16.mxu0 %v745
      %841 = vmatpush1.bf16.msra.mxu0 %v744
      %842 = vmatprep.subr.bf16.mxu0 %v747
      %843 = vmatpush1.bf16.msra.mxu0 %v746
      %844 = vmatprep.subr.bf16.mxu0 %v749
      %845 = vmatpush1.bf16.msra.mxu0 %v748
      %846 = vmatprep.subr.bf16.mxu0 %v751
      %847 = vmatpush1.bf16.msra.mxu0 %v750
      %848 = vmatprep.subr.bf16.mxu0 %v753
      %849 = vmatpush1.bf16.msra.mxu0 %v752
      %850 = vmatprep.subr.bf16.mxu0 %v755
      %851 = vmatpush1.bf16.msra.mxu0 %v754
      %852 = vmatprep.mubr.bf16.mxu0 %v533
      %853 = vmatmul.mubr.bf16.gmra.mrb[0].mxu0 %v532
      %v854 = vpop.f32.mrb[0].mxu0
      %v855 = vadd.f32 0.0, %v854
      %v856 = vpop.f32.mrb[0].mxu0
      %v857 = vadd.f32 0.0, %v856
      %v858 = vpop.f32.mrb[0].mxu0
      %v859 = vadd.f32 0.0, %v858
      %v860 = vpop.f32.mrb[0].mxu0
      %v861 = vadd.f32 0.0, %v860
      %862 = vmatprep.mubr.bf16.mxu0 %v536
      %863 = vmatmul.mubr.bf16.gmra.mrb[0].mxu0 %v535
      %v864 = vpop.f32.mrb[0].mxu0
      %v865 = vadd.f32 0.0, %v864
      %v866 = vpop.f32.mrb[0].mxu0
      %v867 = vadd.f32 0.0, %v866
      %v868 = vpop.f32.mrb[0].mxu0
      %v869 = vadd.f32 0.0, %v868
      %v870 = vpop.f32.mrb[0].mxu0
      %v871 = vadd.f32 0.0, %v870
      %872 = vmatprep.mubr.bf16.mxu0 %v539
      %873 = vmatmul.mubr.bf16.gmra.mrb[0].mxu0 %v538
      %v874 = vpop.f32.mrb[0].mxu0
      %v875 = vadd.f32 0.0, %v874
      %v876 = vpop.f32.mrb[0].mxu0
      %v877 = vadd.f32 0.0, %v876
      %v878 = vpop.f32.mrb[0].mxu0
      %v879 = vadd.f32 0.0, %v878
      %v880 = vpop.f32.mrb[0].mxu0
      %v881 = vadd.f32 0.0, %v880
      %882 = vmatprep.mubr.bf16.mxu0 %v542
      %883 = vmatmul.mubr.bf16.gmra.mrb[0].mxu0 %v541
      %v884 = vpop.f32.mrb[0].mxu0
      %v885 = vadd.f32 0.0, %v884
      %v886 = vpop.f32.mrb[0].mxu0
      %v887 = vadd.f32 0.0, %v886
      %v888 = vpop.f32.mrb[0].mxu0
      %v889 = vadd.f32 0.0, %v888
      %v890 = vpop.f32.mrb[0].mxu0
      %v891 = vadd.f32 0.0, %v890
      %892 = vmatprep.mubr.bf16.mxu0 %v545
      %893 = vmatmul.mubr.bf16.gmra.mrb[0].mxu0 %v544
      %v894 = vpop.f32.mrb[0].mxu0
      %v895 = vadd.f32 0.0, %v894
      %v896 = vpop.f32.mrb[0].mxu0
      %v897 = vadd.f32 0.0, %v896
      %v898 = vpop.f32.mrb[0].mxu0
      %v899 = vadd.f32 0.0, %v898
      %v900 = vpop.f32.mrb[0].mxu0
      %v901 = vadd.f32 0.0, %v900
      %902 = vmatprep.mubr.bf16.mxu0 %v548
      %903 = vmatmul.mubr.bf16.gmra.mrb[0].mxu0 %v547
      %v904 = vpop.f32.mrb[0].mxu0
      %v905 = vadd.f32 0.0, %v904
      %v906 = vpop.f32.mrb[0].mxu0
      %v907 = vadd.f32 0.0, %v906
      %v908 = vpop.f32.mrb[0].mxu0
      %v909 = vadd.f32 0.0, %v908
      %v910 = vpop.f32.mrb[0].mxu0
      %v911 = vadd.f32 0.0, %v910
      %912 = vmatprep.mubr.bf16.mxu0 %v551
      %913 = vmatmul.mubr.bf16.gmra.mrb[0].mxu0 %v550
      %v914 = vpop.f32.mrb[0].mxu0
      %v915 = vadd.f32 0.0, %v914
      %v916 = vpop.f32.mrb[0].mxu0
      %v917 = vadd.f32 0.0, %v916
      %v918 = vpop.f32.mrb[0].mxu0
      %v919 = vadd.f32 0.0, %v918
      %v920 = vpop.f32.mrb[0].mxu0
      %v921 = vadd.f32 0.0, %v920
      %922 = vmatprep.mubr.bf16.mxu0 %v554
      %923 = vmatmul.mubr.bf16.gmra.mrb[0].mxu0 %v553
      %v924 = vpop.f32.mrb[0].mxu0
      %v925 = vadd.f32 0.0, %v924
      %v926 = vpop.f32.mrb[0].mxu0
      %v927 = vadd.f32 0.0, %v926
      %v928 = vpop.f32.mrb[0].mxu0
      %v929 = vadd.f32 0.0, %v928
      %v930 = vpop.f32.mrb[0].mxu0
      %v931 = vadd.f32 0.0, %v930
      %932 = vdwg.mxu0
      %933 = vmatprep.subr.bf16.mxu0 %v757
      %934 = vmatpush1.bf16.msra.mxu0 %v756
      %935 = vmatprep.subr.bf16.mxu0 %v759
      %936 = vmatpush1.bf16.msra.mxu0 %v758
      %937 = vmatprep.subr.bf16.mxu0 %v761
      %938 = vmatpush1.bf16.msra.mxu0 %v760
      %939 = vmatprep.subr.bf16.mxu0 %v763
      %940 = vmatpush1.bf16.msra.mxu0 %v762
      %941 = vmatprep.subr.bf16.mxu0 %v765
      %942 = vmatpush1.bf16.msra.mxu0 %v764
      %943 = vmatprep.subr.bf16.mxu0 %v767
      %944 = vmatpush1.bf16.msra.mxu0 %v766
      %945 = vmatprep.subr.bf16.mxu0 %v769
      %946 = vmatpush1.bf16.msra.mxu0 %v768
      %947 = vmatprep.subr.bf16.mxu0 %v771
      %948 = vmatpush1.bf16.msra.mxu0 %v770
      %949 = vmatprep.subr.bf16.mxu0 0
      %950 = vmatpush1.bf16.msra.mxu0 0
      %951 = vmatprep.subr.bf16.mxu0 0
      %952 = vmatpush1.bf16.msra.mxu0 0
      %953 = vmatprep.subr.bf16.mxu0 0
      %954 = vmatpush1.bf16.msra.mxu0 0
      %955 = vmatprep.subr.bf16.mxu0 0
      %956 = vmatpush1.bf16.msra.mxu0 0
      %957 = vmatprep.subr.bf16.mxu0 0
      %958 = vmatpush1.bf16.msra.mxu0 0
      %959 = vmatprep.subr.bf16.mxu0 0
      %960 = vmatpush1.bf16.msra.mxu0 0
      %961 = vmatprep.subr.bf16.mxu0 0
      %962 = vmatpush1.bf16.msra.mxu0 0
      %963 = vmatprep.subr.bf16.mxu0 0
      %964 = vmatpush1.bf16.msra.mxu0 0
      %965 = vmatprep.mubr.bf16.mxu0 0
      %966 = vmatmul.mubr.bf16.gmra.mrb[0].mxu0 %v534
      %v967 = vpop.f32.mrb[0].mxu0
      %v968 = vadd.f32 %v855, %v967
      %v969 = vpop.f32.mrb[0].mxu0
      %v970 = vadd.f32 %v857, %v969
      %v971 = vpop.f32.mrb[0].mxu0
      %v972 = vadd.f32 %v859, %v971
      %v973 = vpop.f32.mrb[0].mxu0
      %v974 = vadd.f32 %v861, %v973
      %975 = vmatprep.mubr.bf16.mxu0 0
      %976 = vmatmul.mubr.bf16.gmra.mrb[0].mxu0 %v537
      %v977 = vpop.f32.mrb[0].mxu0
      %v978 = vadd.f32 %v865, %v977
      %v979 = vpop.f32.mrb[0].mxu0
      %v980 = vadd.f32 %v867, %v979
      %v981 = vpop.f32.mrb[0].mxu0
      %v982 = vadd.f32 %v869, %v981
      %v983 = vpop.f32.mrb[0].mxu0
      %v984 = vadd.f32 %v871, %v983
      %985 = vmatprep.mubr.bf16.mxu0 0
      %986 = vmatmul.mubr.bf16.gmra.mrb[0].mxu0 %v540
      %v987 = vpop.f32.mrb[0].mxu0
      %v988 = vadd.f32 %v875, %v987
      %v989 = vpop.f32.mrb[0].mxu0
      %v990 = vadd.f32 %v877, %v989
      %v991 = vpop.f32.mrb[0].mxu0
      %v992 = vadd.f32 %v879, %v991
      %v993 = vpop.f32.mrb[0].mxu0
      %v994 = vadd.f32 %v881, %v993
      %995 = vmatprep.mubr.bf16.mxu0 0
      %996 = vmatmul.mubr.bf16.gmra.mrb[0].mxu0 %v543
      %v997 = vpop.f32.mrb[0].mxu0
      %v998 = vadd.f32 %v885, %v997
      %v999 = vpop.f32.mrb[0].mxu0
      %v1000 = vadd.f32 %v887, %v999
      %v1001 = vpop.f32.mrb[0].mxu0
      %v1002 = vadd.f32 %v889, %v1001
      %v1003 = vpop.f32.mrb[0].mxu0
      %v1004 = vadd.f32 %v891, %v1003
      %1005 = vmatprep.mubr.bf16.mxu0 0
      %1006 = vmatmul.mubr.bf16.gmra.mrb[0].mxu0 %v546
      %v1007 = vpop.f32.mrb[0].mxu0
      %v1008 = vadd.f32 %v895, %v1007
      %v1009 = vpop.f32.mrb[0].mxu0
      %v1010 = vadd.f32 %v897, %v1009
      %v1011 = vpop.f32.mrb[0].mxu0
      %v1012 = vadd.f32 %v899, %v1011
      %v1013 = vpop.f32.mrb[0].mxu0
      %v1014 = vadd.f32 %v901, %v1013
      %1015 = vmatprep.mubr.bf16.mxu0 0
      %1016 = vmatmul.mubr.bf16.gmra.mrb[0].mxu0 %v549
      %v1017 = vpop.f32.mrb[0].mxu0
      %v1018 = vadd.f32 %v905, %v1017
      %v1019 = vpop.f32.mrb[0].mxu0
      %v1020 = vadd.f32 %v907, %v1019
      %v1021 = vpop.f32.mrb[0].mxu0
      %v1022 = vadd.f32 %v909, %v1021
      %v1023 = vpop.f32.mrb[0].mxu0
      %v1024 = vadd.f32 %v911, %v1023
      %1025 = vmatprep.mubr.bf16.mxu0 0
      %1026 = vmatmul.mubr.bf16.gmra.mrb[0].mxu0 %v552
      %v1027 = vpop.f32.mrb[0].mxu0
      %v1028 = vadd.f32 %v915, %v1027
      %v1029 = vpop.f32.mrb[0].mxu0
      %v1030 = vadd.f32 %v917, %v1029
      %v1031 = vpop.f32.mrb[0].mxu0
      %v1032 = vadd.f32 %v919, %v1031
      %v1033 = vpop.f32.mrb[0].mxu0
      %v1034 = vadd.f32 %v921, %v1033
      %1035 = vmatprep.mubr.bf16.mxu0 0
      %1036 = vmatmul.mubr.bf16.gmra.mrb[0].mxu0 %v555
      %v1037 = vpop.f32.mrb[0].mxu0
      %v1038 = vadd.f32 %v925, %v1037
      %v1039 = vpop.f32.mrb[0].mxu0
      %v1040 = vadd.f32 %v927, %v1039
      %v1041 = vpop.f32.mrb[0].mxu0
      %v1042 = vadd.f32 %v929, %v1041
      %v1043 = vpop.f32.mrb[0].mxu0
      %v1044 = vadd.f32 %v931, %v1043
      %1045 = vdwg.mxu0
      %v1046 = vadd.f32 %v968, %v970
      %1047 = vadd.xlane.f32.xlu0 %v1046
      %v1048 = vpop.xlane.xlu0 %1047
      %v1049 = vadd.f32 %v972, %v974
      %1050 = vadd.xlane.f32.xlu0 %v1049
      %v1051 = vpop.xlane.xlu0 %1050
      %v1052 = vadd.f32 %v978, %v980
      %1053 = vadd.xlane.f32.xlu0 %v1052
      %v1054 = vpop.xlane.xlu0 %1053
      %v1055 = vadd.f32 %v982, %v984
      %1056 = vadd.xlane.f32.xlu0 %v1055
      %v1057 = vpop.xlane.xlu0 %1056
      %v1058 = vadd.f32 %v988, %v990
      %1059 = vadd.xlane.f32.xlu0 %v1058
      %v1060 = vpop.xlane.xlu0 %1059
      %v1061 = vadd.f32 %v992, %v994
      %1062 = vadd.xlane.f32.xlu0 %v1061
      %v1063 = vpop.xlane.xlu0 %1062
      %v1064 = vadd.f32 %v998, %v1000
      %1065 = vadd.xlane.f32.xlu0 %v1064
      %v1066 = vpop.xlane.xlu0 %1065
      %v1067 = vadd.f32 %v1002, %v1004
      %1068 = vadd.xlane.f32.xlu0 %v1067
      %v1069 = vpop.xlane.xlu0 %1068
      %v1070 = vadd.f32 %v1008, %v1010
      %1071 = vadd.xlane.f32.xlu0 %v1070
      %v1072 = vpop.xlane.xlu0 %1071
      %v1073 = vadd.f32 %v1012, %v1014
      %1074 = vadd.xlane.f32.xlu0 %v1073
      %v1075 = vpop.xlane.xlu0 %1074
      %v1076 = vadd.f32 %v1018, %v1020
      %1077 = vadd.xlane.f32.xlu0 %v1076
      %v1078 = vpop.xlane.xlu0 %1077
      %v1079 = vadd.f32 %v1022, %v1024
      %1080 = vadd.xlane.f32.xlu0 %v1079
      %v1081 = vpop.xlane.xlu0 %1080
      %v1082 = vadd.f32 %v1028, %v1030
      %1083 = vadd.xlane.f32.xlu0 %v1082
      %v1084 = vpop.xlane.xlu0 %1083
      %v1085 = vadd.f32 %v1032, %v1034
      %1086 = vadd.xlane.f32.xlu0 %v1085
      %v1087 = vpop.xlane.xlu0 %1086
      %v1088 = vadd.f32 %v1038, %v1040
      %1089 = vadd.xlane.f32.xlu0 %v1088
      %v1090 = vpop.xlane.xlu0 %1089
      %v1091 = vadd.f32 %v1042, %v1044
      %1092 = vadd.xlane.f32.xlu0 %v1091
      %v1093 = vpop.xlane.xlu0 %1092
      %v1094 = vrcp.pop 256.0
      %v1095 = vmul.f32 %v1048, %v1094
      %v1096 = vmul.f32 %v1051, %v1094
      %v1097 = vmul.f32 %v1054, %v1094
      %v1098 = vmul.f32 %v1057, %v1094
      %v1099 = vmul.f32 %v1060, %v1094
      %v1100 = vmul.f32 %v1063, %v1094
      %v1101 = vmul.f32 %v1066, %v1094
      %v1102 = vmul.f32 %v1069, %v1094
      %v1103 = vmul.f32 %v1072, %v1094
      %v1104 = vmul.f32 %v1075, %v1094
      %v1105 = vmul.f32 %v1078, %v1094
      %v1106 = vmul.f32 %v1081, %v1094
      %v1107 = vmul.f32 %v1084, %v1094
      %v1108 = vmul.f32 %v1087, %v1094
      %v1109 = vmul.f32 %v1090, %v1094
      %v1110 = vmul.f32 %v1093, %v1094
      %v1111 = vsub.f32 %v968, %v1095
      %v1112 = vsub.f32 %v970, %v1095
      %v1113 = vsub.f32 %v972, %v1096
      %v1114 = vsub.f32 %v974, %v1096
      %v1115 = vsub.f32 %v978, %v1097
      %v1116 = vsub.f32 %v980, %v1097
      %v1117 = vsub.f32 %v982, %v1098
      %v1118 = vsub.f32 %v984, %v1098
      %v1119 = vsub.f32 %v988, %v1099
      %v1120 = vsub.f32 %v990, %v1099
      %v1121 = vsub.f32 %v992, %v1100
      %v1122 = vsub.f32 %v994, %v1100
      %v1123 = vsub.f32 %v998, %v1101
      %v1124 = vsub.f32 %v1000, %v1101
      %v1125 = vsub.f32 %v1002, %v1102
      %v1126 = vsub.f32 %v1004, %v1102
      %v1127 = vsub.f32 %v1008, %v1103
      %v1128 = vsub.f32 %v1010, %v1103
      %v1129 = vsub.f32 %v1012, %v1104
      %v1130 = vsub.f32 %v1014, %v1104
      %v1131 = vsub.f32 %v1018, %v1105
      %v1132 = vsub.f32 %v1020, %v1105
      %v1133 = vsub.f32 %v1022, %v1106
      %v1134 = vsub.f32 %v1024, %v1106
      %v1135 = vsub.f32 %v1028, %v1107
      %v1136 = vsub.f32 %v1030, %v1107
      %v1137 = vsub.f32 %v1032, %v1108
      %v1138 = vsub.f32 %v1034, %v1108
      %v1139 = vsub.f32 %v1038, %v1109
      %v1140 = vsub.f32 %v1040, %v1109
      %v1141 = vsub.f32 %v1042, %v1110
      %v1142 = vsub.f32 %v1044, %v1110
      %v1143 = vmul.f32 %v1111, %v1111
      %v1144 = vmul.f32 %v1112, %v1112
      %v1145 = vmul.f32 %v1113, %v1113
      %v1146 = vmul.f32 %v1114, %v1114
      %v1147 = vmul.f32 %v1115, %v1115
      %v1148 = vmul.f32 %v1116, %v1116
      %v1149 = vmul.f32 %v1117, %v1117
      %v1150 = vmul.f32 %v1118, %v1118
      %v1151 = vmul.f32 %v1119, %v1119
      %v1152 = vmul.f32 %v1120, %v1120
      %v1153 = vmul.f32 %v1121, %v1121
      %v1154 = vmul.f32 %v1122, %v1122
      %v1155 = vmul.f32 %v1123, %v1123
      %v1156 = vmul.f32 %v1124, %v1124
      %v1157 = vmul.f32 %v1125, %v1125
      %v1158 = vmul.f32 %v1126, %v1126
      %v1159 = vmul.f32 %v1127, %v1127
      %v1160 = vmul.f32 %v1128, %v1128
      %v1161 = vmul.f32 %v1129, %v1129
      %v1162 = vmul.f32 %v1130, %v1130
      %v1163 = vmul.f32 %v1131, %v1131
      %v1164 = vmul.f32 %v1132, %v1132
      %v1165 = vmul.f32 %v1133, %v1133
      %v1166 = vmul.f32 %v1134, %v1134
      %v1167 = vmul.f32 %v1135, %v1135
      %v1168 = vmul.f32 %v1136, %v1136
      %v1169 = vmul.f32 %v1137, %v1137
      %v1170 = vmul.f32 %v1138, %v1138
      %v1171 = vmul.f32 %v1139, %v1139
      %v1172 = vmul.f32 %v1140, %v1140
      %v1173 = vmul.f32 %v1141, %v1141
      %v1174 = vmul.f32 %v1142, %v1142
      %v1175 = vadd.f32 %v1143, %v1144
      %1176 = vadd.xlane.f32.xlu0 %v1175
      %v1177 = vpop.xlane.xlu0 %1176
      %v1178 = vadd.f32 %v1145, %v1146
      %1179 = vadd.xlane.f32.xlu0 %v1178
      %v1180 = vpop.xlane.xlu0 %1179
      %v1181 = vadd.f32 %v1147, %v1148
      %1182 = vadd.xlane.f32.xlu0 %v1181
      %v1183 = vpop.xlane.xlu0 %1182
      %v1184 = vadd.f32 %v1149, %v1150
      %1185 = vadd.xlane.f32.xlu0 %v1184
      %v1186 = vpop.xlane.xlu0 %1185
      %v1187 = vadd.f32 %v1151, %v1152
      %1188 = vadd.xlane.f32.xlu0 %v1187
      %v1189 = vpop.xlane.xlu0 %1188
      %v1190 = vadd.f32 %v1153, %v1154
      %1191 = vadd.xlane.f32.xlu0 %v1190
      %v1192 = vpop.xlane.xlu0 %1191
      %v1193 = vadd.f32 %v1155, %v1156
      %1194 = vadd.xlane.f32.xlu0 %v1193
      %v1195 = vpop.xlane.xlu0 %1194
      %v1196 = vadd.f32 %v1157, %v1158
      %1197 = vadd.xlane.f32.xlu0 %v1196
      %v1198 = vpop.xlane.xlu0 %1197
      %v1199 = vadd.f32 %v1159, %v1160
      %1200 = vadd.xlane.f32.xlu0 %v1199
      %v1201 = vpop.xlane.xlu0 %1200
      %v1202 = vadd.f32 %v1161, %v1162
      %1203 = vadd.xlane.f32.xlu0 %v1202
      %v1204 = vpop.xlane.xlu0 %1203
      %v1205 = vadd.f32 %v1163, %v1164
      %1206 = vadd.xlane.f32.xlu0 %v1205
      %v1207 = vpop.xlane.xlu0 %1206
      %v1208 = vadd.f32 %v1165, %v1166
      %1209 = vadd.xlane.f32.xlu0 %v1208
      %v1210 = vpop.xlane.xlu0 %1209
      %v1211 = vadd.f32 %v1167, %v1168
      %1212 = vadd.xlane.f32.xlu0 %v1211
      %v1213 = vpop.xlane.xlu0 %1212
      %v1214 = vadd.f32 %v1169, %v1170
      %1215 = vadd.xlane.f32.xlu0 %v1214
      %v1216 = vpop.xlane.xlu0 %1215
      %v1217 = vadd.f32 %v1171, %v1172
      %1218 = vadd.xlane.f32.xlu0 %v1217
      %v1219 = vpop.xlane.xlu0 %1218
      %v1220 = vadd.f32 %v1173, %v1174
      %1221 = vadd.xlane.f32.xlu0 %v1220
      %v1222 = vpop.xlane.xlu0 %1221
      %v1223 = vmul.f32 %v1177, %v1094
      %v1224 = vmul.f32 %v1180, %v1094
      %v1225 = vmul.f32 %v1183, %v1094
      %v1226 = vmul.f32 %v1186, %v1094
      %v1227 = vmul.f32 %v1189, %v1094
      %v1228 = vmul.f32 %v1192, %v1094
      %v1229 = vmul.f32 %v1195, %v1094
      %v1230 = vmul.f32 %v1198, %v1094
      %v1231 = vmul.f32 %v1201, %v1094
      %v1232 = vmul.f32 %v1204, %v1094
      %v1233 = vmul.f32 %v1207, %v1094
      %v1234 = vmul.f32 %v1210, %v1094
      %v1235 = vmul.f32 %v1213, %v1094
      %v1236 = vmul.f32 %v1216, %v1094
      %v1237 = vmul.f32 %v1219, %v1094
      %v1238 = vmul.f32 %v1222, %v1094
      %v1239 = vld [vmem:[%s5] sm:$0xff]
      %v1240 = vld [vmem:[%s5 + $0x8] sm:$0xff]
      %v1241 = vld [vmem:[%s5 + $0x10] sm:$0xff]
      %v1242 = vld [vmem:[%s5 + $0x18] sm:$0xff]
      %v1243 = vld [vmem:[%s5 + $0x20] sm:$0xff]
      %v1244 = vld [vmem:[%s5 + $0x28] sm:$0xff]
      %v1245 = vld [vmem:[%s5 + $0x30] sm:$0xff]
      %v1246 = vld [vmem:[%s5 + $0x38] sm:$0xff]
      %v1247 = vld [vmem:[%s5 + $0x40] sm:$0xff]
      %v1248 = vld [vmem:[%s5 + $0x48] sm:$0xff]
      %v1249 = vld [vmem:[%s5 + $0x50] sm:$0xff]
      %v1250 = vld [vmem:[%s5 + $0x58] sm:$0xff]
      %v1251 = vld [vmem:[%s5 + $0x60] sm:$0xff]
      %v1252 = vld [vmem:[%s5 + $0x68] sm:$0xff]
      %v1253 = vld [vmem:[%s5 + $0x70] sm:$0xff]
      %v1254 = vld [vmem:[%s5 + $0x78] sm:$0xff]
      %v1255 = vld [vmem:[%s5 + $0x80] sm:$0xff]
      %v1256 = vld [vmem:[%s5 + $0x88] sm:$0xff]
      %v1257 = vld [vmem:[%s5 + $0x90] sm:$0xff]
      %v1258 = vld [vmem:[%s5 + $0x98] sm:$0xff]
      %v1259 = vld [vmem:[%s5 + $0xa0] sm:$0xff]
      %v1260 = vld [vmem:[%s5 + $0xa8] sm:$0xff]
      %v1261 = vld [vmem:[%s5 + $0xb0] sm:$0xff]
      %v1262 = vld [vmem:[%s5 + $0xb8] sm:$0xff]
      %v1263 = vld [vmem:[%s5 + $0xc0] sm:$0xff]
      %v1264 = vld [vmem:[%s5 + $0xc8] sm:$0xff]
      %v1265 = vld [vmem:[%s5 + $0xd0] sm:$0xff]
      %v1266 = vld [vmem:[%s5 + $0xd8] sm:$0xff]
      %v1267 = vld [vmem:[%s5 + $0xe0] sm:$0xff]
      %v1268 = vld [vmem:[%s5 + $0xe8] sm:$0xff]
      %v1269 = vld [vmem:[%s5 + $0xf0] sm:$0xff]
      %v1270 = vld [vmem:[%s5 + $0xf8] sm:$0xff]
      %v1271 = vadd.f32 %v1223, 1e-05
      %v1272 = vadd.f32 %v1224, 1e-05
      %v1273 = vadd.f32 %v1225, 1e-05
      %v1274 = vadd.f32 %v1226, 1e-05
      %v1275 = vadd.f32 %v1227, 1e-05
      %v1276 = vadd.f32 %v1228, 1e-05
      %v1277 = vadd.f32 %v1229, 1e-05
      %v1278 = vadd.f32 %v1230, 1e-05
      %v1279 = vadd.f32 %v1231, 1e-05
      %v1280 = vadd.f32 %v1232, 1e-05
      %v1281 = vadd.f32 %v1233, 1e-05
      %v1282 = vadd.f32 %v1234, 1e-05
      %v1283 = vadd.f32 %v1235, 1e-05
      %v1284 = vadd.f32 %v1236, 1e-05
      %v1285 = vadd.f32 %v1237, 1e-05
      %v1286 = vadd.f32 %v1238, 1e-05
      %v1287 = vrsqrt.pop %v1271
      %v1288 = vrsqrt.pop %v1272
      %v1289 = vrsqrt.pop %v1273
      %v1290 = vrsqrt.pop %v1274
      %v1291 = vrsqrt.pop %v1275
      %v1292 = vrsqrt.pop %v1276
      %v1293 = vrsqrt.pop %v1277
      %v1294 = vrsqrt.pop %v1278
      %v1295 = vrsqrt.pop %v1279
      %v1296 = vrsqrt.pop %v1280
      %v1297 = vrsqrt.pop %v1281
      %v1298 = vrsqrt.pop %v1282
      %v1299 = vrsqrt.pop %v1283
      %v1300 = vrsqrt.pop %v1284
      %v1301 = vrsqrt.pop %v1285
      %v1302 = vrsqrt.pop %v1286
      %v1303 = vmul.f32 %v1287, %v1239
      %v1304 = vmul.f32 %v1288, %v1240
      %v1305 = vmul.f32 %v1289, %v1241
      %v1306 = vmul.f32 %v1290, %v1242
      %v1307 = vmul.f32 %v1291, %v1243
      %v1308 = vmul.f32 %v1292, %v1244
      %v1309 = vmul.f32 %v1293, %v1245
      %v1310 = vmul.f32 %v1294, %v1246
      %v1311 = vmul.f32 %v1295, %v1247
      %v1312 = vmul.f32 %v1296, %v1248
      %v1313 = vmul.f32 %v1297, %v1249
      %v1314 = vmul.f32 %v1298, %v1250
      %v1315 = vmul.f32 %v1299, %v1251
      %v1316 = vmul.f32 %v1300, %v1252
      %v1317 = vmul.f32 %v1301, %v1253
      %v1318 = vmul.f32 %v1302, %v1254
      %1320 = vset.pattern.permute.xlu0 0
      %1321 = vperm.xlu0 %1320, %v1303
      %v1322 = vpop.permute.xlu0 %1321
      %1325 = vset.pattern.permute.xlu0 0
      %1326 = vperm.xlu0 %1325, %v1304
      %v1327 = vpop.permute.xlu0 %1326
      %1330 = vset.pattern.permute.xlu0 0
      %1331 = vperm.xlu0 %1330, %v1305
      %v1332 = vpop.permute.xlu0 %1331
      %1335 = vset.pattern.permute.xlu0 0
      %1336 = vperm.xlu0 %1335, %v1306
      %v1337 = vpop.permute.xlu0 %1336
      %1340 = vset.pattern.permute.xlu0 0
      %1341 = vperm.xlu0 %1340, %v1307
      %v1342 = vpop.permute.xlu0 %1341
      %1345 = vset.pattern.permute.xlu0 0
      %1346 = vperm.xlu0 %1345, %v1308
      %v1347 = vpop.permute.xlu0 %1346
      %1350 = vset.pattern.permute.xlu0 0
      %1351 = vperm.xlu0 %1350, %v1309
      %v1352 = vpop.permute.xlu0 %1351
      %1355 = vset.pattern.permute.xlu0 0
      %1356 = vperm.xlu0 %1355, %v1310
      %v1357 = vpop.permute.xlu0 %1356
      %1360 = vset.pattern.permute.xlu0 0
      %1361 = vperm.xlu0 %1360, %v1311
      %v1362 = vpop.permute.xlu0 %1361
      %1365 = vset.pattern.permute.xlu0 0
      %1366 = vperm.xlu0 %1365, %v1312
      %v1367 = vpop.permute.xlu0 %1366
      %1370 = vset.pattern.permute.xlu0 0
      %1371 = vperm.xlu0 %1370, %v1313
      %v1372 = vpop.permute.xlu0 %1371
      %1375 = vset.pattern.permute.xlu0 0
      %1376 = vperm.xlu0 %1375, %v1314
      %v1377 = vpop.permute.xlu0 %1376
      %1380 = vset.pattern.permute.xlu0 0
      %1381 = vperm.xlu0 %1380, %v1315
      %v1382 = vpop.permute.xlu0 %1381
      %1385 = vset.pattern.permute.xlu0 0
      %1386 = vperm.xlu0 %1385, %v1316
      %v1387 = vpop.permute.xlu0 %1386
      %1390 = vset.pattern.permute.xlu0 0
      %1391 = vperm.xlu0 %1390, %v1317
      %v1392 = vpop.permute.xlu0 %1391
      %1395 = vset.pattern.permute.xlu0 0
      %1396 = vperm.xlu0 %1395, %v1318
      %v1397 = vpop.permute.xlu0 %1396
      %v1399 = vmul.f32 %v1111, %v1322
      %v1400 = vmul.f32 %v1112, %v1322
      %v1401 = vmul.f32 %v1113, %v1327
      %v1402 = vmul.f32 %v1114, %v1327
      %v1403 = vmul.f32 %v1115, %v1332
      %v1404 = vmul.f32 %v1116, %v1332
      %v1405 = vmul.f32 %v1117, %v1337
      %v1406 = vmul.f32 %v1118, %v1337
      %v1407 = vmul.f32 %v1119, %v1342
      %v1408 = vmul.f32 %v1120, %v1342
      %v1409 = vmul.f32 %v1121, %v1347
      %v1410 = vmul.f32 %v1122, %v1347
      %v1411 = vmul.f32 %v1123, %v1352
      %v1412 = vmul.f32 %v1124, %v1352
      %v1413 = vmul.f32 %v1125, %v1357
      %v1414 = vmul.f32 %v1126, %v1357
      %v1415 = vmul.f32 %v1127, %v1362
      %v1416 = vmul.f32 %v1128, %v1362
      %v1417 = vmul.f32 %v1129, %v1367
      %v1418 = vmul.f32 %v1130, %v1367
      %v1419 = vmul.f32 %v1131, %v1372
      %v1420 = vmul.f32 %v1132, %v1372
      %v1421 = vmul.f32 %v1133, %v1377
      %v1422 = vmul.f32 %v1134, %v1377
      %v1423 = vmul.f32 %v1135, %v1382
      %v1424 = vmul.f32 %v1136, %v1382
      %v1425 = vmul.f32 %v1137, %v1387
      %v1426 = vmul.f32 %v1138, %v1387
      %v1427 = vmul.f32 %v1139, %v1392
      %v1428 = vmul.f32 %v1140, %v1392
      %v1429 = vmul.f32 %v1141, %v1397
      %v1430 = vmul.f32 %v1142, %v1397
      %1432 = vset.pattern.permute.xlu0 0
      %1433 = vperm.xlu0 %1432, %v1255
      %v1434 = vpop.permute.xlu0 %1433
      %1437 = vset.pattern.permute.xlu0 0
      %1438 = vperm.xlu0 %1437, %v1256
      %v1439 = vpop.permute.xlu0 %1438
      %1442 = vset.pattern.permute.xlu0 0
      %1443 = vperm.xlu0 %1442, %v1257
      %v1444 = vpop.permute.xlu0 %1443
      %1447 = vset.pattern.permute.xlu0 0
      %1448 = vperm.xlu0 %1447, %v1258
      %v1449 = vpop.permute.xlu0 %1448
      %1452 = vset.pattern.permute.xlu0 0
      %1453 = vperm.xlu0 %1452, %v1259
      %v1454 = vpop.permute.xlu0 %1453
      %1457 = vset.pattern.permute.xlu0 0
      %1458 = vperm.xlu0 %1457, %v1260
      %v1459 = vpop.permute.xlu0 %1458
      %1462 = vset.pattern.permute.xlu0 0
      %1463 = vperm.xlu0 %1462, %v1261
      %v1464 = vpop.permute.xlu0 %1463
      %1467 = vset.pattern.permute.xlu0 0
      %1468 = vperm.xlu0 %1467, %v1262
      %v1469 = vpop.permute.xlu0 %1468
      %1472 = vset.pattern.permute.xlu0 0
      %1473 = vperm.xlu0 %1472, %v1263
      %v1474 = vpop.permute.xlu0 %1473
      %1477 = vset.pattern.permute.xlu0 0
      %1478 = vperm.xlu0 %1477, %v1264
      %v1479 = vpop.permute.xlu0 %1478
      %1482 = vset.pattern.permute.xlu0 0
      %1483 = vperm.xlu0 %1482, %v1265
      %v1484 = vpop.permute.xlu0 %1483
      %1487 = vset.pattern.permute.xlu0 0
      %1488 = vperm.xlu0 %1487, %v1266
      %v1489 = vpop.permute.xlu0 %1488
      %1492 = vset.pattern.permute.xlu0 0
      %1493 = vperm.xlu0 %1492, %v1267
      %v1494 = vpop.permute.xlu0 %1493
      %1497 = vset.pattern.permute.xlu0 0
      %1498 = vperm.xlu0 %1497, %v1268
      %v1499 = vpop.permute.xlu0 %1498
      %1502 = vset.pattern.permute.xlu0 0
      %1503 = vperm.xlu0 %1502, %v1269
      %v1504 = vpop.permute.xlu0 %1503
      %1507 = vset.pattern.permute.xlu0 0
      %1508 = vperm.xlu0 %1507, %v1270
      %v1509 = vpop.permute.xlu0 %1508
      %v1511 = vadd.f32 %v1399, %v1434
      %v1512 = vadd.f32 %v1400, %v1434
      %v1513 = vadd.f32 %v1401, %v1439
      %v1514 = vadd.f32 %v1402, %v1439
      %v1515 = vadd.f32 %v1403, %v1444
      %v1516 = vadd.f32 %v1404, %v1444
      %v1517 = vadd.f32 %v1405, %v1449
      %v1518 = vadd.f32 %v1406, %v1449
      %v1519 = vadd.f32 %v1407, %v1454
      %v1520 = vadd.f32 %v1408, %v1454
      %v1521 = vadd.f32 %v1409, %v1459
      %v1522 = vadd.f32 %v1410, %v1459
      %v1523 = vadd.f32 %v1411, %v1464
      %v1524 = vadd.f32 %v1412, %v1464
      %v1525 = vadd.f32 %v1413, %v1469
      %v1526 = vadd.f32 %v1414, %v1469
      %v1527 = vadd.f32 %v1415, %v1474
      %v1528 = vadd.f32 %v1416, %v1474
      %v1529 = vadd.f32 %v1417, %v1479
      %v1530 = vadd.f32 %v1418, %v1479
      %v1531 = vadd.f32 %v1419, %v1484
      %v1532 = vadd.f32 %v1420, %v1484
      %v1533 = vadd.f32 %v1421, %v1489
      %v1534 = vadd.f32 %v1422, %v1489
      %v1535 = vadd.f32 %v1423, %v1494
      %v1536 = vadd.f32 %v1424, %v1494
      %v1537 = vadd.f32 %v1425, %v1499
      %v1538 = vadd.f32 %v1426, %v1499
      %v1539 = vadd.f32 %v1427, %v1504
      %v1540 = vadd.f32 %v1428, %v1504
      %v1541 = vadd.f32 %v1429, %v1509
      %v1542 = vadd.f32 %v1430, %v1509
      %v1543 = vxor.u32 %v1511, 2147483648
      %v1544 = vxor.u32 %v1512, 2147483648
      %v1545 = vxor.u32 %v1513, 2147483648
      %v1546 = vxor.u32 %v1514, 2147483648
      %v1547 = vxor.u32 %v1515, 2147483648
      %v1548 = vxor.u32 %v1516, 2147483648
      %v1549 = vxor.u32 %v1517, 2147483648
      %v1550 = vxor.u32 %v1518, 2147483648
      %v1551 = vmul.f32 %v1543, 1.442695
      %v1552 = vpow.pop %v1551
      %v1553 = vmul.f32 %v1544, 1.442695
      %v1554 = vpow.pop %v1553
      %v1555 = vmul.f32 %v1545, 1.442695
      %v1556 = vpow.pop %v1555
      %v1557 = vmul.f32 %v1546, 1.442695
      %v1558 = vpow.pop %v1557
      %v1559 = vmul.f32 %v1547, 1.442695
      %v1560 = vpow.pop %v1559
      %v1561 = vmul.f32 %v1548, 1.442695
      %v1562 = vpow.pop %v1561
      %v1563 = vmul.f32 %v1549, 1.442695
      %v1564 = vpow.pop %v1563
      %v1565 = vmul.f32 %v1550, 1.442695
      %v1566 = vpow.pop %v1565
      %v1567 = vadd.f32 %v1552, 1.0
      %v1568 = vadd.f32 %v1554, 1.0
      %v1569 = vadd.f32 %v1556, 1.0
      %v1570 = vadd.f32 %v1558, 1.0
      %v1571 = vadd.f32 %v1560, 1.0
      %v1572 = vadd.f32 %v1562, 1.0
      %v1573 = vadd.f32 %v1564, 1.0
      %v1574 = vadd.f32 %v1566, 1.0
      %v1575 = vrcp.pop %v1567
      %v1576 = vmul.f32 1.0, %v1575
      %v1577 = vrcp.pop %v1568
      %v1578 = vmul.f32 1.0, %v1577
      %v1579 = vrcp.pop %v1569
      %v1580 = vmul.f32 1.0, %v1579
      %v1581 = vrcp.pop %v1570
      %v1582 = vmul.f32 1.0, %v1581
      %v1583 = vrcp.pop %v1571
      %v1584 = vmul.f32 1.0, %v1583
      %v1585 = vrcp.pop %v1572
      %v1586 = vmul.f32 1.0, %v1585
      %v1587 = vrcp.pop %v1573
      %v1588 = vmul.f32 1.0, %v1587
      %v1589 = vrcp.pop %v1574
      %v1590 = vmul.f32 1.0, %v1589
      %v1591 = vxor.u32 %v1519, 2147483648
      %v1592 = vxor.u32 %v1520, 2147483648
      %v1593 = vxor.u32 %v1521, 2147483648
      %v1594 = vxor.u32 %v1522, 2147483648
      %v1595 = vxor.u32 %v1523, 2147483648
      %v1596 = vxor.u32 %v1524, 2147483648
      %v1597 = vxor.u32 %v1525, 2147483648
      %v1598 = vxor.u32 %v1526, 2147483648
      %v1599 = vmul.f32 %v1591, 1.442695
      %v1600 = vpow.pop %v1599
      %v1601 = vmul.f32 %v1592, 1.442695
      %v1602 = vpow.pop %v1601
      %v1603 = vmul.f32 %v1593, 1.442695
      %v1604 = vpow.pop %v1603
      %v1605 = vmul.f32 %v1594, 1.442695
      %v1606 = vpow.pop %v1605
      %v1607 = vmul.f32 %v1595, 1.442695
      %v1608 = vpow.pop %v1607
      %v1609 = vmul.f32 %v1596, 1.442695
      %v1610 = vpow.pop %v1609
      %v1611 = vmul.f32 %v1597, 1.442695
      %v1612 = vpow.pop %v1611
      %v1613 = vmul.f32 %v1598, 1.442695
      %v1614 = vpow.pop %v1613
      %v1615 = vadd.f32 %v1600, 1.0
      %v1616 = vadd.f32 %v1602, 1.0
      %v1617 = vadd.f32 %v1604, 1.0
      %v1618 = vadd.f32 %v1606, 1.0
      %v1619 = vadd.f32 %v1608, 1.0
      %v1620 = vadd.f32 %v1610, 1.0
      %v1621 = vadd.f32 %v1612, 1.0
      %v1622 = vadd.f32 %v1614, 1.0
      %v1623 = vrcp.pop %v1615
      %v1624 = vmul.f32 1.0, %v1623
      %v1625 = vrcp.pop %v1616
      %v1626 = vmul.f32 1.0, %v1625
      %v1627 = vrcp.pop %v1617
      %v1628 = vmul.f32 1.0, %v1627
      %v1629 = vrcp.pop %v1618
      %v1630 = vmul.f32 1.0, %v1629
      %v1631 = vrcp.pop %v1619
      %v1632 = vmul.f32 1.0, %v1631
      %v1633 = vrcp.pop %v1620
      %v1634 = vmul.f32 1.0, %v1633
      %v1635 = vrcp.pop %v1621
      %v1636 = vmul.f32 1.0, %v1635
      %v1637 = vrcp.pop %v1622
      %v1638 = vmul.f32 1.0, %v1637
      %v1639 = vxor.u32 %v1527, 2147483648
      %v1640 = vxor.u32 %v1528, 2147483648
      %v1641 = vxor.u32 %v1529, 2147483648
      %v1642 = vxor.u32 %v1530, 2147483648
      %v1643 = vxor.u32 %v1531, 2147483648
      %v1644 = vxor.u32 %v1532, 2147483648
      %v1645 = vxor.u32 %v1533, 2147483648
      %v1646 = vxor.u32 %v1534, 2147483648
      %v1647 = vmul.f32 %v1639, 1.442695
      %v1648 = vpow.pop %v1647
      %v1649 = vmul.f32 %v1640, 1.442695
      %v1650 = vpow.pop %v1649
      %v1651 = vmul.f32 %v1641, 1.442695
      %v1652 = vpow.pop %v1651
      %v1653 = vmul.f32 %v1642, 1.442695
      %v1654 = vpow.pop %v1653
      %v1655 = vmul.f32 %v1643, 1.442695
      %v1656 = vpow.pop %v1655
      %v1657 = vmul.f32 %v1644, 1.442695
      %v1658 = vpow.pop %v1657
      %v1659 = vmul.f32 %v1645, 1.442695
      %v1660 = vpow.pop %v1659
      %v1661 = vmul.f32 %v1646, 1.442695
      %v1662 = vpow.pop %v1661
      %v1663 = vadd.f32 %v1648, 1.0
      %v1664 = vadd.f32 %v1650, 1.0
      %v1665 = vadd.f32 %v1652, 1.0
      %v1666 = vadd.f32 %v1654, 1.0
      %v1667 = vadd.f32 %v1656, 1.0
      %v1668 = vadd.f32 %v1658, 1.0
      %v1669 = vadd.f32 %v1660, 1.0
      %v1670 = vadd.f32 %v1662, 1.0
      %v1671 = vrcp.pop %v1663
      %v1672 = vmul.f32 1.0, %v1671
      %v1673 = vrcp.pop %v1664
      %v1674 = vmul.f32 1.0, %v1673
      %v1675 = vrcp.pop %v1665
      %v1676 = vmul.f32 1.0, %v1675
      %v1677 = vrcp.pop %v1666
      %v1678 = vmul.f32 1.0, %v1677
      %v1679 = vrcp.pop %v1667
      %v1680 = vmul.f32 1.0, %v1679
      %v1681 = vrcp.pop %v1668
      %v1682 = vmul.f32 1.0, %v1681
      %v1683 = vrcp.pop %v1669
      %v1684 = vmul.f32 1.0, %v1683
      %v1685 = vrcp.pop %v1670
      %v1686 = vmul.f32 1.0, %v1685
      %v1687 = vtanh.pop %v1535
      %v1688 = vtanh.pop %v1536
      %v1689 = vtanh.pop %v1537
      %v1690 = vtanh.pop %v1538
      %v1691 = vtanh.pop %v1539
      %v1692 = vtanh.pop %v1540
      %v1693 = vtanh.pop %v1541
      %v1694 = vtanh.pop %v1542
      %v1695 = vld [vmem:[%s350] sm:$0xff]
      %v1696 = vld [vmem:[%s350 + $0x8] sm:$0xff]
      %v1697 = vld [vmem:[%s350 + $0x10] sm:$0xff]
      %v1698 = vld [vmem:[%s350 + $0x18] sm:$0xff]
      %v1699 = vld [vmem:[%s350 + $0x20] sm:$0xff]
      %v1700 = vld [vmem:[%s350 + $0x28] sm:$0xff]
      %v1701 = vld [vmem:[%s350 + $0x30] sm:$0xff]
      %v1702 = vld [vmem:[%s350 + $0x38] sm:$0xff]
      %v1703 = vld [vmem:[%s355] sm:$0xff]
      %v1704 = vld [vmem:[%s355 + $0x8] sm:$0xff]
      %v1705 = vld [vmem:[%s355 + $0x10] sm:$0xff]
      %v1706 = vld [vmem:[%s355 + $0x18] sm:$0xff]
      %v1707 = vld [vmem:[%s355 + $0x20] sm:$0xff]
      %v1708 = vld [vmem:[%s355 + $0x28] sm:$0xff]
      %v1709 = vld [vmem:[%s355 + $0x30] sm:$0xff]
      %v1710 = vld [vmem:[%s355 + $0x38] sm:$0xff]
      %v1711 = vmul.f32 %v1624, %v1695
      %v1712 = vmul.f32 %v1626, %v1696
      %v1713 = vmul.f32 %v1628, %v1697
      %v1714 = vmul.f32 %v1630, %v1698
      %v1715 = vmul.f32 %v1632, %v1699
      %v1716 = vmul.f32 %v1634, %v1700
      %v1717 = vmul.f32 %v1636, %v1701
      %v1718 = vmul.f32 %v1638, %v1702
      %v1719 = vmul.f32 %v1576, %v1687
      %v1720 = vmul.f32 %v1578, %v1688
      %v1721 = vmul.f32 %v1580, %v1689
      %v1722 = vmul.f32 %v1582, %v1690
      %v1723 = vmul.f32 %v1584, %v1691
      %v1724 = vmul.f32 %v1586, %v1692
      %v1725 = vmul.f32 %v1588, %v1693
      %v1726 = vmul.f32 %v1590, %v1694
      %v1727 = vadd.f32 %v1711, %v1719
      %v1728 = vadd.f32 %v1712, %v1720
      %v1729 = vadd.f32 %v1713, %v1721
      %v1730 = vadd.f32 %v1714, %v1722
      %v1731 = vadd.f32 %v1715, %v1723
      %v1732 = vadd.f32 %v1716, %v1724
      %v1733 = vadd.f32 %v1717, %v1725
      %v1734 = vadd.f32 %v1718, %v1726
      %v1735 = vtanh.pop %v1727
      %v1736 = vtanh.pop %v1728
      %v1737 = vtanh.pop %v1729
      %v1738 = vtanh.pop %v1730
      %v1739 = vtanh.pop %v1731
      %v1740 = vtanh.pop %v1732
      %v1741 = vtanh.pop %v1733
      %v1742 = vtanh.pop %v1734
      %v1743 = vmul.f32 %v1672, %v1735
      %v1744 = vmul.f32 %v1674, %v1736
      %v1745 = vmul.f32 %v1676, %v1737
      %v1746 = vmul.f32 %v1678, %v1738
      %v1747 = vmul.f32 %v1680, %v1739
      %v1748 = vmul.f32 %v1682, %v1740
      %v1749 = vmul.f32 %v1684, %v1741
      %v1750 = vmul.f32 %v1686, %v1742
      %v1751 = vpack.c.bf16 %v1745, %v1743
      %v1752 = vpack.c.bf16 %v1746, %v1744
      %v1753 = vpack.c.bf16 %v1749, %v1747
      %v1754 = vpack.c.bf16 %v1750, %v1748
      %v1755 = vpack.c.bf16 %v1705, %v1703
      %v1756 = vpack.c.bf16 %v1706, %v1704
      %v1757 = vpack.c.bf16 %v1709, %v1707
      %v1758 = vpack.c.bf16 %v1710, %v1708
      %v1759 = vld [vmem:[%s4] sm:$0xf]
      %v1760 = vld [vmem:[%s4 + $0x4] sm:$0xf]
      %v1761 = vld [vmem:[%s4 + $0x8] sm:$0xf]
      %v1762 = vld [vmem:[%s4 + $0xc] sm:$0xf]
      %v1763 = vld [vmem:[%s4 + $0x10] sm:$0xf]
      %v1764 = vld [vmem:[%s4 + $0x14] sm:$0xf]
      %v1765 = vld [vmem:[%s4 + $0x18] sm:$0xf]
      %v1766 = vld [vmem:[%s4 + $0x1c] sm:$0xf]
      %v1767 = vld [vmem:[%s5 + $0x100] sm:$0xff]
      %v1768 = vld [vmem:[%s5 + $0x108] sm:$0xff]
      %v1769 = vld [vmem:[%s5 + $0x110] sm:$0xff]
      %v1770 = vld [vmem:[%s5 + $0x118] sm:$0xff]
      %v1771 = vld [vmem:[%s5 + $0x120] sm:$0xff]
      %v1772 = vld [vmem:[%s5 + $0x128] sm:$0xff]
      %v1773 = vld [vmem:[%s5 + $0x130] sm:$0xff]
      %v1774 = vld [vmem:[%s5 + $0x138] sm:$0xff]
      %1776 = vset.pattern.permute.xlu0 0
      %1777 = vperm.xlu0 %1776, %v1767
      %v1778 = vpop.permute.xlu0 %1777
      %1781 = vset.pattern.permute.xlu0 0
      %1782 = vperm.xlu0 %1781, %v1768
      %v1783 = vpop.permute.xlu0 %1782
      %1786 = vset.pattern.permute.xlu0 0
      %1787 = vperm.xlu0 %1786, %v1769
      %v1788 = vpop.permute.xlu0 %1787
      %1791 = vset.pattern.permute.xlu0 0
      %1792 = vperm.xlu0 %1791, %v1770
      %v1793 = vpop.permute.xlu0 %1792
      %1796 = vset.pattern.permute.xlu0 0
      %1797 = vperm.xlu0 %1796, %v1771
      %v1798 = vpop.permute.xlu0 %1797
      %1801 = vset.pattern.permute.xlu0 0
      %1802 = vperm.xlu0 %1801, %v1772
      %v1803 = vpop.permute.xlu0 %1802
      %1806 = vset.pattern.permute.xlu0 0
      %1807 = vperm.xlu0 %1806, %v1773
      %v1808 = vpop.permute.xlu0 %1807
      %1811 = vset.pattern.permute.xlu0 0
      %1812 = vperm.xlu0 %1811, %v1774
      %v1813 = vpop.permute.xlu0 %1812
      %v1823 = vunpack.c.l.b16 %v1759
      %v1824 = vunpack.c.l.b16 %v1760
      %v1825 = vunpack.c.l.b16 %v1761
      %v1826 = vunpack.c.l.b16 %v1762
      %v1827 = vunpack.c.l.b16 %v1763
      %v1828 = vunpack.c.l.b16 %v1764
      %v1829 = vunpack.c.l.b16 %v1765
      %v1830 = vunpack.c.l.b16 %v1766
      %v1831 = vpack.c.b16 %v1824, %v1823
      %v1832 = vpack.c.b16 %v1826, %v1825
      %v1833 = vpack.c.b16 %v1828, %v1827
      %v1834 = vpack.c.b16 %v1830, %v1829
      %vm1835 = vcmask 261120
      %v1837 = vsel %vm1835, %v1831, 0
      %v1840 = vsel %vm1835, %v1832, 0
      %v1843 = vsel %vm1835, %v1833, 0
      %v1846 = vsel %vm1835, %v1834, 0
      %1848 = vmatprep.subr.bf16.mxu0 %v1752
      %1849 = vmatpush1.bf16.msra.mxu0 %v1751
      %1850 = vmatprep.subr.bf16.mxu0 %v1754
      %1851 = vmatpush1.bf16.msra.mxu0 %v1753
      %1852 = vmatprep.subr.bf16.mxu0 0
      %1853 = vmatpush1.bf16.msra.mxu0 0
      %1854 = vmatprep.subr.bf16.mxu0 0
      %1855 = vmatpush1.bf16.msra.mxu0 0
      %1856 = vmatprep.subr.bf16.mxu0 0
      %1857 = vmatpush1.bf16.msra.mxu0 0
      %1858 = vmatprep.subr.bf16.mxu0 0
      %1859 = vmatpush1.bf16.msra.mxu0 0
      %1860 = vmatprep.subr.bf16.mxu0 0
      %1861 = vmatpush1.bf16.msra.mxu0 0
      %1862 = vmatprep.subr.bf16.mxu0 0
      %1863 = vmatpush1.bf16.msra.mxu0 0
      %1864 = vmatprep.subr.bf16.mxu0 0
      %1865 = vmatpush1.bf16.msra.mxu0 0
      %1866 = vmatprep.subr.bf16.mxu0 0
      %1867 = vmatpush1.bf16.msra.mxu0 0
      %1868 = vmatprep.subr.bf16.mxu0 0
      %1869 = vmatpush1.bf16.msra.mxu0 0
      %1870 = vmatprep.subr.bf16.mxu0 0
      %1871 = vmatpush1.bf16.msra.mxu0 0
      %1872 = vmatprep.subr.bf16.mxu0 0
      %1873 = vmatpush1.bf16.msra.mxu0 0
      %1874 = vmatprep.subr.bf16.mxu0 0
      %1875 = vmatpush1.bf16.msra.mxu0 0
      %1876 = vmatprep.subr.bf16.mxu0 0
      %1877 = vmatpush1.bf16.msra.mxu0 0
      %1878 = vmatprep.subr.bf16.mxu0 0
      %1879 = vmatpush1.bf16.msra.mxu0 0
      %1880 = vmatprep.mubr.bf16.mxu0 0
      %1881 = vmatmul.mubr.bf16.gmra.mrb[0].mxu0 %v1837
      %v1882 = vpop.f32.mrb[0].mxu0
      %v1883 = vadd.f32 %v1778, %v1882
      %v1884 = vpop.f32.mrb[0].mxu0
      %v1885 = vadd.f32 %v1778, %v1884
      %v1886 = vpop.f32.mrb[0].mxu0
      %v1887 = vadd.f32 %v1783, %v1886
      %v1888 = vpop.f32.mrb[0].mxu0
      %v1889 = vadd.f32 %v1783, %v1888
      %1890 = vmatprep.mubr.bf16.mxu0 0
      %1891 = vmatmul.mubr.bf16.gmra.mrb[0].mxu0 %v1840
      %v1892 = vpop.f32.mrb[0].mxu0
      %v1893 = vadd.f32 %v1788, %v1892
      %v1894 = vpop.f32.mrb[0].mxu0
      %v1895 = vadd.f32 %v1788, %v1894
      %v1896 = vpop.f32.mrb[0].mxu0
      %v1897 = vadd.f32 %v1793, %v1896
      %v1898 = vpop.f32.mrb[0].mxu0
      %v1899 = vadd.f32 %v1793, %v1898
      %1900 = vmatprep.mubr.bf16.mxu0 0
      %1901 = vmatmul.mubr.bf16.gmra.mrb[0].mxu0 %v1843
      %v1902 = vpop.f32.mrb[0].mxu0
      %v1903 = vadd.f32 %v1798, %v1902
      %v1904 = vpop.f32.mrb[0].mxu0
      %v1905 = vadd.f32 %v1798, %v1904
      %v1906 = vpop.f32.mrb[0].mxu0
      %v1907 = vadd.f32 %v1803, %v1906
      %v1908 = vpop.f32.mrb[0].mxu0
      %v1909 = vadd.f32 %v1803, %v1908
      %1910 = vmatprep.mubr.bf16.mxu0 0
      %1911 = vmatmul.mubr.bf16.gmra.mrb[0].mxu0 %v1846
      %v1912 = vpop.f32.mrb[0].mxu0
      %v1913 = vadd.f32 %v1808, %v1912
      %v1914 = vpop.f32.mrb[0].mxu0
      %v1915 = vadd.f32 %v1808, %v1914
      %v1916 = vpop.f32.mrb[0].mxu0
      %v1917 = vadd.f32 %v1813, %v1916
      %v1918 = vpop.f32.mrb[0].mxu0
      %v1919 = vadd.f32 %v1813, %v1918
      %1920 = vdwg.mxu0
      %v1921 = vld [vmem:[%s4 + $0x20] sm:$0xf]
      %v1922 = vld [vmem:[%s4 + $0x24] sm:$0xf]
      %v1923 = vld [vmem:[%s4 + $0x28] sm:$0xf]
      %v1924 = vld [vmem:[%s4 + $0x2c] sm:$0xf]
      %v1925 = vld [vmem:[%s4 + $0x30] sm:$0xf]
      %v1926 = vld [vmem:[%s4 + $0x34] sm:$0xf]
      %v1927 = vld [vmem:[%s5 + $0x140] sm:$0xff]
      %v1928 = vld [vmem:[%s5 + $0x148] sm:$0xff]
      %v1929 = vld [vmem:[%s5 + $0x150] sm:$0xff]
      %v1930 = vld [vmem:[%s5 + $0x158] sm:$0xff]
      %v1931 = vld [vmem:[%s5 + $0x160] sm:$0xff]
      %v1932 = vld [vmem:[%s5 + $0x168] sm:$0xff]
      %1934 = vset.pattern.permute.xlu0 0
      %1935 = vperm.xlu0 %1934, %v1927
      %v1936 = vpop.permute.xlu0 %1935
      %1939 = vset.pattern.permute.xlu0 0
      %1940 = vperm.xlu0 %1939, %v1928
      %v1941 = vpop.permute.xlu0 %1940
      %1944 = vset.pattern.permute.xlu0 0
      %1945 = vperm.xlu0 %1944, %v1929
      %v1946 = vpop.permute.xlu0 %1945
      %1949 = vset.pattern.permute.xlu0 0
      %1950 = vperm.xlu0 %1949, %v1930
      %v1951 = vpop.permute.xlu0 %1950
      %1954 = vset.pattern.permute.xlu0 0
      %1955 = vperm.xlu0 %1954, %v1931
      %v1956 = vpop.permute.xlu0 %1955
      %1959 = vset.pattern.permute.xlu0 0
      %1960 = vperm.xlu0 %1959, %v1932
      %v1961 = vpop.permute.xlu0 %1960
      %v1969 = vunpack.c.l.b16 %v1921
      %v1970 = vunpack.c.l.b16 %v1922
      %v1971 = vunpack.c.l.b16 %v1923
      %v1972 = vunpack.c.l.b16 %v1924
      %v1973 = vunpack.c.l.b16 %v1925
      %v1974 = vunpack.c.l.b16 %v1926
      %v1975 = vpack.c.b16 %v1970, %v1969
      %v1976 = vpack.c.b16 %v1972, %v1971
      %v1977 = vpack.c.b16 %v1974, %v1973
      %v1979 = vsel %vm1835, %v1975, 0
      %v1982 = vsel %vm1835, %v1976, 0
      %v1985 = vsel %vm1835, %v1977, 0
      %1987 = vmatprep.subr.bf16.mxu0 %v1756
      %1988 = vmatpush1.bf16.msra.mxu0 %v1755
      %1989 = vmatprep.subr.bf16.mxu0 %v1758
      %1990 = vmatpush1.bf16.msra.mxu0 %v1757
      %1991 = vmatprep.subr.bf16.mxu0 0
      %1992 = vmatpush1.bf16.msra.mxu0 0
      %1993 = vmatprep.subr.bf16.mxu0 0
      %1994 = vmatpush1.bf16.msra.mxu0 0
      %1995 = vmatprep.subr.bf16.mxu0 0
      %1996 = vmatpush1.bf16.msra.mxu0 0
      %1997 = vmatprep.subr.bf16.mxu0 0
      %1998 = vmatpush1.bf16.msra.mxu0 0
      %1999 = vmatprep.subr.bf16.mxu0 0
      %2000 = vmatpush1.bf16.msra.mxu0 0
      %2001 = vmatprep.subr.bf16.mxu0 0
      %2002 = vmatpush1.bf16.msra.mxu0 0
      %2003 = vmatprep.subr.bf16.mxu0 0
      %2004 = vmatpush1.bf16.msra.mxu0 0
      %2005 = vmatprep.subr.bf16.mxu0 0
      %2006 = vmatpush1.bf16.msra.mxu0 0
      %2007 = vmatprep.subr.bf16.mxu0 0
      %2008 = vmatpush1.bf16.msra.mxu0 0
      %2009 = vmatprep.subr.bf16.mxu0 0
      %2010 = vmatpush1.bf16.msra.mxu0 0
      %2011 = vmatprep.subr.bf16.mxu0 0
      %2012 = vmatpush1.bf16.msra.mxu0 0
      %2013 = vmatprep.subr.bf16.mxu0 0
      %2014 = vmatpush1.bf16.msra.mxu0 0
      %2015 = vmatprep.subr.bf16.mxu0 0
      %2016 = vmatpush1.bf16.msra.mxu0 0
      %2017 = vmatprep.subr.bf16.mxu0 0
      %2018 = vmatpush1.bf16.msra.mxu0 0
      %2019 = vmatprep.mubr.bf16.mxu0 0
      %2020 = vmatmul.mubr.bf16.gmra.mrb[0].mxu0 %v1979
      %v2021 = vpop.f32.mrb[0].mxu0
      %v2022 = vadd.f32 %v1936, %v2021
      %v2023 = vpop.f32.mrb[0].mxu0
      %v2024 = vadd.f32 %v1936, %v2023
      %v2025 = vpop.f32.mrb[0].mxu0
      %v2026 = vadd.f32 %v1941, %v2025
      %v2027 = vpop.f32.mrb[0].mxu0
      %v2028 = vadd.f32 %v1941, %v2027
      %2029 = vmatprep.mubr.bf16.mxu0 0
      %2030 = vmatmul.mubr.bf16.gmra.mrb[0].mxu0 %v1982
      %v2031 = vpop.f32.mrb[0].mxu0
      %v2032 = vadd.f32 %v1946, %v2031
      %v2033 = vpop.f32.mrb[0].mxu0
      %v2034 = vadd.f32 %v1946, %v2033
      %v2035 = vpop.f32.mrb[0].mxu0
      %v2036 = vadd.f32 %v1951, %v2035
      %v2037 = vpop.f32.mrb[0].mxu0
      %v2038 = vadd.f32 %v1951, %v2037
      %2039 = vmatprep.mubr.bf16.mxu0 0
      %2040 = vmatmul.mubr.bf16.gmra.mrb[0].mxu0 %v1985
      %v2041 = vpop.f32.mrb[0].mxu0
      %v2042 = vadd.f32 %v1956, %v2041
      %v2043 = vpop.f32.mrb[0].mxu0
      %v2044 = vadd.f32 %v1956, %v2043
      %v2045 = vpop.f32.mrb[0].mxu0
      %v2046 = vadd.f32 %v1961, %v2045
      %v2047 = vpop.f32.mrb[0].mxu0
      %v2048 = vadd.f32 %v1961, %v2047
      %2049 = vdwg.mxu0
      %2050 = vxpose.xlu0.b32.start [1/16] %v1883, 128
      %2051 = vxpose.xlu0.b32.cont [2/16] %v1887, 128
      %2052 = vxpose.xlu0.b32.cont [3/16] 0.0, 128
      %2053 = vxpose.xlu0.b32.cont [4/16] 0.0, 128
      %2054 = vxpose.xlu0.b32.cont [5/16] 0.0, 128
      %2055 = vxpose.xlu0.b32.cont [6/16] 0.0, 128
      %2056 = vxpose.xlu0.b32.cont [7/16] 0.0, 128
      %2057 = vxpose.xlu0.b32.cont [8/16] 0.0, 128
      %2058 = vxpose.xlu0.b32.cont [9/16] 0.0, 128
      %2059 = vxpose.xlu0.b32.cont [10/16] 0.0, 128
      %2060 = vxpose.xlu0.b32.cont [11/16] 0.0, 128
      %2061 = vxpose.xlu0.b32.cont [12/16] 0.0, 128
      %2062 = vxpose.xlu0.b32.cont [13/16] 0.0, 128
      %2063 = vxpose.xlu0.b32.cont [14/16] 0.0, 128
      %2064 = vxpose.xlu0.b32.cont [15/16] 0.0, 128
      %2065 = vxpose.xlu0.b32.end [16/16] 0.0, 128
      %v2066 = vpop.trf.xlu0
      %v2067 = vpop.trf.xlu0
      %v2068 = vpop.trf.xlu0
      %v2069 = vpop.trf.xlu0
      %v2070 = vpop.trf.xlu0
      %v2071 = vpop.trf.xlu0
      %v2072 = vpop.trf.xlu0
      %v2073 = vpop.trf.xlu0
      %v2074 = vpop.trf.xlu0
      %v2075 = vpop.trf.xlu0
      %v2076 = vpop.trf.xlu0
      %v2077 = vpop.trf.xlu0
      %v2078 = vpop.trf.xlu0
      %v2079 = vpop.trf.xlu0
      %v2080 = vpop.trf.xlu0
      %v2081 = vpop.trf.xlu0
      %2082 = vxpose.xlu0.b32.start [1/16] %v1885, 128
      %2083 = vxpose.xlu0.b32.cont [2/16] %v1889, 128
      %2084 = vxpose.xlu0.b32.cont [3/16] 0.0, 128
      %2085 = vxpose.xlu0.b32.cont [4/16] 0.0, 128
      %2086 = vxpose.xlu0.b32.cont [5/16] 0.0, 128
      %2087 = vxpose.xlu0.b32.cont [6/16] 0.0, 128
      %2088 = vxpose.xlu0.b32.cont [7/16] 0.0, 128
      %2089 = vxpose.xlu0.b32.cont [8/16] 0.0, 128
      %2090 = vxpose.xlu0.b32.cont [9/16] 0.0, 128
      %2091 = vxpose.xlu0.b32.cont [10/16] 0.0, 128
      %2092 = vxpose.xlu0.b32.cont [11/16] 0.0, 128
      %2093 = vxpose.xlu0.b32.cont [12/16] 0.0, 128
      %2094 = vxpose.xlu0.b32.cont [13/16] 0.0, 128
      %2095 = vxpose.xlu0.b32.cont [14/16] 0.0, 128
      %2096 = vxpose.xlu0.b32.cont [15/16] 0.0, 128
      %2097 = vxpose.xlu0.b32.end [16/16] 0.0, 128
      %v2098 = vpop.trf.xlu0
      %v2099 = vpop.trf.xlu0
      %v2100 = vpop.trf.xlu0
      %v2101 = vpop.trf.xlu0
      %v2102 = vpop.trf.xlu0
      %v2103 = vpop.trf.xlu0
      %v2104 = vpop.trf.xlu0
      %v2105 = vpop.trf.xlu0
      %v2106 = vpop.trf.xlu0
      %v2107 = vpop.trf.xlu0
      %v2108 = vpop.trf.xlu0
      %v2109 = vpop.trf.xlu0
      %v2110 = vpop.trf.xlu0
      %v2111 = vpop.trf.xlu0
      %v2112 = vpop.trf.xlu0
      %v2113 = vpop.trf.xlu0
      %v2114 = vpack.c.bf16 %v2067, %v2066
      %v2115 = vpack.c.bf16 %v2069, %v2068
      %v2116 = vpack.c.bf16 %v2071, %v2070
      %v2117 = vpack.c.bf16 %v2073, %v2072
      %v2118 = vpack.c.bf16 %v2075, %v2074
      %v2119 = vpack.c.bf16 %v2077, %v2076
      %v2120 = vpack.c.bf16 %v2079, %v2078
      %v2121 = vpack.c.bf16 %v2081, %v2080
      %v2122 = vpack.c.bf16 %v2099, %v2098
      %v2123 = vpack.c.bf16 %v2101, %v2100
      %v2124 = vpack.c.bf16 %v2103, %v2102
      %v2125 = vpack.c.bf16 %v2105, %v2104
      %v2126 = vpack.c.bf16 %v2107, %v2106
      %v2127 = vpack.c.bf16 %v2109, %v2108
      %v2128 = vpack.c.bf16 %v2111, %v2110
      %v2129 = vpack.c.bf16 %v2113, %v2112
      %v2130 = vpack.c.bf16 %v1897, %v1893
      %v2131 = vpack.c.bf16 %v1899, %v1895
      %v2132 = vpack.c.bf16 %v2026, %v2022
      %v2133 = vpack.c.bf16 %v2028, %v2024
      %vm2134 = vcmask 130048
      %v2136 = vsel %vm2134, %v2114, 0
      %v2139 = vsel %vm2134, %v2115, 0
      %v2142 = vsel %vm2134, %v2116, 0
      %v2145 = vsel %vm2134, %v2117, 0
      %v2148 = vsel %vm2134, %v2118, 0
      %v2151 = vsel %vm2134, %v2119, 0
      %v2154 = vsel %vm2134, %v2120, 0
      %v2157 = vsel %vm2134, %v2121, 0
      %v2160 = vsel %vm2134, %v2122, 0
      %v2163 = vsel %vm2134, %v2123, 0
      %v2166 = vsel %vm2134, %v2124, 0
      %v2169 = vsel %vm2134, %v2125, 0
      %v2172 = vsel %vm2134, %v2126, 0
      %v2175 = vsel %vm2134, %v2127, 0
      %v2178 = vsel %vm2134, %v2128, 0
      %v2181 = vsel %vm2134, %v2129, 0
      %2183 = vmatprep.subr.bf16.mxu0 %v2131
      %2184 = vmatpush1.bf16.msra.mxu0 %v2130
      %2185 = vmatprep.subr.bf16.mxu0 0
      %2186 = vmatpush1.bf16.msra.mxu0 0
      %2187 = vmatprep.subr.bf16.mxu0 0
      %2188 = vmatpush1.bf16.msra.mxu0 0
      %2189 = vmatprep.subr.bf16.mxu0 0
      %2190 = vmatpush1.bf16.msra.mxu0 0
      %2191 = vmatprep.subr.bf16.mxu0 0
      %2192 = vmatpush1.bf16.msra.mxu0 0
      %2193 = vmatprep.subr.bf16.mxu0 0
      %2194 = vmatpush1.bf16.msra.mxu0 0
      %2195 = vmatprep.subr.bf16.mxu0 0
      %2196 = vmatpush1.bf16.msra.mxu0 0
      %2197 = vmatprep.subr.bf16.mxu0 0
      %2198 = vmatpush1.bf16.msra.mxu0 0
      %2199 = vmatprep.subr.bf16.mxu0 0
      %2200 = vmatpush1.bf16.msra.mxu0 0
      %2201 = vmatprep.subr.bf16.mxu0 0
      %2202 = vmatpush1.bf16.msra.mxu0 0
      %2203 = vmatprep.subr.bf16.mxu0 0
      %2204 = vmatpush1.bf16.msra.mxu0 0
      %2205 = vmatprep.subr.bf16.mxu0 0
      %2206 = vmatpush1.bf16.msra.mxu0 0
      %2207 = vmatprep.subr.bf16.mxu0 0
      %2208 = vmatpush1.bf16.msra.mxu0 0
      %2209 = vmatprep.subr.bf16.mxu0 0
      %2210 = vmatpush1.bf16.msra.mxu0 0
      %2211 = vmatprep.subr.bf16.mxu0 0
      %2212 = vmatpush1.bf16.msra.mxu0 0
      %2213 = vmatprep.subr.bf16.mxu0 0
      %2214 = vmatpush1.bf16.msra.mxu0 0
      %2215 = vmatprep.mubr.bf16.mxu0 0
      %2216 = vmatmul.mubr.bf16.gmra.mrb[0].mxu0 %v2136
      %v2217 = vpop.f32.mrb[0].mxu0
      %v2218 = vadd.f32 0.0, %v2217
      %v2219 = vpop.f32.mrb[0].mxu0
      %v2220 = vadd.f32 0.0, %v2219
      %v2221 = vpop.f32.mrb[0].mxu0
      %v2222 = vadd.f32 0.0, %v2221
      %v2223 = vpop.f32.mrb[0].mxu0
      %v2224 = vadd.f32 0.0, %v2223
      %2225 = vmatprep.mubr.bf16.mxu0 0
      %2226 = vmatmul.mubr.bf16.gmra.mrb[0].mxu0 %v2139
      %v2227 = vpop.f32.mrb[0].mxu0
      %v2228 = vadd.f32 0.0, %v2227
      %v2229 = vpop.f32.mrb[0].mxu0
      %v2230 = vadd.f32 0.0, %v2229
      %v2231 = vpop.f32.mrb[0].mxu0
      %v2232 = vadd.f32 0.0, %v2231
      %v2233 = vpop.f32.mrb[0].mxu0
      %v2234 = vadd.f32 0.0, %v2233
      %2235 = vmatprep.mubr.bf16.mxu0 0
      %2236 = vmatmul.mubr.bf16.gmra.mrb[0].mxu0 %v2142
      %v2237 = vpop.f32.mrb[0].mxu0
      %v2238 = vadd.f32 0.0, %v2237
      %v2239 = vpop.f32.mrb[0].mxu0
      %v2240 = vadd.f32 0.0, %v2239
      %v2241 = vpop.f32.mrb[0].mxu0
      %v2242 = vadd.f32 0.0, %v2241
      %v2243 = vpop.f32.mrb[0].mxu0
      %v2244 = vadd.f32 0.0, %v2243
      %2245 = vmatprep.mubr.bf16.mxu0 0
      %2246 = vmatmul.mubr.bf16.gmra.mrb[0].mxu0 %v2145
      %v2247 = vpop.f32.mrb[0].mxu0
      %v2248 = vadd.f32 0.0, %v2247
      %v2249 = vpop.f32.mrb[0].mxu0
      %v2250 = vadd.f32 0.0, %v2249
      %v2251 = vpop.f32.mrb[0].mxu0
      %v2252 = vadd.f32 0.0, %v2251
      %v2253 = vpop.f32.mrb[0].mxu0
      %v2254 = vadd.f32 0.0, %v2253
      %2255 = vmatprep.mubr.bf16.mxu0 0
      %2256 = vmatmul.mubr.bf16.gmra.mrb[0].mxu0 %v2148
      %v2257 = vpop.f32.mrb[0].mxu0
      %v2258 = vadd.f32 0.0, %v2257
      %v2259 = vpop.f32.mrb[0].mxu0
      %v2260 = vadd.f32 0.0, %v2259
      %v2261 = vpop.f32.mrb[0].mxu0
      %v2262 = vadd.f32 0.0, %v2261
      %v2263 = vpop.f32.mrb[0].mxu0
      %v2264 = vadd.f32 0.0, %v2263
      %2265 = vmatprep.mubr.bf16.mxu0 0
      %2266 = vmatmul.mubr.bf16.gmra.mrb[0].mxu0 %v2151
      %v2267 = vpop.f32.mrb[0].mxu0
      %v2268 = vadd.f32 0.0, %v2267
      %v2269 = vpop.f32.mrb[0].mxu0
      %v2270 = vadd.f32 0.0, %v2269
      %v2271 = vpop.f32.mrb[0].mxu0
      %v2272 = vadd.f32 0.0, %v2271
      %v2273 = vpop.f32.mrb[0].mxu0
      %v2274 = vadd.f32 0.0, %v2273
      %2275 = vmatprep.mubr.bf16.mxu0 0
      %2276 = vmatmul.mubr.bf16.gmra.mrb[0].mxu0 %v2154
      %v2277 = vpop.f32.mrb[0].mxu0
      %v2278 = vadd.f32 0.0, %v2277
      %v2279 = vpop.f32.mrb[0].mxu0
      %v2280 = vadd.f32 0.0, %v2279
      %v2281 = vpop.f32.mrb[0].mxu0
      %v2282 = vadd.f32 0.0, %v2281
      %v2283 = vpop.f32.mrb[0].mxu0
      %v2284 = vadd.f32 0.0, %v2283
      %2285 = vmatprep.mubr.bf16.mxu0 0
      %2286 = vmatmul.mubr.bf16.gmra.mrb[0].mxu0 %v2157
      %v2287 = vpop.f32.mrb[0].mxu0
      %v2288 = vadd.f32 0.0, %v2287
      %v2289 = vpop.f32.mrb[0].mxu0
      %v2290 = vadd.f32 0.0, %v2289
      %v2291 = vpop.f32.mrb[0].mxu0
      %v2292 = vadd.f32 0.0, %v2291
      %v2293 = vpop.f32.mrb[0].mxu0
      %v2294 = vadd.f32 0.0, %v2293
      %2295 = vmatprep.mubr.bf16.mxu0 0
      %2296 = vmatmul.mubr.bf16.gmra.mrb[0].mxu0 %v2160
      %v2297 = vpop.f32.mrb[0].mxu0
      %v2298 = vadd.f32 0.0, %v2297
      %v2299 = vpop.f32.mrb[0].mxu0
      %v2300 = vadd.f32 0.0, %v2299
      %v2301 = vpop.f32.mrb[0].mxu0
      %v2302 = vadd.f32 0.0, %v2301
      %v2303 = vpop.f32.mrb[0].mxu0
      %v2304 = vadd.f32 0.0, %v2303
      %2305 = vmatprep.mubr.bf16.mxu0 0
      %2306 = vmatmul.mubr.bf16.gmra.mrb[0].mxu0 %v2163
      %v2307 = vpop.f32.mrb[0].mxu0
      %v2308 = vadd.f32 0.0, %v2307
      %v2309 = vpop.f32.mrb[0].mxu0
      %v2310 = vadd.f32 0.0, %v2309
      %v2311 = vpop.f32.mrb[0].mxu0
      %v2312 = vadd.f32 0.0, %v2311
      %v2313 = vpop.f32.mrb[0].mxu0
      %v2314 = vadd.f32 0.0, %v2313
      %2315 = vmatprep.mubr.bf16.mxu0 0
      %2316 = vmatmul.mubr.bf16.gmra.mrb[0].mxu0 %v2166
      %v2317 = vpop.f32.mrb[0].mxu0
      %v2318 = vadd.f32 0.0, %v2317
      %v2319 = vpop.f32.mrb[0].mxu0
      %v2320 = vadd.f32 0.0, %v2319
      %v2321 = vpop.f32.mrb[0].mxu0
      %v2322 = vadd.f32 0.0, %v2321
      %v2323 = vpop.f32.mrb[0].mxu0
      %v2324 = vadd.f32 0.0, %v2323
      %2325 = vmatprep.mubr.bf16.mxu0 0
      %2326 = vmatmul.mubr.bf16.gmra.mrb[0].mxu0 %v2169
      %v2327 = vpop.f32.mrb[0].mxu0
      %v2328 = vadd.f32 0.0, %v2327
      %v2329 = vpop.f32.mrb[0].mxu0
      %v2330 = vadd.f32 0.0, %v2329
      %v2331 = vpop.f32.mrb[0].mxu0
      %v2332 = vadd.f32 0.0, %v2331
      %v2333 = vpop.f32.mrb[0].mxu0
      %v2334 = vadd.f32 0.0, %v2333
      %2335 = vmatprep.mubr.bf16.mxu0 0
      %2336 = vmatmul.mubr.bf16.gmra.mrb[0].mxu0 %v2172
      %v2337 = vpop.f32.mrb[0].mxu0
      %v2338 = vadd.f32 0.0, %v2337
      %v2339 = vpop.f32.mrb[0].mxu0
      %v2340 = vadd.f32 0.0, %v2339
      %v2341 = vpop.f32.mrb[0].mxu0
      %v2342 = vadd.f32 0.0, %v2341
      %v2343 = vpop.f32.mrb[0].mxu0
      %v2344 = vadd.f32 0.0, %v2343
      %2345 = vmatprep.mubr.bf16.mxu0 0
      %2346 = vmatmul.mubr.bf16.gmra.mrb[0].mxu0 %v2175
      %v2347 = vpop.f32.mrb[0].mxu0
      %v2348 = vadd.f32 0.0, %v2347
      %v2349 = vpop.f32.mrb[0].mxu0
      %v2350 = vadd.f32 0.0, %v2349
      %v2351 = vpop.f32.mrb[0].mxu0
      %v2352 = vadd.f32 0.0, %v2351
      %v2353 = vpop.f32.mrb[0].mxu0
      %v2354 = vadd.f32 0.0, %v2353
      %2355 = vmatprep.mubr.bf16.mxu0 0
      %2356 = vmatmul.mubr.bf16.gmra.mrb[0].mxu0 %v2178
      %v2357 = vpop.f32.mrb[0].mxu0
      %v2358 = vadd.f32 0.0, %v2357
      %v2359 = vpop.f32.mrb[0].mxu0
      %v2360 = vadd.f32 0.0, %v2359
      %v2361 = vpop.f32.mrb[0].mxu0
      %v2362 = vadd.f32 0.0, %v2361
      %v2363 = vpop.f32.mrb[0].mxu0
      %v2364 = vadd.f32 0.0, %v2363
      %2365 = vmatprep.mubr.bf16.mxu0 0
      %2366 = vmatmul.mubr.bf16.gmra.mrb[0].mxu0 %v2181
      %v2367 = vpop.f32.mrb[0].mxu0
      %v2368 = vadd.f32 0.0, %v2367
      %v2369 = vpop.f32.mrb[0].mxu0
      %v2370 = vadd.f32 0.0, %v2369
      %v2371 = vpop.f32.mrb[0].mxu0
      %v2372 = vadd.f32 0.0, %v2371
      %v2373 = vpop.f32.mrb[0].mxu0
      %v2374 = vadd.f32 0.0, %v2373
      %2375 = vdwg.mxu0
      %v2376 = vmax.f32 %v2218, %v2220
      %2377 = vmax.xlane.f32.xlu0 %v2376
      %v2378 = vpop.xlane.xlu0 %2377
      %v2379 = vmax.f32 %v2222, %v2224
      %2380 = vmax.xlane.f32.xlu0 %v2379
      %v2381 = vpop.xlane.xlu0 %2380
      %v2382 = vmax.f32 %v2228, %v2230
      %2383 = vmax.xlane.f32.xlu0 %v2382
      %v2384 = vpop.xlane.xlu0 %2383
      %v2385 = vmax.f32 %v2232, %v2234
      %2386 = vmax.xlane.f32.xlu0 %v2385
      %v2387 = vpop.xlane.xlu0 %2386
      %v2388 = vmax.f32 %v2238, %v2240
      %2389 = vmax.xlane.f32.xlu0 %v2388
      %v2390 = vpop.xlane.xlu0 %2389
      %v2391 = vmax.f32 %v2242, %v2244
      %2392 = vmax.xlane.f32.xlu0 %v2391
      %v2393 = vpop.xlane.xlu0 %2392
      %v2394 = vmax.f32 %v2248, %v2250
      %2395 = vmax.xlane.f32.xlu0 %v2394
      %v2396 = vpop.xlane.xlu0 %2395
      %v2397 = vmax.f32 %v2252, %v2254
      %2398 = vmax.xlane.f32.xlu0 %v2397
      %v2399 = vpop.xlane.xlu0 %2398
      %v2400 = vmax.f32 %v2258, %v2260
      %2401 = vmax.xlane.f32.xlu0 %v2400
      %v2402 = vpop.xlane.xlu0 %2401
      %v2403 = vmax.f32 %v2262, %v2264
      %2404 = vmax.xlane.f32.xlu0 %v2403
      %v2405 = vpop.xlane.xlu0 %2404
      %v2406 = vmax.f32 %v2268, %v2270
      %2407 = vmax.xlane.f32.xlu0 %v2406
      %v2408 = vpop.xlane.xlu0 %2407
      %v2409 = vmax.f32 %v2272, %v2274
      %2410 = vmax.xlane.f32.xlu0 %v2409
      %v2411 = vpop.xlane.xlu0 %2410
      %v2412 = vmax.f32 %v2278, %v2280
      %2413 = vmax.xlane.f32.xlu0 %v2412
      %v2414 = vpop.xlane.xlu0 %2413
      %v2415 = vmax.f32 %v2282, %v2284
      %2416 = vmax.xlane.f32.xlu0 %v2415
      %v2417 = vpop.xlane.xlu0 %2416
      %v2418 = vmax.f32 %v2288, %v2290
      %2419 = vmax.xlane.f32.xlu0 %v2418
      %v2420 = vpop.xlane.xlu0 %2419
      %v2421 = vmax.f32 %v2292, %v2294
      %2422 = vmax.xlane.f32.xlu0 %v2421
      %v2423 = vpop.xlane.xlu0 %2422
      %v2424 = vmax.f32 %v2298, %v2300
      %2425 = vmax.xlane.f32.xlu0 %v2424
      %v2426 = vpop.xlane.xlu0 %2425
      %v2427 = vmax.f32 %v2302, %v2304
      %2428 = vmax.xlane.f32.xlu0 %v2427
      %v2429 = vpop.xlane.xlu0 %2428
      %v2430 = vmax.f32 %v2308, %v2310
      %2431 = vmax.xlane.f32.xlu0 %v2430
      %v2432 = vpop.xlane.xlu0 %2431
      %v2433 = vmax.f32 %v2312, %v2314
      %2434 = vmax.xlane.f32.xlu0 %v2433
      %v2435 = vpop.xlane.xlu0 %2434
      %v2436 = vmax.f32 %v2318, %v2320
      %2437 = vmax.xlane.f32.xlu0 %v2436
      %v2438 = vpop.xlane.xlu0 %2437
      %v2439 = vmax.f32 %v2322, %v2324
      %2440 = vmax.xlane.f32.xlu0 %v2439
      %v2441 = vpop.xlane.xlu0 %2440
      %v2442 = vmax.f32 %v2328, %v2330
      %2443 = vmax.xlane.f32.xlu0 %v2442
      %v2444 = vpop.xlane.xlu0 %2443
      %v2445 = vmax.f32 %v2332, %v2334
      %2446 = vmax.xlane.f32.xlu0 %v2445
      %v2447 = vpop.xlane.xlu0 %2446
      %v2448 = vmax.f32 %v2338, %v2340
      %2449 = vmax.xlane.f32.xlu0 %v2448
      %v2450 = vpop.xlane.xlu0 %2449
      %v2451 = vmax.f32 %v2342, %v2344
      %2452 = vmax.xlane.f32.xlu0 %v2451
      %v2453 = vpop.xlane.xlu0 %2452
      %v2454 = vmax.f32 %v2348, %v2350
      %2455 = vmax.xlane.f32.xlu0 %v2454
      %v2456 = vpop.xlane.xlu0 %2455
      %v2457 = vmax.f32 %v2352, %v2354
      %2458 = vmax.xlane.f32.xlu0 %v2457
      %v2459 = vpop.xlane.xlu0 %2458
      %v2460 = vmax.f32 %v2358, %v2360
      %2461 = vmax.xlane.f32.xlu0 %v2460
      %v2462 = vpop.xlane.xlu0 %2461
      %v2463 = vmax.f32 %v2362, %v2364
      %2464 = vmax.xlane.f32.xlu0 %v2463
      %v2465 = vpop.xlane.xlu0 %2464
      %v2466 = vmax.f32 %v2368, %v2370
      %2467 = vmax.xlane.f32.xlu0 %v2466
      %v2468 = vpop.xlane.xlu0 %2467
      %v2469 = vmax.f32 %v2372, %v2374
      %2470 = vmax.xlane.f32.xlu0 %v2469
      %v2471 = vpop.xlane.xlu0 %2470
      %v2472 = vsub.f32 %v2218, %v2378
      %v2473 = vsub.f32 %v2220, %v2378
      %v2474 = vsub.f32 %v2222, %v2381
      %v2475 = vsub.f32 %v2224, %v2381
      %v2476 = vsub.f32 %v2228, %v2384
      %v2477 = vsub.f32 %v2230, %v2384
      %v2478 = vsub.f32 %v2232, %v2387
      %v2479 = vsub.f32 %v2234, %v2387
      %v2480 = vsub.f32 %v2238, %v2390
      %v2481 = vsub.f32 %v2240, %v2390
      %v2482 = vsub.f32 %v2242, %v2393
      %v2483 = vsub.f32 %v2244, %v2393
      %v2484 = vsub.f32 %v2248, %v2396
      %v2485 = vsub.f32 %v2250, %v2396
      %v2486 = vsub.f32 %v2252, %v2399
      %v2487 = vsub.f32 %v2254, %v2399
      %v2488 = vsub.f32 %v2258, %v2402
      %v2489 = vsub.f32 %v2260, %v2402
      %v2490 = vsub.f32 %v2262, %v2405
      %v2491 = vsub.f32 %v2264, %v2405
      %v2492 = vsub.f32 %v2268, %v2408
      %v2493 = vsub.f32 %v2270, %v2408
      %v2494 = vsub.f32 %v2272, %v2411
      %v2495 = vsub.f32 %v2274, %v2411
      %v2496 = vsub.f32 %v2278, %v2414
      %v2497 = vsub.f32 %v2280, %v2414
      %v2498 = vsub.f32 %v2282, %v2417
      %v2499 = vsub.f32 %v2284, %v2417
      %v2500 = vsub.f32 %v2288, %v2420
      %v2501 = vsub.f32 %v2290, %v2420
      %v2502 = vsub.f32 %v2292, %v2423
      %v2503 = vsub.f32 %v2294, %v2423
      %v2504 = vsub.f32 %v2298, %v2426
      %v2505 = vsub.f32 %v2300, %v2426
      %v2506 = vsub.f32 %v2302, %v2429
      %v2507 = vsub.f32 %v2304, %v2429
      %v2508 = vsub.f32 %v2308, %v2432
      %v2509 = vsub.f32 %v2310, %v2432
      %v2510 = vsub.f32 %v2312, %v2435
      %v2511 = vsub.f32 %v2314, %v2435
      %v2512 = vsub.f32 %v2318, %v2438
      %v2513 = vsub.f32 %v2320, %v2438
      %v2514 = vsub.f32 %v2322, %v2441
      %v2515 = vsub.f32 %v2324, %v2441
      %v2516 = vsub.f32 %v2328, %v2444
      %v2517 = vsub.f32 %v2330, %v2444
      %v2518 = vsub.f32 %v2332, %v2447
      %v2519 = vsub.f32 %v2334, %v2447
      %v2520 = vsub.f32 %v2338, %v2450
      %v2521 = vsub.f32 %v2340, %v2450
      %v2522 = vsub.f32 %v2342, %v2453
      %v2523 = vsub.f32 %v2344, %v2453
      %v2524 = vsub.f32 %v2348, %v2456
      %v2525 = vsub.f32 %v2350, %v2456
      %v2526 = vsub.f32 %v2352, %v2459
      %v2527 = vsub.f32 %v2354, %v2459
      %v2528 = vsub.f32 %v2358, %v2462
      %v2529 = vsub.f32 %v2360, %v2462
      %v2530 = vsub.f32 %v2362, %v2465
      %v2531 = vsub.f32 %v2364, %v2465
      %v2532 = vsub.f32 %v2368, %v2468
      %v2533 = vsub.f32 %v2370, %v2468
      %v2534 = vsub.f32 %v2372, %v2471
      %v2535 = vsub.f32 %v2374, %v2471
      %v2536 = vmul.f32 %v2472, 1.442695
      %v2537 = vpow.pop %v2536
      %v2538 = vmul.f32 %v2473, 1.442695
      %v2539 = vpow.pop %v2538
      %v2540 = vmul.f32 %v2474, 1.442695
      %v2541 = vpow.pop %v2540
      %v2542 = vmul.f32 %v2475, 1.442695
      %v2543 = vpow.pop %v2542
      %v2544 = vmul.f32 %v2476, 1.442695
      %v2545 = vpow.pop %v2544
      %v2546 = vmul.f32 %v2477, 1.442695
      %v2547 = vpow.pop %v2546
      %v2548 = vmul.f32 %v2478, 1.442695
      %v2549 = vpow.pop %v2548
      %v2550 = vmul.f32 %v2479, 1.442695
      %v2551 = vpow.pop %v2550
      %v2552 = vmul.f32 %v2480, 1.442695
      %v2553 = vpow.pop %v2552
      %v2554 = vmul.f32 %v2481, 1.442695
      %v2555 = vpow.pop %v2554
      %v2556 = vmul.f32 %v2482, 1.442695
      %v2557 = vpow.pop %v2556
      %v2558 = vmul.f32 %v2483, 1.442695
      %v2559 = vpow.pop %v2558
      %v2560 = vmul.f32 %v2484, 1.442695
      %v2561 = vpow.pop %v2560
      %v2562 = vmul.f32 %v2485, 1.442695
      %v2563 = vpow.pop %v2562
      %v2564 = vmul.f32 %v2486, 1.442695
      %v2565 = vpow.pop %v2564
      %v2566 = vmul.f32 %v2487, 1.442695
      %v2567 = vpow.pop %v2566
      %v2568 = vmul.f32 %v2488, 1.442695
      %v2569 = vpow.pop %v2568
      %v2570 = vmul.f32 %v2489, 1.442695
      %v2571 = vpow.pop %v2570
      %v2572 = vmul.f32 %v2490, 1.442695
      %v2573 = vpow.pop %v2572
      %v2574 = vmul.f32 %v2491, 1.442695
      %v2575 = vpow.pop %v2574
      %v2576 = vmul.f32 %v2492, 1.442695
      %v2577 = vpow.pop %v2576
      %v2578 = vmul.f32 %v2493, 1.442695
      %v2579 = vpow.pop %v2578
      %v2580 = vmul.f32 %v2494, 1.442695
      %v2581 = vpow.pop %v2580
      %v2582 = vmul.f32 %v2495, 1.442695
      %v2583 = vpow.pop %v2582
      %v2584 = vmul.f32 %v2496, 1.442695
      %v2585 = vpow.pop %v2584
      %v2586 = vmul.f32 %v2497, 1.442695
      %v2587 = vpow.pop %v2586
      %v2588 = vmul.f32 %v2498, 1.442695
      %v2589 = vpow.pop %v2588
      %v2590 = vmul.f32 %v2499, 1.442695
      %v2591 = vpow.pop %v2590
      %v2592 = vmul.f32 %v2500, 1.442695
      %v2593 = vpow.pop %v2592
      %v2594 = vmul.f32 %v2501, 1.442695
      %v2595 = vpow.pop %v2594
      %v2596 = vmul.f32 %v2502, 1.442695
      %v2597 = vpow.pop %v2596
      %v2598 = vmul.f32 %v2503, 1.442695
      %v2599 = vpow.pop %v2598
      %v2600 = vmul.f32 %v2504, 1.442695
      %v2601 = vpow.pop %v2600
      %v2602 = vmul.f32 %v2505, 1.442695
      %v2603 = vpow.pop %v2602
      %v2604 = vmul.f32 %v2506, 1.442695
      %v2605 = vpow.pop %v2604
      %v2606 = vmul.f32 %v2507, 1.442695
      %v2607 = vpow.pop %v2606
      %v2608 = vmul.f32 %v2508, 1.442695
      %v2609 = vpow.pop %v2608
      %v2610 = vmul.f32 %v2509, 1.442695
      %v2611 = vpow.pop %v2610
      %v2612 = vmul.f32 %v2510, 1.442695
      %v2613 = vpow.pop %v2612
      %v2614 = vmul.f32 %v2511, 1.442695
      %v2615 = vpow.pop %v2614
      %v2616 = vmul.f32 %v2512, 1.442695
      %v2617 = vpow.pop %v2616
      %v2618 = vmul.f32 %v2513, 1.442695
      %v2619 = vpow.pop %v2618
      %v2620 = vmul.f32 %v2514, 1.442695
      %v2621 = vpow.pop %v2620
      %v2622 = vmul.f32 %v2515, 1.442695
      %v2623 = vpow.pop %v2622
      %v2624 = vmul.f32 %v2516, 1.442695
      %v2625 = vpow.pop %v2624
      %v2626 = vmul.f32 %v2517, 1.442695
      %v2627 = vpow.pop %v2626
      %v2628 = vmul.f32 %v2518, 1.442695
      %v2629 = vpow.pop %v2628
      %v2630 = vmul.f32 %v2519, 1.442695
      %v2631 = vpow.pop %v2630
      %v2632 = vmul.f32 %v2520, 1.442695
      %v2633 = vpow.pop %v2632
      %v2634 = vmul.f32 %v2521, 1.442695
      %v2635 = vpow.pop %v2634
      %v2636 = vmul.f32 %v2522, 1.442695
      %v2637 = vpow.pop %v2636
      %v2638 = vmul.f32 %v2523, 1.442695
      %v2639 = vpow.pop %v2638
      %v2640 = vmul.f32 %v2524, 1.442695
      %v2641 = vpow.pop %v2640
      %v2642 = vmul.f32 %v2525, 1.442695
      %v2643 = vpow.pop %v2642
      %v2644 = vmul.f32 %v2526, 1.442695
      %v2645 = vpow.pop %v2644
      %v2646 = vmul.f32 %v2527, 1.442695
      %v2647 = vpow.pop %v2646
      %v2648 = vmul.f32 %v2528, 1.442695
      %v2649 = vpow.pop %v2648
      %v2650 = vmul.f32 %v2529, 1.442695
      %v2651 = vpow.pop %v2650
      %v2652 = vmul.f32 %v2530, 1.442695
      %v2653 = vpow.pop %v2652
      %v2654 = vmul.f32 %v2531, 1.442695
      %v2655 = vpow.pop %v2654
      %v2656 = vmul.f32 %v2532, 1.442695
      %v2657 = vpow.pop %v2656
      %v2658 = vmul.f32 %v2533, 1.442695
      %v2659 = vpow.pop %v2658
      %v2660 = vmul.f32 %v2534, 1.442695
      %v2661 = vpow.pop %v2660
      %v2662 = vmul.f32 %v2535, 1.442695
      %v2663 = vpow.pop %v2662
      %v2664 = vadd.f32 %v2537, %v2539
      %2665 = vadd.xlane.f32.xlu0 %v2664
      %v2666 = vpop.xlane.xlu0 %2665
      %v2667 = vadd.f32 %v2541, %v2543
      %2668 = vadd.xlane.f32.xlu0 %v2667
      %v2669 = vpop.xlane.xlu0 %2668
      %v2670 = vadd.f32 %v2545, %v2547
      %2671 = vadd.xlane.f32.xlu0 %v2670
      %v2672 = vpop.xlane.xlu0 %2671
      %v2673 = vadd.f32 %v2549, %v2551
      %2674 = vadd.xlane.f32.xlu0 %v2673
      %v2675 = vpop.xlane.xlu0 %2674
      %v2676 = vadd.f32 %v2553, %v2555
      %2677 = vadd.xlane.f32.xlu0 %v2676
      %v2678 = vpop.xlane.xlu0 %2677
      %v2679 = vadd.f32 %v2557, %v2559
      %2680 = vadd.xlane.f32.xlu0 %v2679
      %v2681 = vpop.xlane.xlu0 %2680
      %v2682 = vadd.f32 %v2561, %v2563
      %2683 = vadd.xlane.f32.xlu0 %v2682
      %v2684 = vpop.xlane.xlu0 %2683
      %v2685 = vadd.f32 %v2565, %v2567
      %2686 = vadd.xlane.f32.xlu0 %v2685
      %v2687 = vpop.xlane.xlu0 %2686
      %v2688 = vadd.f32 %v2569, %v2571
      %2689 = vadd.xlane.f32.xlu0 %v2688
      %v2690 = vpop.xlane.xlu0 %2689
      %v2691 = vadd.f32 %v2573, %v2575
      %2692 = vadd.xlane.f32.xlu0 %v2691
      %v2693 = vpop.xlane.xlu0 %2692
      %v2694 = vadd.f32 %v2577, %v2579
      %2695 = vadd.xlane.f32.xlu0 %v2694
      %v2696 = vpop.xlane.xlu0 %2695
      %v2697 = vadd.f32 %v2581, %v2583
      %2698 = vadd.xlane.f32.xlu0 %v2697
      %v2699 = vpop.xlane.xlu0 %2698
      %v2700 = vadd.f32 %v2585, %v2587
      %2701 = vadd.xlane.f32.xlu0 %v2700
      %v2702 = vpop.xlane.xlu0 %2701
      %v2703 = vadd.f32 %v2589, %v2591
      %2704 = vadd.xlane.f32.xlu0 %v2703
      %v2705 = vpop.xlane.xlu0 %2704
      %v2706 = vadd.f32 %v2593, %v2595
      %2707 = vadd.xlane.f32.xlu0 %v2706
      %v2708 = vpop.xlane.xlu0 %2707
      %v2709 = vadd.f32 %v2597, %v2599
      %2710 = vadd.xlane.f32.xlu0 %v2709
      %v2711 = vpop.xlane.xlu0 %2710
      %v2712 = vadd.f32 %v2601, %v2603
      %2713 = vadd.xlane.f32.xlu0 %v2712
      %v2714 = vpop.xlane.xlu0 %2713
      %v2715 = vadd.f32 %v2605, %v2607
      %2716 = vadd.xlane.f32.xlu0 %v2715
      %v2717 = vpop.xlane.xlu0 %2716
      %v2718 = vadd.f32 %v2609, %v2611
      %2719 = vadd.xlane.f32.xlu0 %v2718
      %v2720 = vpop.xlane.xlu0 %2719
      %v2721 = vadd.f32 %v2613, %v2615
      %2722 = vadd.xlane.f32.xlu0 %v2721
      %v2723 = vpop.xlane.xlu0 %2722
      %v2724 = vadd.f32 %v2617, %v2619
      %2725 = vadd.xlane.f32.xlu0 %v2724
      %v2726 = vpop.xlane.xlu0 %2725
      %v2727 = vadd.f32 %v2621, %v2623
      %2728 = vadd.xlane.f32.xlu0 %v2727
      %v2729 = vpop.xlane.xlu0 %2728
      %v2730 = vadd.f32 %v2625, %v2627
      %2731 = vadd.xlane.f32.xlu0 %v2730
      %v2732 = vpop.xlane.xlu0 %2731
      %v2733 = vadd.f32 %v2629, %v2631
      %2734 = vadd.xlane.f32.xlu0 %v2733
      %v2735 = vpop.xlane.xlu0 %2734
      %v2736 = vadd.f32 %v2633, %v2635
      %2737 = vadd.xlane.f32.xlu0 %v2736
      %v2738 = vpop.xlane.xlu0 %2737
      %v2739 = vadd.f32 %v2637, %v2639
      %2740 = vadd.xlane.f32.xlu0 %v2739
      %v2741 = vpop.xlane.xlu0 %2740
      %v2742 = vadd.f32 %v2641, %v2643
      %2743 = vadd.xlane.f32.xlu0 %v2742
      %v2744 = vpop.xlane.xlu0 %2743
      %v2745 = vadd.f32 %v2645, %v2647
      %2746 = vadd.xlane.f32.xlu0 %v2745
      %v2747 = vpop.xlane.xlu0 %2746
      %v2748 = vadd.f32 %v2649, %v2651
      %2749 = vadd.xlane.f32.xlu0 %v2748
      %v2750 = vpop.xlane.xlu0 %2749
      %v2751 = vadd.f32 %v2653, %v2655
      %2752 = vadd.xlane.f32.xlu0 %v2751
      %v2753 = vpop.xlane.xlu0 %2752
      %v2754 = vadd.f32 %v2657, %v2659
      %2755 = vadd.xlane.f32.xlu0 %v2754
      %v2756 = vpop.xlane.xlu0 %2755
      %v2757 = vadd.f32 %v2661, %v2663
      %2758 = vadd.xlane.f32.xlu0 %v2757
      %v2759 = vpop.xlane.xlu0 %2758
      %v2760 = vrcp.pop %v2666
      %v2761 = vrcp.pop %v2669
      %v2762 = vrcp.pop %v2672
      %v2763 = vrcp.pop %v2675
      %v2764 = vrcp.pop %v2678
      %v2765 = vrcp.pop %v2681
      %v2766 = vrcp.pop %v2684
      %v2767 = vrcp.pop %v2687
      %v2768 = vrcp.pop %v2690
      %v2769 = vrcp.pop %v2693
      %v2770 = vrcp.pop %v2696
      %v2771 = vrcp.pop %v2699
      %v2772 = vrcp.pop %v2702
      %v2773 = vrcp.pop %v2705
      %v2774 = vrcp.pop %v2708
      %v2775 = vrcp.pop %v2711
      %v2776 = vrcp.pop %v2714
      %v2777 = vrcp.pop %v2717
      %v2778 = vrcp.pop %v2720
      %v2779 = vrcp.pop %v2723
      %v2780 = vrcp.pop %v2726
      %v2781 = vrcp.pop %v2729
      %v2782 = vrcp.pop %v2732
      %v2783 = vrcp.pop %v2735
      %v2784 = vrcp.pop %v2738
      %v2785 = vrcp.pop %v2741
      %v2786 = vrcp.pop %v2744
      %v2787 = vrcp.pop %v2747
      %v2788 = vrcp.pop %v2750
      %v2789 = vrcp.pop %v2753
      %v2790 = vrcp.pop %v2756
      %v2791 = vrcp.pop %v2759
      %v2792 = vmul.f32 %v2537, %v2760
      %v2793 = vmul.f32 %v2539, %v2760
      %v2794 = vmul.f32 %v2541, %v2761
      %v2795 = vmul.f32 %v2543, %v2761
      %v2796 = vmul.f32 %v2545, %v2762
      %v2797 = vmul.f32 %v2547, %v2762
      %v2798 = vmul.f32 %v2549, %v2763
      %v2799 = vmul.f32 %v2551, %v2763
      %v2800 = vmul.f32 %v2553, %v2764
      %v2801 = vmul.f32 %v2555, %v2764
      %v2802 = vmul.f32 %v2557, %v2765
      %v2803 = vmul.f32 %v2559, %v2765
      %v2804 = vmul.f32 %v2561, %v2766
      %v2805 = vmul.f32 %v2563, %v2766
      %v2806 = vmul.f32 %v2565, %v2767
      %v2807 = vmul.f32 %v2567, %v2767
      %v2808 = vmul.f32 %v2569, %v2768
      %v2809 = vmul.f32 %v2571, %v2768
      %v2810 = vmul.f32 %v2573, %v2769
      %v2811 = vmul.f32 %v2575, %v2769
      %v2812 = vmul.f32 %v2577, %v2770
      %v2813 = vmul.f32 %v2579, %v2770
      %v2814 = vmul.f32 %v2581, %v2771
      %v2815 = vmul.f32 %v2583, %v2771
      %v2816 = vmul.f32 %v2585, %v2772
      %v2817 = vmul.f32 %v2587, %v2772
      %v2818 = vmul.f32 %v2589, %v2773
      %v2819 = vmul.f32 %v2591, %v2773
      %v2820 = vmul.f32 %v2593, %v2774
      %v2821 = vmul.f32 %v2595, %v2774
      %v2822 = vmul.f32 %v2597, %v2775
      %v2823 = vmul.f32 %v2599, %v2775
      %v2824 = vmul.f32 %v2601, %v2776
      %v2825 = vmul.f32 %v2603, %v2776
      %v2826 = vmul.f32 %v2605, %v2777
      %v2827 = vmul.f32 %v2607, %v2777
      %v2828 = vmul.f32 %v2609, %v2778
      %v2829 = vmul.f32 %v2611, %v2778
      %v2830 = vmul.f32 %v2613, %v2779
      %v2831 = vmul.f32 %v2615, %v2779
      %v2832 = vmul.f32 %v2617, %v2780
      %v2833 = vmul.f32 %v2619, %v2780
      %v2834 = vmul.f32 %v2621, %v2781
      %v2835 = vmul.f32 %v2623, %v2781
      %v2836 = vmul.f32 %v2625, %v2782
      %v2837 = vmul.f32 %v2627, %v2782
      %v2838 = vmul.f32 %v2629, %v2783
      %v2839 = vmul.f32 %v2631, %v2783
      %v2840 = vmul.f32 %v2633, %v2784
      %v2841 = vmul.f32 %v2635, %v2784
      %v2842 = vmul.f32 %v2637, %v2785
      %v2843 = vmul.f32 %v2639, %v2785
      %v2844 = vmul.f32 %v2641, %v2786
      %v2845 = vmul.f32 %v2643, %v2786
      %v2846 = vmul.f32 %v2645, %v2787
      %v2847 = vmul.f32 %v2647, %v2787
      %v2848 = vmul.f32 %v2649, %v2788
      %v2849 = vmul.f32 %v2651, %v2788
      %v2850 = vmul.f32 %v2653, %v2789
      %v2851 = vmul.f32 %v2655, %v2789
      %v2852 = vmul.f32 %v2657, %v2790
      %v2853 = vmul.f32 %v2659, %v2790
      %v2854 = vmul.f32 %v2661, %v2791
      %v2855 = vmul.f32 %v2663, %v2791
      %2856 = vmatprep.subr.bf16.mxu0 %v2133
      %2857 = vmatpush1.bf16.msra.mxu0 %v2132
      %2858 = vmatprep.subr.bf16.mxu0 0
      %2859 = vmatpush1.bf16.msra.mxu0 0
      %2860 = vmatprep.subr.bf16.mxu0 0
      %2861 = vmatpush1.bf16.msra.mxu0 0
      %2862 = vmatprep.subr.bf16.mxu0 0
      %2863 = vmatpush1.bf16.msra.mxu0 0
      %2864 = vmatprep.subr.bf16.mxu0 0
      %2865 = vmatpush1.bf16.msra.mxu0 0
      %2866 = vmatprep.subr.bf16.mxu0 0
      %2867 = vmatpush1.bf16.msra.mxu0 0
      %2868 = vmatprep.subr.bf16.mxu0 0
      %2869 = vmatpush1.bf16.msra.mxu0 0
      %2870 = vmatprep.subr.bf16.mxu0 0
      %2871 = vmatpush1.bf16.msra.mxu0 0
      %2872 = vmatprep.subr.bf16.mxu0 0
      %2873 = vmatpush1.bf16.msra.mxu0 0
      %2874 = vmatprep.subr.bf16.mxu0 0
      %2875 = vmatpush1.bf16.msra.mxu0 0
      %2876 = vmatprep.subr.bf16.mxu0 0
      %2877 = vmatpush1.bf16.msra.mxu0 0
      %2878 = vmatprep.subr.bf16.mxu0 0
      %2879 = vmatpush1.bf16.msra.mxu0 0
      %2880 = vmatprep.subr.bf16.mxu0 0
      %2881 = vmatpush1.bf16.msra.mxu0 0
      %2882 = vmatprep.subr.bf16.mxu0 0
      %2883 = vmatpush1.bf16.msra.mxu0 0
      %2884 = vmatprep.subr.bf16.mxu0 0
      %2885 = vmatpush1.bf16.msra.mxu0 0
      %2886 = vmatprep.subr.bf16.mxu0 0
      %2887 = vmatpush1.bf16.msra.mxu0 0
      %2888 = vmatprep.mubr.bf16.mxu0 0
      %2889 = vmatmul.mubr.bf16.gmra.mrb[0].mxu0 %v2136
      %v2890 = vpop.f32.mrb[0].mxu0
      %v2891 = vadd.f32 0.0, %v2890
      %v2892 = vpop.f32.mrb[0].mxu0
      %v2893 = vadd.f32 0.0, %v2892
      %v2894 = vpop.f32.mrb[0].mxu0
      %v2895 = vadd.f32 0.0, %v2894
      %v2896 = vpop.f32.mrb[0].mxu0
      %v2897 = vadd.f32 0.0, %v2896
      %2898 = vmatprep.mubr.bf16.mxu0 0
      %2899 = vmatmul.mubr.bf16.gmra.mrb[0].mxu0 %v2139
      %v2900 = vpop.f32.mrb[0].mxu0
      %v2901 = vadd.f32 0.0, %v2900
      %v2902 = vpop.f32.mrb[0].mxu0
      %v2903 = vadd.f32 0.0, %v2902
      %v2904 = vpop.f32.mrb[0].mxu0
      %v2905 = vadd.f32 0.0, %v2904
      %v2906 = vpop.f32.mrb[0].mxu0
      %v2907 = vadd.f32 0.0, %v2906
      %2908 = vmatprep.mubr.bf16.mxu0 0
      %2909 = vmatmul.mubr.bf16.gmra.mrb[0].mxu0 %v2142
      %v2910 = vpop.f32.mrb[0].mxu0
      %v2911 = vadd.f32 0.0, %v2910
      %v2912 = vpop.f32.mrb[0].mxu0
      %v2913 = vadd.f32 0.0, %v2912
      %v2914 = vpop.f32.mrb[0].mxu0
      %v2915 = vadd.f32 0.0, %v2914
      %v2916 = vpop.f32.mrb[0].mxu0
      %v2917 = vadd.f32 0.0, %v2916
      %2918 = vmatprep.mubr.bf16.mxu0 0
      %2919 = vmatmul.mubr.bf16.gmra.mrb[0].mxu0 %v2145
      %v2920 = vpop.f32.mrb[0].mxu0
      %v2921 = vadd.f32 0.0, %v2920
      %v2922 = vpop.f32.mrb[0].mxu0
      %v2923 = vadd.f32 0.0, %v2922
      %v2924 = vpop.f32.mrb[0].mxu0
      %v2925 = vadd.f32 0.0, %v2924
      %v2926 = vpop.f32.mrb[0].mxu0
      %v2927 = vadd.f32 0.0, %v2926
      %2928 = vmatprep.mubr.bf16.mxu0 0
      %2929 = vmatmul.mubr.bf16.gmra.mrb[0].mxu0 %v2148
      %v2930 = vpop.f32.mrb[0].mxu0
      %v2931 = vadd.f32 0.0, %v2930
      %v2932 = vpop.f32.mrb[0].mxu0
      %v2933 = vadd.f32 0.0, %v2932
      %v2934 = vpop.f32.mrb[0].mxu0
      %v2935 = vadd.f32 0.0, %v2934
      %v2936 = vpop.f32.mrb[0].mxu0
      %v2937 = vadd.f32 0.0, %v2936
      %2938 = vmatprep.mubr.bf16.mxu0 0
      %2939 = vmatmul.mubr.bf16.gmra.mrb[0].mxu0 %v2151
      %v2940 = vpop.f32.mrb[0].mxu0
      %v2941 = vadd.f32 0.0, %v2940
      %v2942 = vpop.f32.mrb[0].mxu0
      %v2943 = vadd.f32 0.0, %v2942
      %v2944 = vpop.f32.mrb[0].mxu0
      %v2945 = vadd.f32 0.0, %v2944
      %v2946 = vpop.f32.mrb[0].mxu0
      %v2947 = vadd.f32 0.0, %v2946
      %2948 = vmatprep.mubr.bf16.mxu0 0
      %2949 = vmatmul.mubr.bf16.gmra.mrb[0].mxu0 %v2154
      %v2950 = vpop.f32.mrb[0].mxu0
      %v2951 = vadd.f32 0.0, %v2950
      %v2952 = vpop.f32.mrb[0].mxu0
      %v2953 = vadd.f32 0.0, %v2952
      %v2954 = vpop.f32.mrb[0].mxu0
      %v2955 = vadd.f32 0.0, %v2954
      %v2956 = vpop.f32.mrb[0].mxu0
      %v2957 = vadd.f32 0.0, %v2956
      %2958 = vmatprep.mubr.bf16.mxu0 0
      %2959 = vmatmul.mubr.bf16.gmra.mrb[0].mxu0 %v2157
      %v2960 = vpop.f32.mrb[0].mxu0
      %v2961 = vadd.f32 0.0, %v2960
      %v2962 = vpop.f32.mrb[0].mxu0
      %v2963 = vadd.f32 0.0, %v2962
      %v2964 = vpop.f32.mrb[0].mxu0
      %v2965 = vadd.f32 0.0, %v2964
      %v2966 = vpop.f32.mrb[0].mxu0
      %v2967 = vadd.f32 0.0, %v2966
      %2968 = vmatprep.mubr.bf16.mxu0 0
      %2969 = vmatmul.mubr.bf16.gmra.mrb[0].mxu0 %v2160
      %v2970 = vpop.f32.mrb[0].mxu0
      %v2971 = vadd.f32 0.0, %v2970
      %v2972 = vpop.f32.mrb[0].mxu0
      %v2973 = vadd.f32 0.0, %v2972
      %v2974 = vpop.f32.mrb[0].mxu0
      %v2975 = vadd.f32 0.0, %v2974
      %v2976 = vpop.f32.mrb[0].mxu0
      %v2977 = vadd.f32 0.0, %v2976
      %2978 = vmatprep.mubr.bf16.mxu0 0
      %2979 = vmatmul.mubr.bf16.gmra.mrb[0].mxu0 %v2163
      %v2980 = vpop.f32.mrb[0].mxu0
      %v2981 = vadd.f32 0.0, %v2980
      %v2982 = vpop.f32.mrb[0].mxu0
      %v2983 = vadd.f32 0.0, %v2982
      %v2984 = vpop.f32.mrb[0].mxu0
      %v2985 = vadd.f32 0.0, %v2984
      %v2986 = vpop.f32.mrb[0].mxu0
      %v2987 = vadd.f32 0.0, %v2986
      %2988 = vmatprep.mubr.bf16.mxu0 0
      %2989 = vmatmul.mubr.bf16.gmra.mrb[0].mxu0 %v2166
      %v2990 = vpop.f32.mrb[0].mxu0
      %v2991 = vadd.f32 0.0, %v2990
      %v2992 = vpop.f32.mrb[0].mxu0
      %v2993 = vadd.f32 0.0, %v2992
      %v2994 = vpop.f32.mrb[0].mxu0
      %v2995 = vadd.f32 0.0, %v2994
      %v2996 = vpop.f32.mrb[0].mxu0
      %v2997 = vadd.f32 0.0, %v2996
      %2998 = vmatprep.mubr.bf16.mxu0 0
      %2999 = vmatmul.mubr.bf16.gmra.mrb[0].mxu0 %v2169
      %v3000 = vpop.f32.mrb[0].mxu0
      %v3001 = vadd.f32 0.0, %v3000
      %v3002 = vpop.f32.mrb[0].mxu0
      %v3003 = vadd.f32 0.0, %v3002
      %v3004 = vpop.f32.mrb[0].mxu0
      %v3005 = vadd.f32 0.0, %v3004
      %v3006 = vpop.f32.mrb[0].mxu0
      %v3007 = vadd.f32 0.0, %v3006
      %3008 = vmatprep.mubr.bf16.mxu0 0
      %3009 = vmatmul.mubr.bf16.gmra.mrb[0].mxu0 %v2172
      %v3010 = vpop.f32.mrb[0].mxu0
      %v3011 = vadd.f32 0.0, %v3010
      %v3012 = vpop.f32.mrb[0].mxu0
      %v3013 = vadd.f32 0.0, %v3012
      %v3014 = vpop.f32.mrb[0].mxu0
      %v3015 = vadd.f32 0.0, %v3014
      %v3016 = vpop.f32.mrb[0].mxu0
      %v3017 = vadd.f32 0.0, %v3016
      %3018 = vmatprep.mubr.bf16.mxu0 0
      %3019 = vmatmul.mubr.bf16.gmra.mrb[0].mxu0 %v2175
      %v3020 = vpop.f32.mrb[0].mxu0
      %v3021 = vadd.f32 0.0, %v3020
      %v3022 = vpop.f32.mrb[0].mxu0
      %v3023 = vadd.f32 0.0, %v3022
      %v3024 = vpop.f32.mrb[0].mxu0
      %v3025 = vadd.f32 0.0, %v3024
      %v3026 = vpop.f32.mrb[0].mxu0
      %v3027 = vadd.f32 0.0, %v3026
      %3028 = vmatprep.mubr.bf16.mxu0 0
      %3029 = vmatmul.mubr.bf16.gmra.mrb[0].mxu0 %v2178
      %v3030 = vpop.f32.mrb[0].mxu0
      %v3031 = vadd.f32 0.0, %v3030
      %v3032 = vpop.f32.mrb[0].mxu0
      %v3033 = vadd.f32 0.0, %v3032
      %v3034 = vpop.f32.mrb[0].mxu0
      %v3035 = vadd.f32 0.0, %v3034
      %v3036 = vpop.f32.mrb[0].mxu0
      %v3037 = vadd.f32 0.0, %v3036
      %3038 = vmatprep.mubr.bf16.mxu0 0
      %3039 = vmatmul.mubr.bf16.gmra.mrb[0].mxu0 %v2181
      %v3040 = vpop.f32.mrb[0].mxu0
      %v3041 = vadd.f32 0.0, %v3040
      %v3042 = vpop.f32.mrb[0].mxu0
      %v3043 = vadd.f32 0.0, %v3042
      %v3044 = vpop.f32.mrb[0].mxu0
      %v3045 = vadd.f32 0.0, %v3044
      %v3046 = vpop.f32.mrb[0].mxu0
      %v3047 = vadd.f32 0.0, %v3046
      %3048 = vdwg.mxu0
      %v3049 = vmax.f32 %v2891, %v2893
      %3050 = vmax.xlane.f32.xlu0 %v3049
      %v3051 = vpop.xlane.xlu0 %3050
      %v3052 = vmax.f32 %v2895, %v2897
      %3053 = vmax.xlane.f32.xlu0 %v3052
      %v3054 = vpop.xlane.xlu0 %3053
      %v3055 = vmax.f32 %v2901, %v2903
      %3056 = vmax.xlane.f32.xlu0 %v3055
      %v3057 = vpop.xlane.xlu0 %3056
      %v3058 = vmax.f32 %v2905, %v2907
      %3059 = vmax.xlane.f32.xlu0 %v3058
      %v3060 = vpop.xlane.xlu0 %3059
      %v3061 = vmax.f32 %v2911, %v2913
      %3062 = vmax.xlane.f32.xlu0 %v3061
      %v3063 = vpop.xlane.xlu0 %3062
      %v3064 = vmax.f32 %v2915, %v2917
      %3065 = vmax.xlane.f32.xlu0 %v3064
      %v3066 = vpop.xlane.xlu0 %3065
      %v3067 = vmax.f32 %v2921, %v2923
      %3068 = vmax.xlane.f32.xlu0 %v3067
      %v3069 = vpop.xlane.xlu0 %3068
      %v3070 = vmax.f32 %v2925, %v2927
      %3071 = vmax.xlane.f32.xlu0 %v3070
      %v3072 = vpop.xlane.xlu0 %3071
      %v3073 = vmax.f32 %v2931, %v2933
      %3074 = vmax.xlane.f32.xlu0 %v3073
      %v3075 = vpop.xlane.xlu0 %3074
      %v3076 = vmax.f32 %v2935, %v2937
      %3077 = vmax.xlane.f32.xlu0 %v3076
      %v3078 = vpop.xlane.xlu0 %3077
      %v3079 = vmax.f32 %v2941, %v2943
      %3080 = vmax.xlane.f32.xlu0 %v3079
      %v3081 = vpop.xlane.xlu0 %3080
      %v3082 = vmax.f32 %v2945, %v2947
      %3083 = vmax.xlane.f32.xlu0 %v3082
      %v3084 = vpop.xlane.xlu0 %3083
      %v3085 = vmax.f32 %v2951, %v2953
      %3086 = vmax.xlane.f32.xlu0 %v3085
      %v3087 = vpop.xlane.xlu0 %3086
      %v3088 = vmax.f32 %v2955, %v2957
      %3089 = vmax.xlane.f32.xlu0 %v3088
      %v3090 = vpop.xlane.xlu0 %3089
      %v3091 = vmax.f32 %v2961, %v2963
      %3092 = vmax.xlane.f32.xlu0 %v3091
      %v3093 = vpop.xlane.xlu0 %3092
      %v3094 = vmax.f32 %v2965, %v2967
      %3095 = vmax.xlane.f32.xlu0 %v3094
      %v3096 = vpop.xlane.xlu0 %3095
      %v3097 = vmax.f32 %v2971, %v2973
      %3098 = vmax.xlane.f32.xlu0 %v3097
      %v3099 = vpop.xlane.xlu0 %3098
      %v3100 = vmax.f32 %v2975, %v2977
      %3101 = vmax.xlane.f32.xlu0 %v3100
      %v3102 = vpop.xlane.xlu0 %3101
      %v3103 = vmax.f32 %v2981, %v2983
      %3104 = vmax.xlane.f32.xlu0 %v3103
      %v3105 = vpop.xlane.xlu0 %3104
      %v3106 = vmax.f32 %v2985, %v2987
      %3107 = vmax.xlane.f32.xlu0 %v3106
      %v3108 = vpop.xlane.xlu0 %3107
      %v3109 = vmax.f32 %v2991, %v2993
      %3110 = vmax.xlane.f32.xlu0 %v3109
      %v3111 = vpop.xlane.xlu0 %3110
      %v3112 = vmax.f32 %v2995, %v2997
      %3113 = vmax.xlane.f32.xlu0 %v3112
      %v3114 = vpop.xlane.xlu0 %3113
      %v3115 = vmax.f32 %v3001, %v3003
      %3116 = vmax.xlane.f32.xlu0 %v3115
      %v3117 = vpop.xlane.xlu0 %3116
      %v3118 = vmax.f32 %v3005, %v3007
      %3119 = vmax.xlane.f32.xlu0 %v3118
      %v3120 = vpop.xlane.xlu0 %3119
      %v3121 = vmax.f32 %v3011, %v3013
      %3122 = vmax.xlane.f32.xlu0 %v3121
      %v3123 = vpop.xlane.xlu0 %3122
      %v3124 = vmax.f32 %v3015, %v3017
      %3125 = vmax.xlane.f32.xlu0 %v3124
      %v3126 = vpop.xlane.xlu0 %3125
      %v3127 = vmax.f32 %v3021, %v3023
      %3128 = vmax.xlane.f32.xlu0 %v3127
      %v3129 = vpop.xlane.xlu0 %3128
      %v3130 = vmax.f32 %v3025, %v3027
      %3131 = vmax.xlane.f32.xlu0 %v3130
      %v3132 = vpop.xlane.xlu0 %3131
      %v3133 = vmax.f32 %v3031, %v3033
      %3134 = vmax.xlane.f32.xlu0 %v3133
      %v3135 = vpop.xlane.xlu0 %3134
      %v3136 = vmax.f32 %v3035, %v3037
      %3137 = vmax.xlane.f32.xlu0 %v3136
      %v3138 = vpop.xlane.xlu0 %3137
      %v3139 = vmax.f32 %v3041, %v3043
      %3140 = vmax.xlane.f32.xlu0 %v3139
      %v3141 = vpop.xlane.xlu0 %3140
      %v3142 = vmax.f32 %v3045, %v3047
      %3143 = vmax.xlane.f32.xlu0 %v3142
      %v3144 = vpop.xlane.xlu0 %3143
      %v3145 = vsub.f32 %v2891, %v3051
      %v3146 = vsub.f32 %v2893, %v3051
      %v3147 = vsub.f32 %v2895, %v3054
      %v3148 = vsub.f32 %v2897, %v3054
      %v3149 = vsub.f32 %v2901, %v3057
      %v3150 = vsub.f32 %v2903, %v3057
      %v3151 = vsub.f32 %v2905, %v3060
      %v3152 = vsub.f32 %v2907, %v3060
      %v3153 = vsub.f32 %v2911, %v3063
      %v3154 = vsub.f32 %v2913, %v3063
      %v3155 = vsub.f32 %v2915, %v3066
      %v3156 = vsub.f32 %v2917, %v3066
      %v3157 = vsub.f32 %v2921, %v3069
      %v3158 = vsub.f32 %v2923, %v3069
      %v3159 = vsub.f32 %v2925, %v3072
      %v3160 = vsub.f32 %v2927, %v3072
      %v3161 = vsub.f32 %v2931, %v3075
      %v3162 = vsub.f32 %v2933, %v3075
      %v3163 = vsub.f32 %v2935, %v3078
      %v3164 = vsub.f32 %v2937, %v3078
      %v3165 = vsub.f32 %v2941, %v3081
      %v3166 = vsub.f32 %v2943, %v3081
      %v3167 = vsub.f32 %v2945, %v3084
      %v3168 = vsub.f32 %v2947, %v3084
      %v3169 = vsub.f32 %v2951, %v3087
      %v3170 = vsub.f32 %v2953, %v3087
      %v3171 = vsub.f32 %v2955, %v3090
      %v3172 = vsub.f32 %v2957, %v3090
      %v3173 = vsub.f32 %v2961, %v3093
      %v3174 = vsub.f32 %v2963, %v3093
      %v3175 = vsub.f32 %v2965, %v3096
      %v3176 = vsub.f32 %v2967, %v3096
      %v3177 = vsub.f32 %v2971, %v3099
      %v3178 = vsub.f32 %v2973, %v3099
      %v3179 = vsub.f32 %v2975, %v3102
      %v3180 = vsub.f32 %v2977, %v3102
      %v3181 = vsub.f32 %v2981, %v3105
      %v3182 = vsub.f32 %v2983, %v3105
      %v3183 = vsub.f32 %v2985, %v3108
      %v3184 = vsub.f32 %v2987, %v3108
      %v3185 = vsub.f32 %v2991, %v3111
      %v3186 = vsub.f32 %v2993, %v3111
      %v3187 = vsub.f32 %v2995, %v3114
      %v3188 = vsub.f32 %v2997, %v3114
      %v3189 = vsub.f32 %v3001, %v3117
      %v3190 = vsub.f32 %v3003, %v3117
      %v3191 = vsub.f32 %v3005, %v3120
      %v3192 = vsub.f32 %v3007, %v3120
      %v3193 = vsub.f32 %v3011, %v3123
      %v3194 = vsub.f32 %v3013, %v3123
      %v3195 = vsub.f32 %v3015, %v3126
      %v3196 = vsub.f32 %v3017, %v3126
      %v3197 = vsub.f32 %v3021, %v3129
      %v3198 = vsub.f32 %v3023, %v3129
      %v3199 = vsub.f32 %v3025, %v3132
      %v3200 = vsub.f32 %v3027, %v3132
      %v3201 = vsub.f32 %v3031, %v3135
      %v3202 = vsub.f32 %v3033, %v3135
      %v3203 = vsub.f32 %v3035, %v3138
      %v3204 = vsub.f32 %v3037, %v3138
      %v3205 = vsub.f32 %v3041, %v3141
      %v3206 = vsub.f32 %v3043, %v3141
      %v3207 = vsub.f32 %v3045, %v3144
      %v3208 = vsub.f32 %v3047, %v3144
      %v3209 = vmul.f32 %v3145, 1.442695
      %v3210 = vpow.pop %v3209
      %v3211 = vmul.f32 %v3146, 1.442695
      %v3212 = vpow.pop %v3211
      %v3213 = vmul.f32 %v3147, 1.442695
      %v3214 = vpow.pop %v3213
      %v3215 = vmul.f32 %v3148, 1.442695
      %v3216 = vpow.pop %v3215
      %v3217 = vmul.f32 %v3149, 1.442695
      %v3218 = vpow.pop %v3217
      %v3219 = vmul.f32 %v3150, 1.442695
      %v3220 = vpow.pop %v3219
      %v3221 = vmul.f32 %v3151, 1.442695
      %v3222 = vpow.pop %v3221
      %v3223 = vmul.f32 %v3152, 1.442695
      %v3224 = vpow.pop %v3223
      %v3225 = vmul.f32 %v3153, 1.442695
      %v3226 = vpow.pop %v3225
      %v3227 = vmul.f32 %v3154, 1.442695
      %v3228 = vpow.pop %v3227
      %v3229 = vmul.f32 %v3155, 1.442695
      %v3230 = vpow.pop %v3229
      %v3231 = vmul.f32 %v3156, 1.442695
      %v3232 = vpow.pop %v3231
      %v3233 = vmul.f32 %v3157, 1.442695
      %v3234 = vpow.pop %v3233
      %v3235 = vmul.f32 %v3158, 1.442695
      %v3236 = vpow.pop %v3235
      %v3237 = vmul.f32 %v3159, 1.442695
      %v3238 = vpow.pop %v3237
      %v3239 = vmul.f32 %v3160, 1.442695
      %v3240 = vpow.pop %v3239
      %v3241 = vmul.f32 %v3161, 1.442695
      %v3242 = vpow.pop %v3241
      %v3243 = vmul.f32 %v3162, 1.442695
      %v3244 = vpow.pop %v3243
      %v3245 = vmul.f32 %v3163, 1.442695
      %v3246 = vpow.pop %v3245
      %v3247 = vmul.f32 %v3164, 1.442695
      %v3248 = vpow.pop %v3247
      %v3249 = vmul.f32 %v3165, 1.442695
      %v3250 = vpow.pop %v3249
      %v3251 = vmul.f32 %v3166, 1.442695
      %v3252 = vpow.pop %v3251
      %v3253 = vmul.f32 %v3167, 1.442695
      %v3254 = vpow.pop %v3253
      %v3255 = vmul.f32 %v3168, 1.442695
      %v3256 = vpow.pop %v3255
      %v3257 = vmul.f32 %v3169, 1.442695
      %v3258 = vpow.pop %v3257
      %v3259 = vmul.f32 %v3170, 1.442695
      %v3260 = vpow.pop %v3259
      %v3261 = vmul.f32 %v3171, 1.442695
      %v3262 = vpow.pop %v3261
      %v3263 = vmul.f32 %v3172, 1.442695
      %v3264 = vpow.pop %v3263
      %v3265 = vmul.f32 %v3173, 1.442695
      %v3266 = vpow.pop %v3265
      %v3267 = vmul.f32 %v3174, 1.442695
      %v3268 = vpow.pop %v3267
      %v3269 = vmul.f32 %v3175, 1.442695
      %v3270 = vpow.pop %v3269
      %v3271 = vmul.f32 %v3176, 1.442695
      %v3272 = vpow.pop %v3271
      %v3273 = vmul.f32 %v3177, 1.442695
      %v3274 = vpow.pop %v3273
      %v3275 = vmul.f32 %v3178, 1.442695
      %v3276 = vpow.pop %v3275
      %v3277 = vmul.f32 %v3179, 1.442695
      %v3278 = vpow.pop %v3277
      %v3279 = vmul.f32 %v3180, 1.442695
      %v3280 = vpow.pop %v3279
      %v3281 = vmul.f32 %v3181, 1.442695
      %v3282 = vpow.pop %v3281
      %v3283 = vmul.f32 %v3182, 1.442695
      %v3284 = vpow.pop %v3283
      %v3285 = vmul.f32 %v3183, 1.442695
      %v3286 = vpow.pop %v3285
      %v3287 = vmul.f32 %v3184, 1.442695
      %v3288 = vpow.pop %v3287
      %v3289 = vmul.f32 %v3185, 1.442695
      %v3290 = vpow.pop %v3289
      %v3291 = vmul.f32 %v3186, 1.442695
      %v3292 = vpow.pop %v3291
      %v3293 = vmul.f32 %v3187, 1.442695
      %v3294 = vpow.pop %v3293
      %v3295 = vmul.f32 %v3188, 1.442695
      %v3296 = vpow.pop %v3295
      %v3297 = vmul.f32 %v3189, 1.442695
      %v3298 = vpow.pop %v3297
      %v3299 = vmul.f32 %v3190, 1.442695
      %v3300 = vpow.pop %v3299
      %v3301 = vmul.f32 %v3191, 1.442695
      %v3302 = vpow.pop %v3301
      %v3303 = vmul.f32 %v3192, 1.442695
      %v3304 = vpow.pop %v3303
      %v3305 = vmul.f32 %v3193, 1.442695
      %v3306 = vpow.pop %v3305
      %v3307 = vmul.f32 %v3194, 1.442695
      %v3308 = vpow.pop %v3307
      %v3309 = vmul.f32 %v3195, 1.442695
      %v3310 = vpow.pop %v3309
      %v3311 = vmul.f32 %v3196, 1.442695
      %v3312 = vpow.pop %v3311
      %v3313 = vmul.f32 %v3197, 1.442695
      %v3314 = vpow.pop %v3313
      %v3315 = vmul.f32 %v3198, 1.442695
      %v3316 = vpow.pop %v3315
      %v3317 = vmul.f32 %v3199, 1.442695
      %v3318 = vpow.pop %v3317
      %v3319 = vmul.f32 %v3200, 1.442695
      %v3320 = vpow.pop %v3319
      %v3321 = vmul.f32 %v3201, 1.442695
      %v3322 = vpow.pop %v3321
      %v3323 = vmul.f32 %v3202, 1.442695
      %v3324 = vpow.pop %v3323
      %v3325 = vmul.f32 %v3203, 1.442695
      %v3326 = vpow.pop %v3325
      %v3327 = vmul.f32 %v3204, 1.442695
      %v3328 = vpow.pop %v3327
      %v3329 = vmul.f32 %v3205, 1.442695
      %v3330 = vpow.pop %v3329
      %v3331 = vmul.f32 %v3206, 1.442695
      %v3332 = vpow.pop %v3331
      %v3333 = vmul.f32 %v3207, 1.442695
      %v3334 = vpow.pop %v3333
      %v3335 = vmul.f32 %v3208, 1.442695
      %v3336 = vpow.pop %v3335
      %v3337 = vadd.f32 %v3210, %v3212
      %3338 = vadd.xlane.f32.xlu0 %v3337
      %v3339 = vpop.xlane.xlu0 %3338
      %v3340 = vadd.f32 %v3214, %v3216
      %3341 = vadd.xlane.f32.xlu0 %v3340
      %v3342 = vpop.xlane.xlu0 %3341
      %v3343 = vadd.f32 %v3218, %v3220
      %3344 = vadd.xlane.f32.xlu0 %v3343
      %v3345 = vpop.xlane.xlu0 %3344
      %v3346 = vadd.f32 %v3222, %v3224
      %3347 = vadd.xlane.f32.xlu0 %v3346
      %v3348 = vpop.xlane.xlu0 %3347
      %v3349 = vadd.f32 %v3226, %v3228
      %3350 = vadd.xlane.f32.xlu0 %v3349
      %v3351 = vpop.xlane.xlu0 %3350
      %v3352 = vadd.f32 %v3230, %v3232
      %3353 = vadd.xlane.f32.xlu0 %v3352
      %v3354 = vpop.xlane.xlu0 %3353
      %v3355 = vadd.f32 %v3234, %v3236
      %3356 = vadd.xlane.f32.xlu0 %v3355
      %v3357 = vpop.xlane.xlu0 %3356
      %v3358 = vadd.f32 %v3238, %v3240
      %3359 = vadd.xlane.f32.xlu0 %v3358
      %v3360 = vpop.xlane.xlu0 %3359
      %v3361 = vadd.f32 %v3242, %v3244
      %3362 = vadd.xlane.f32.xlu0 %v3361
      %v3363 = vpop.xlane.xlu0 %3362
      %v3364 = vadd.f32 %v3246, %v3248
      %3365 = vadd.xlane.f32.xlu0 %v3364
      %v3366 = vpop.xlane.xlu0 %3365
      %v3367 = vadd.f32 %v3250, %v3252
      %3368 = vadd.xlane.f32.xlu0 %v3367
      %v3369 = vpop.xlane.xlu0 %3368
      %v3370 = vadd.f32 %v3254, %v3256
      %3371 = vadd.xlane.f32.xlu0 %v3370
      %v3372 = vpop.xlane.xlu0 %3371
      %v3373 = vadd.f32 %v3258, %v3260
      %3374 = vadd.xlane.f32.xlu0 %v3373
      %v3375 = vpop.xlane.xlu0 %3374
      %v3376 = vadd.f32 %v3262, %v3264
      %3377 = vadd.xlane.f32.xlu0 %v3376
      %v3378 = vpop.xlane.xlu0 %3377
      %v3379 = vadd.f32 %v3266, %v3268
      %3380 = vadd.xlane.f32.xlu0 %v3379
      %v3381 = vpop.xlane.xlu0 %3380
      %v3382 = vadd.f32 %v3270, %v3272
      %3383 = vadd.xlane.f32.xlu0 %v3382
      %v3384 = vpop.xlane.xlu0 %3383
      %v3385 = vadd.f32 %v3274, %v3276
      %3386 = vadd.xlane.f32.xlu0 %v3385
      %v3387 = vpop.xlane.xlu0 %3386
      %v3388 = vadd.f32 %v3278, %v3280
      %3389 = vadd.xlane.f32.xlu0 %v3388
      %v3390 = vpop.xlane.xlu0 %3389
      %v3391 = vadd.f32 %v3282, %v3284
      %3392 = vadd.xlane.f32.xlu0 %v3391
      %v3393 = vpop.xlane.xlu0 %3392
      %v3394 = vadd.f32 %v3286, %v3288
      %3395 = vadd.xlane.f32.xlu0 %v3394
      %v3396 = vpop.xlane.xlu0 %3395
      %v3397 = vadd.f32 %v3290, %v3292
      %3398 = vadd.xlane.f32.xlu0 %v3397
      %v3399 = vpop.xlane.xlu0 %3398
      %v3400 = vadd.f32 %v3294, %v3296
      %3401 = vadd.xlane.f32.xlu0 %v3400
      %v3402 = vpop.xlane.xlu0 %3401
      %v3403 = vadd.f32 %v3298, %v3300
      %3404 = vadd.xlane.f32.xlu0 %v3403
      %v3405 = vpop.xlane.xlu0 %3404
      %v3406 = vadd.f32 %v3302, %v3304
      %3407 = vadd.xlane.f32.xlu0 %v3406
      %v3408 = vpop.xlane.xlu0 %3407
      %v3409 = vadd.f32 %v3306, %v3308
      %3410 = vadd.xlane.f32.xlu0 %v3409
      %v3411 = vpop.xlane.xlu0 %3410
      %v3412 = vadd.f32 %v3310, %v3312
      %3413 = vadd.xlane.f32.xlu0 %v3412
      %v3414 = vpop.xlane.xlu0 %3413
      %v3415 = vadd.f32 %v3314, %v3316
      %3416 = vadd.xlane.f32.xlu0 %v3415
      %v3417 = vpop.xlane.xlu0 %3416
      %v3418 = vadd.f32 %v3318, %v3320
      %3419 = vadd.xlane.f32.xlu0 %v3418
      %v3420 = vpop.xlane.xlu0 %3419
      %v3421 = vadd.f32 %v3322, %v3324
      %3422 = vadd.xlane.f32.xlu0 %v3421
      %v3423 = vpop.xlane.xlu0 %3422
      %v3424 = vadd.f32 %v3326, %v3328
      %3425 = vadd.xlane.f32.xlu0 %v3424
      %v3426 = vpop.xlane.xlu0 %3425
      %v3427 = vadd.f32 %v3330, %v3332
      %3428 = vadd.xlane.f32.xlu0 %v3427
      %v3429 = vpop.xlane.xlu0 %3428
      %v3430 = vadd.f32 %v3334, %v3336
      %3431 = vadd.xlane.f32.xlu0 %v3430
      %v3432 = vpop.xlane.xlu0 %3431
      %v3433 = vrcp.pop %v3339
      %v3434 = vrcp.pop %v3342
      %v3435 = vrcp.pop %v3345
      %v3436 = vrcp.pop %v3348
      %v3437 = vrcp.pop %v3351
      %v3438 = vrcp.pop %v3354
      %v3439 = vrcp.pop %v3357
      %v3440 = vrcp.pop %v3360
      %v3441 = vrcp.pop %v3363
      %v3442 = vrcp.pop %v3366
      %v3443 = vrcp.pop %v3369
      %v3444 = vrcp.pop %v3372
      %v3445 = vrcp.pop %v3375
      %v3446 = vrcp.pop %v3378
      %v3447 = vrcp.pop %v3381
      %v3448 = vrcp.pop %v3384
      %v3449 = vrcp.pop %v3387
      %v3450 = vrcp.pop %v3390
      %v3451 = vrcp.pop %v3393
      %v3452 = vrcp.pop %v3396
      %v3453 = vrcp.pop %v3399
      %v3454 = vrcp.pop %v3402
      %v3455 = vrcp.pop %v3405
      %v3456 = vrcp.pop %v3408
      %v3457 = vrcp.pop %v3411
      %v3458 = vrcp.pop %v3414
      %v3459 = vrcp.pop %v3417
      %v3460 = vrcp.pop %v3420
      %v3461 = vrcp.pop %v3423
      %v3462 = vrcp.pop %v3426
      %v3463 = vrcp.pop %v3429
      %v3464 = vrcp.pop %v3432
      %v3465 = vmul.f32 %v3210, %v3433
      %v3466 = vmul.f32 %v3212, %v3433
      %v3467 = vmul.f32 %v3214, %v3434
      %v3468 = vmul.f32 %v3216, %v3434
      %v3469 = vmul.f32 %v3218, %v3435
      %v3470 = vmul.f32 %v3220, %v3435
      %v3471 = vmul.f32 %v3222, %v3436
      %v3472 = vmul.f32 %v3224, %v3436
      %v3473 = vmul.f32 %v3226, %v3437
      %v3474 = vmul.f32 %v3228, %v3437
      %v3475 = vmul.f32 %v3230, %v3438
      %v3476 = vmul.f32 %v3232, %v3438
      %v3477 = vmul.f32 %v3234, %v3439
      %v3478 = vmul.f32 %v3236, %v3439
      %v3479 = vmul.f32 %v3238, %v3440
      %v3480 = vmul.f32 %v3240, %v3440
      %v3481 = vmul.f32 %v3242, %v3441
      %v3482 = vmul.f32 %v3244, %v3441
      %v3483 = vmul.f32 %v3246, %v3442
      %v3484 = vmul.f32 %v3248, %v3442
      %v3485 = vmul.f32 %v3250, %v3443
      %v3486 = vmul.f32 %v3252, %v3443
      %v3487 = vmul.f32 %v3254, %v3444
      %v3488 = vmul.f32 %v3256, %v3444
      %v3489 = vmul.f32 %v3258, %v3445
      %v3490 = vmul.f32 %v3260, %v3445
      %v3491 = vmul.f32 %v3262, %v3446
      %v3492 = vmul.f32 %v3264, %v3446
      %v3493 = vmul.f32 %v3266, %v3447
      %v3494 = vmul.f32 %v3268, %v3447
      %v3495 = vmul.f32 %v3270, %v3448
      %v3496 = vmul.f32 %v3272, %v3448
      %v3497 = vmul.f32 %v3274, %v3449
      %v3498 = vmul.f32 %v3276, %v3449
      %v3499 = vmul.f32 %v3278, %v3450
      %v3500 = vmul.f32 %v3280, %v3450
      %v3501 = vmul.f32 %v3282, %v3451
      %v3502 = vmul.f32 %v3284, %v3451
      %v3503 = vmul.f32 %v3286, %v3452
      %v3504 = vmul.f32 %v3288, %v3452
      %v3505 = vmul.f32 %v3290, %v3453
      %v3506 = vmul.f32 %v3292, %v3453
      %v3507 = vmul.f32 %v3294, %v3454
      %v3508 = vmul.f32 %v3296, %v3454
      %v3509 = vmul.f32 %v3298, %v3455
      %v3510 = vmul.f32 %v3300, %v3455
      %v3511 = vmul.f32 %v3302, %v3456
      %v3512 = vmul.f32 %v3304, %v3456
      %v3513 = vmul.f32 %v3306, %v3457
      %v3514 = vmul.f32 %v3308, %v3457
      %v3515 = vmul.f32 %v3310, %v3458
      %v3516 = vmul.f32 %v3312, %v3458
      %v3517 = vmul.f32 %v3314, %v3459
      %v3518 = vmul.f32 %v3316, %v3459
      %v3519 = vmul.f32 %v3318, %v3460
      %v3520 = vmul.f32 %v3320, %v3460
      %v3521 = vmul.f32 %v3322, %v3461
      %v3522 = vmul.f32 %v3324, %v3461
      %v3523 = vmul.f32 %v3326, %v3462
      %v3524 = vmul.f32 %v3328, %v3462
      %v3525 = vmul.f32 %v3330, %v3463
      %v3526 = vmul.f32 %v3332, %v3463
      %v3527 = vmul.f32 %v3334, %v3464
      %v3528 = vmul.f32 %v3336, %v3464
      %v3529 = vpack.c.bf16 %v1907, %v1903
      %v3530 = vpack.c.bf16 %v1909, %v1905
      %v3531 = vpack.c.bf16 %v1917, %v1913
      %v3532 = vpack.c.bf16 %v1919, %v1915
      %v3533 = vpack.c.bf16 %v2794, %v2792
      %v3534 = vpack.c.bf16 %v2795, %v2793
      %v3535 = vpack.c.bf16 %v2798, %v2796
      %v3536 = vpack.c.bf16 %v2799, %v2797
      %v3537 = vpack.c.bf16 %v2802, %v2800
      %v3538 = vpack.c.bf16 %v2803, %v2801
      %v3539 = vpack.c.bf16 %v2806, %v2804
      %v3540 = vpack.c.bf16 %v2807, %v2805
      %v3541 = vpack.c.bf16 %v2810, %v2808
      %v3542 = vpack.c.bf16 %v2811, %v2809
      %v3543 = vpack.c.bf16 %v2814, %v2812
      %v3544 = vpack.c.bf16 %v2815, %v2813
      %v3545 = vpack.c.bf16 %v2818, %v2816
      %v3546 = vpack.c.bf16 %v2819, %v2817
      %v3547 = vpack.c.bf16 %v2822, %v2820
      %v3548 = vpack.c.bf16 %v2823, %v2821
      %v3549 = vpack.c.bf16 %v2826, %v2824
      %v3550 = vpack.c.bf16 %v2827, %v2825
      %v3551 = vpack.c.bf16 %v2830, %v2828
      %v3552 = vpack.c.bf16 %v2831, %v2829
      %v3553 = vpack.c.bf16 %v2834, %v2832
      %v3554 = vpack.c.bf16 %v2835, %v2833
      %v3555 = vpack.c.bf16 %v2838, %v2836
      %v3556 = vpack.c.bf16 %v2839, %v2837
      %v3557 = vpack.c.bf16 %v2842, %v2840
      %v3558 = vpack.c.bf16 %v2843, %v2841
      %v3559 = vpack.c.bf16 %v2846, %v2844
      %v3560 = vpack.c.bf16 %v2847, %v2845
      %v3561 = vpack.c.bf16 %v2850, %v2848
      %v3562 = vpack.c.bf16 %v2851, %v2849
      %v3563 = vpack.c.bf16 %v2854, %v2852
      %v3564 = vpack.c.bf16 %v2855, %v2853
      %3565 = vmatprep.subr.bf16.mxu0 %v3534
      %3566 = vmatpush1.bf16.xpose.msra.mxu0 %v3533
      %3567 = vmatprep.subr.bf16.mxu0 %v3536
      %3568 = vmatpush1.bf16.xpose.msra.mxu0 %v3535
      %3569 = vmatprep.subr.bf16.mxu0 %v3538
      %3570 = vmatpush1.bf16.xpose.msra.mxu0 %v3537
      %3571 = vmatprep.subr.bf16.mxu0 %v3540
      %3572 = vmatpush1.bf16.xpose.msra.mxu0 %v3539
      %3573 = vmatprep.subr.bf16.mxu0 %v3542
      %3574 = vmatpush1.bf16.xpose.msra.mxu0 %v3541
      %3575 = vmatprep.subr.bf16.mxu0 %v3544
      %3576 = vmatpush1.bf16.xpose.msra.mxu0 %v3543
      %3577 = vmatprep.subr.bf16.mxu0 %v3546
      %3578 = vmatpush1.bf16.xpose.msra.mxu0 %v3545
      %3579 = vmatprep.subr.bf16.mxu0 %v3548
      %3580 = vmatpush1.bf16.xpose.msra.mxu0 %v3547
      %3581 = vmatprep.subr.bf16.mxu0 %v3550
      %3582 = vmatpush1.bf16.xpose.msra.mxu0 %v3549
      %3583 = vmatprep.subr.bf16.mxu0 %v3552
      %3584 = vmatpush1.bf16.xpose.msra.mxu0 %v3551
      %3585 = vmatprep.subr.bf16.mxu0 %v3554
      %3586 = vmatpush1.bf16.xpose.msra.mxu0 %v3553
      %3587 = vmatprep.subr.bf16.mxu0 %v3556
      %3588 = vmatpush1.bf16.xpose.msra.mxu0 %v3555
      %3589 = vmatprep.subr.bf16.mxu0 %v3558
      %3590 = vmatpush1.bf16.xpose.msra.mxu0 %v3557
      %3591 = vmatprep.subr.bf16.mxu0 %v3560
      %3592 = vmatpush1.bf16.xpose.msra.mxu0 %v3559
      %3593 = vmatprep.subr.bf16.mxu0 %v3562
      %3594 = vmatpush1.bf16.xpose.msra.mxu0 %v3561
      %3595 = vmatprep.subr.bf16.mxu0 %v3564
      %3596 = vmatpush1.bf16.xpose.msra.mxu0 %v3563
      %3597 = vmatprep.mubr.bf16.mxu0 %v3530
      %3598 = vmatmul.mubr.bf16.gmra.mrb[0].mxu0 %v3529
      %v3599 = vpop.f32.mrb[0].mxu0
      %v3600 = vadd.f32 0.0, %v3599
      %v3601 = vpop.f32.mrb[0].mxu0
      %v3602 = vadd.f32 0.0, %v3601
      %v3603 = vpop.f32.mrb[0].mxu0
      %v3604 = vadd.f32 0.0, %v3603
      %v3605 = vpop.f32.mrb[0].mxu0
      %v3606 = vadd.f32 0.0, %v3605
      %3607 = vmatprep.mubr.bf16.mxu0 %v3532
      %3608 = vmatmul.mubr.bf16.gmra.mrb[0].mxu0 %v3531
      %v3609 = vpop.f32.mrb[0].mxu0
      %v3610 = vadd.f32 0.0, %v3609
      %v3611 = vpop.f32.mrb[0].mxu0
      %v3612 = vadd.f32 0.0, %v3611
      %v3613 = vpop.f32.mrb[0].mxu0
      %v3614 = vadd.f32 0.0, %v3613
      %v3615 = vpop.f32.mrb[0].mxu0
      %v3616 = vadd.f32 0.0, %v3615
      %3617 = vdwg.mxu0
      %v3618 = vpack.c.bf16 %v2036, %v2032
      %v3619 = vpack.c.bf16 %v2038, %v2034
      %v3620 = vpack.c.bf16 %v2046, %v2042
      %v3621 = vpack.c.bf16 %v2048, %v2044
      %v3622 = vpack.c.bf16 %v3467, %v3465
      %v3623 = vpack.c.bf16 %v3468, %v3466
      %v3624 = vpack.c.bf16 %v3471, %v3469
      %v3625 = vpack.c.bf16 %v3472, %v3470
      %v3626 = vpack.c.bf16 %v3475, %v3473
      %v3627 = vpack.c.bf16 %v3476, %v3474
      %v3628 = vpack.c.bf16 %v3479, %v3477
      %v3629 = vpack.c.bf16 %v3480, %v3478
      %v3630 = vpack.c.bf16 %v3483, %v3481
      %v3631 = vpack.c.bf16 %v3484, %v3482
      %v3632 = vpack.c.bf16 %v3487, %v3485
      %v3633 = vpack.c.bf16 %v3488, %v3486
      %v3634 = vpack.c.bf16 %v3491, %v3489
      %v3635 = vpack.c.bf16 %v3492, %v3490
      %v3636 = vpack.c.bf16 %v3495, %v3493
      %v3637 = vpack.c.bf16 %v3496, %v3494
      %v3638 = vpack.c.bf16 %v3499, %v3497
      %v3639 = vpack.c.bf16 %v3500, %v3498
      %v3640 = vpack.c.bf16 %v3503, %v3501
      %v3641 = vpack.c.bf16 %v3504, %v3502
      %v3642 = vpack.c.bf16 %v3507, %v3505
      %v3643 = vpack.c.bf16 %v3508, %v3506
      %v3644 = vpack.c.bf16 %v3511, %v3509
      %v3645 = vpack.c.bf16 %v3512, %v3510
      %v3646 = vpack.c.bf16 %v3515, %v3513
      %v3647 = vpack.c.bf16 %v3516, %v3514
      %v3648 = vpack.c.bf16 %v3519, %v3517
      %v3649 = vpack.c.bf16 %v3520, %v3518
      %v3650 = vpack.c.bf16 %v3523, %v3521
      %v3651 = vpack.c.bf16 %v3524, %v3522
      %v3652 = vpack.c.bf16 %v3527, %v3525
      %v3653 = vpack.c.bf16 %v3528, %v3526
      %3654 = vmatprep.subr.bf16.mxu0 %v3623
      %3655 = vmatpush1.bf16.xpose.msra.mxu0 %v3622
      %3656 = vmatprep.subr.bf16.mxu0 %v3625
      %3657 = vmatpush1.bf16.xpose.msra.mxu0 %v3624
      %3658 = vmatprep.subr.bf16.mxu0 %v3627
      %3659 = vmatpush1.bf16.xpose.msra.mxu0 %v3626
      %3660 = vmatprep.subr.bf16.mxu0 %v3629
      %3661 = vmatpush1.bf16.xpose.msra.mxu0 %v3628
      %3662 = vmatprep.subr.bf16.mxu0 %v3631
      %3663 = vmatpush1.bf16.xpose.msra.mxu0 %v3630
      %3664 = vmatprep.subr.bf16.mxu0 %v3633
      %3665 = vmatpush1.bf16.xpose.msra.mxu0 %v3632
      %3666 = vmatprep.subr.bf16.mxu0 %v3635
      %3667 = vmatpush1.bf16.xpose.msra.mxu0 %v3634
      %3668 = vmatprep.subr.bf16.mxu0 %v3637
      %3669 = vmatpush1.bf16.xpose.msra.mxu0 %v3636
      %3670 = vmatprep.subr.bf16.mxu0 %v3639
      %3671 = vmatpush1.bf16.xpose.msra.mxu0 %v3638
      %3672 = vmatprep.subr.bf16.mxu0 %v3641
      %3673 = vmatpush1.bf16.xpose.msra.mxu0 %v3640
      %3674 = vmatprep.subr.bf16.mxu0 %v3643
      %3675 = vmatpush1.bf16.xpose.msra.mxu0 %v3642
      %3676 = vmatprep.subr.bf16.mxu0 %v3645
      %3677 = vmatpush1.bf16.xpose.msra.mxu0 %v3644
      %3678 = vmatprep.subr.bf16.mxu0 %v3647
      %3679 = vmatpush1.bf16.xpose.msra.mxu0 %v3646
      %3680 = vmatprep.subr.bf16.mxu0 %v3649
      %3681 = vmatpush1.bf16.xpose.msra.mxu0 %v3648
      %3682 = vmatprep.subr.bf16.mxu0 %v3651
      %3683 = vmatpush1.bf16.xpose.msra.mxu0 %v3650
      %3684 = vmatprep.subr.bf16.mxu0 %v3653
      %3685 = vmatpush1.bf16.xpose.msra.mxu0 %v3652
      %3686 = vmatprep.mubr.bf16.mxu0 %v3619
      %3687 = vmatmul.mubr.bf16.gmra.mrb[0].mxu0 %v3618
      %v3688 = vpop.f32.mrb[0].mxu0
      %v3689 = vadd.f32 0.0, %v3688
      %v3690 = vpop.f32.mrb[0].mxu0
      %v3691 = vadd.f32 0.0, %v3690
      %v3692 = vpop.f32.mrb[0].mxu0
      %v3693 = vadd.f32 0.0, %v3692
      %v3694 = vpop.f32.mrb[0].mxu0
      %v3695 = vadd.f32 0.0, %v3694
      %3696 = vmatprep.mubr.bf16.mxu0 %v3621
      %3697 = vmatmul.mubr.bf16.gmra.mrb[0].mxu0 %v3620
      %v3698 = vpop.f32.mrb[0].mxu0
      %v3699 = vadd.f32 0.0, %v3698
      %v3700 = vpop.f32.mrb[0].mxu0
      %v3701 = vadd.f32 0.0, %v3700
      %v3702 = vpop.f32.mrb[0].mxu0
      %v3703 = vadd.f32 0.0, %v3702
      %v3704 = vpop.f32.mrb[0].mxu0
      %v3705 = vadd.f32 0.0, %v3704
      %3706 = vdwg.mxu0
      %v3707 = vld [vmem:[%s4 + $0x38] sm:$0xf]
      %v3708 = vld [vmem:[%s4 + $0x3c] sm:$0xf]
      %v3709 = vld [vmem:[%s4 + $0x40] sm:$0xf]
      %v3710 = vld [vmem:[%s4 + $0x44] sm:$0xf]
      %v3711 = vld [vmem:[%s4 + $0x48] sm:$0xf]
      %v3712 = vld [vmem:[%s4 + $0x4c] sm:$0xf]
      %v3713 = vld [vmem:[%s4 + $0x50] sm:$0xf]
      %v3714 = vld [vmem:[%s4 + $0x54] sm:$0xf]
      %v3715 = vpack.c.bf16 %v3604, %v3600
      %v3716 = vpack.c.bf16 %v3606, %v3602
      %v3717 = vpack.c.bf16 %v3614, %v3610
      %v3718 = vpack.c.bf16 %v3616, %v3612
      %v3719 = vld [vmem:[%s4 + $0x58] sm:$0xf]
      %v3720 = vld [vmem:[%s4 + $0x5c] sm:$0xf]
      %v3721 = vld [vmem:[%s4 + $0x60] sm:$0xf]
      %v3722 = vld [vmem:[%s4 + $0x64] sm:$0xf]
      %v3723 = vld [vmem:[%s4 + $0x68] sm:$0xf]
      %v3724 = vld [vmem:[%s4 + $0x6c] sm:$0xf]
      %v3725 = vld [vmem:[%s4 + $0x70] sm:$0xf]
      %v3726 = vld [vmem:[%s4 + $0x74] sm:$0xf]
      %v3727 = vpack.c.bf16 %v3693, %v3689
      %v3728 = vpack.c.bf16 %v3695, %v3691
      %v3729 = vpack.c.bf16 %v3703, %v3699
      %v3730 = vpack.c.bf16 %v3705, %v3701
      %v3739 = vunpack.c.l.b16 %v3719
      %v3740 = vunpack.c.l.b16 %v3720
      %v3741 = vunpack.c.l.b16 %v3721
      %v3742 = vunpack.c.l.b16 %v3722
      %v3743 = vunpack.c.l.b16 %v3723
      %v3744 = vunpack.c.l.b16 %v3724
      %v3745 = vunpack.c.l.b16 %v3725
      %v3746 = vunpack.c.l.b16 %v3726
      %v3747 = vpack.c.b16 %v3740, %v3739
      %v3748 = vpack.c.b16 %v3742, %v3741
      %v3749 = vpack.c.b16 %v3744, %v3743
      %v3750 = vpack.c.b16 %v3746, %v3745
      %v3752 = vsel %vm1835, %v3747, 0
      %v3755 = vsel %vm1835, %v3748, 0
      %v3758 = vsel %vm1835, %v3749, 0
      %v3761 = vsel %vm1835, %v3750, 0
      %3763 = vmatprep.subr.bf16.mxu0 %v3728
      %3764 = vmatpush1.bf16.msra.mxu0 %v3727
      %3765 = vmatprep.subr.bf16.mxu0 %v3730
      %3766 = vmatpush1.bf16.msra.mxu0 %v3729
      %3767 = vmatprep.subr.bf16.mxu0 0
      %3768 = vmatpush1.bf16.msra.mxu0 0
      %3769 = vmatprep.subr.bf16.mxu0 0
      %3770 = vmatpush1.bf16.msra.mxu0 0
      %3771 = vmatprep.subr.bf16.mxu0 0
      %3772 = vmatpush1.bf16.msra.mxu0 0
      %3773 = vmatprep.subr.bf16.mxu0 0
      %3774 = vmatpush1.bf16.msra.mxu0 0
      %3775 = vmatprep.subr.bf16.mxu0 0
      %3776 = vmatpush1.bf16.msra.mxu0 0
      %3777 = vmatprep.subr.bf16.mxu0 0
      %3778 = vmatpush1.bf16.msra.mxu0 0
      %3779 = vmatprep.subr.bf16.mxu0 0
      %3780 = vmatpush1.bf16.msra.mxu0 0
      %3781 = vmatprep.subr.bf16.mxu0 0
      %3782 = vmatpush1.bf16.msra.mxu0 0
      %3783 = vmatprep.subr.bf16.mxu0 0
      %3784 = vmatpush1.bf16.msra.mxu0 0
      %3785 = vmatprep.subr.bf16.mxu0 0
      %3786 = vmatpush1.bf16.msra.mxu0 0
      %3787 = vmatprep.subr.bf16.mxu0 0
      %3788 = vmatpush1.bf16.msra.mxu0 0
      %3789 = vmatprep.subr.bf16.mxu0 0
      %3790 = vmatpush1.bf16.msra.mxu0 0
      %3791 = vmatprep.subr.bf16.mxu0 0
      %3792 = vmatpush1.bf16.msra.mxu0 0
      %3793 = vmatprep.subr.bf16.mxu0 0
      %3794 = vmatpush1.bf16.msra.mxu0 0
      %3795 = vmatprep.mubr.bf16.mxu0 0
      %3796 = vmatmul.mubr.bf16.gmra.mrb[0].mxu0 %v3752
      %v3797 = vpop.f32.mrb[0].mxu0
      %v3798 = vadd.f32 0.0, %v3797
      %v3799 = vpop.f32.mrb[0].mxu0
      %v3800 = vadd.f32 0.0, %v3799
      %v3801 = vpop.f32.mrb[0].mxu0
      %v3802 = vadd.f32 0.0, %v3801
      %v3803 = vpop.f32.mrb[0].mxu0
      %v3804 = vadd.f32 0.0, %v3803
      %3805 = vmatprep.mubr.bf16.mxu0 0
      %3806 = vmatmul.mubr.bf16.gmra.mrb[0].mxu0 %v3755
      %v3807 = vpop.f32.mrb[0].mxu0
      %v3808 = vadd.f32 0.0, %v3807
      %v3809 = vpop.f32.mrb[0].mxu0
      %v3810 = vadd.f32 0.0, %v3809
      %v3811 = vpop.f32.mrb[0].mxu0
      %v3812 = vadd.f32 0.0, %v3811
      %v3813 = vpop.f32.mrb[0].mxu0
      %v3814 = vadd.f32 0.0, %v3813
      %3815 = vmatprep.mubr.bf16.mxu0 0
      %3816 = vmatmul.mubr.bf16.gmra.mrb[0].mxu0 %v3758
      %v3817 = vpop.f32.mrb[0].mxu0
      %v3818 = vadd.f32 0.0, %v3817
      %v3819 = vpop.f32.mrb[0].mxu0
      %v3820 = vadd.f32 0.0, %v3819
      %v3821 = vpop.f32.mrb[0].mxu0
      %v3822 = vadd.f32 0.0, %v3821
      %v3823 = vpop.f32.mrb[0].mxu0
      %v3824 = vadd.f32 0.0, %v3823
      %3825 = vmatprep.mubr.bf16.mxu0 0
      %3826 = vmatmul.mubr.bf16.gmra.mrb[0].mxu0 %v3761
      %v3827 = vpop.f32.mrb[0].mxu0
      %v3828 = vadd.f32 0.0, %v3827
      %v3829 = vpop.f32.mrb[0].mxu0
      %v3830 = vadd.f32 0.0, %v3829
      %v3831 = vpop.f32.mrb[0].mxu0
      %v3832 = vadd.f32 0.0, %v3831
      %v3833 = vpop.f32.mrb[0].mxu0
      %v3834 = vadd.f32 0.0, %v3833
      %3835 = vdwg.mxu0
      %v3844 = vunpack.c.l.b16 %v3707
      %v3845 = vunpack.c.l.b16 %v3708
      %v3846 = vunpack.c.l.b16 %v3709
      %v3847 = vunpack.c.l.b16 %v3710
      %v3848 = vunpack.c.l.b16 %v3711
      %v3849 = vunpack.c.l.b16 %v3712
      %v3850 = vunpack.c.l.b16 %v3713
      %v3851 = vunpack.c.l.b16 %v3714
      %v3852 = vpack.c.b16 %v3845, %v3844
      %v3853 = vpack.c.b16 %v3847, %v3846
      %v3854 = vpack.c.b16 %v3849, %v3848
      %v3855 = vpack.c.b16 %v3851, %v3850
      %v3857 = vsel %vm1835, %v3852, 0
      %v3860 = vsel %vm1835, %v3853, 0
      %v3863 = vsel %vm1835, %v3854, 0
      %v3866 = vsel %vm1835, %v3855, 0
      %3868 = vmatprep.subr.bf16.mxu0 %v3716
      %3869 = vmatpush1.bf16.msra.mxu0 %v3715
      %3870 = vmatprep.subr.bf16.mxu0 %v3718
      %3871 = vmatpush1.bf16.msra.mxu0 %v3717
      %3872 = vmatprep.subr.bf16.mxu0 0
      %3873 = vmatpush1.bf16.msra.mxu0 0
      %3874 = vmatprep.subr.bf16.mxu0 0
      %3875 = vmatpush1.bf16.msra.mxu0 0
      %3876 = vmatprep.subr.bf16.mxu0 0
      %3877 = vmatpush1.bf16.msra.mxu0 0
      %3878 = vmatprep.subr.bf16.mxu0 0
      %3879 = vmatpush1.bf16.msra.mxu0 0
      %3880 = vmatprep.subr.bf16.mxu0 0
      %3881 = vmatpush1.bf16.msra.mxu0 0
      %3882 = vmatprep.subr.bf16.mxu0 0
      %3883 = vmatpush1.bf16.msra.mxu0 0
      %3884 = vmatprep.subr.bf16.mxu0 0
      %3885 = vmatpush1.bf16.msra.mxu0 0
      %3886 = vmatprep.subr.bf16.mxu0 0
      %3887 = vmatpush1.bf16.msra.mxu0 0
      %3888 = vmatprep.subr.bf16.mxu0 0
      %3889 = vmatpush1.bf16.msra.mxu0 0
      %3890 = vmatprep.subr.bf16.mxu0 0
      %3891 = vmatpush1.bf16.msra.mxu0 0
      %3892 = vmatprep.subr.bf16.mxu0 0
      %3893 = vmatpush1.bf16.msra.mxu0 0
      %3894 = vmatprep.subr.bf16.mxu0 0
      %3895 = vmatpush1.bf16.msra.mxu0 0
      %3896 = vmatprep.subr.bf16.mxu0 0
      %3897 = vmatpush1.bf16.msra.mxu0 0
      %3898 = vmatprep.subr.bf16.mxu0 0
      %3899 = vmatpush1.bf16.msra.mxu0 0
      %3900 = vmatprep.mubr.bf16.mxu0 0
      %3901 = vmatmul.mubr.bf16.gmra.mrb[0].mxu0 %v3857
      %v3902 = vpop.f32.mrb[0].mxu0
      %v3903 = vadd.f32 %v3798, %v3902
      %v3904 = vpop.f32.mrb[0].mxu0
      %v3905 = vadd.f32 %v3800, %v3904
      %v3906 = vpop.f32.mrb[0].mxu0
      %v3907 = vadd.f32 %v3802, %v3906
      %v3908 = vpop.f32.mrb[0].mxu0
      %v3909 = vadd.f32 %v3804, %v3908
      %3910 = vmatprep.mubr.bf16.mxu0 0
      %3911 = vmatmul.mubr.bf16.gmra.mrb[0].mxu0 %v3860
      %v3912 = vpop.f32.mrb[0].mxu0
      %v3913 = vadd.f32 %v3808, %v3912
      %v3914 = vpop.f32.mrb[0].mxu0
      %v3915 = vadd.f32 %v3810, %v3914
      %v3916 = vpop.f32.mrb[0].mxu0
      %v3917 = vadd.f32 %v3812, %v3916
      %v3918 = vpop.f32.mrb[0].mxu0
      %v3919 = vadd.f32 %v3814, %v3918
      %3920 = vmatprep.mubr.bf16.mxu0 0
      %3921 = vmatmul.mubr.bf16.gmra.mrb[0].mxu0 %v3863
      %v3922 = vpop.f32.mrb[0].mxu0
      %v3923 = vadd.f32 %v3818, %v3922
      %v3924 = vpop.f32.mrb[0].mxu0
      %v3925 = vadd.f32 %v3820, %v3924
      %v3926 = vpop.f32.mrb[0].mxu0
      %v3927 = vadd.f32 %v3822, %v3926
      %v3928 = vpop.f32.mrb[0].mxu0
      %v3929 = vadd.f32 %v3824, %v3928
      %3930 = vmatprep.mubr.bf16.mxu0 0
      %3931 = vmatmul.mubr.bf16.gmra.mrb[0].mxu0 %v3866
      %v3932 = vpop.f32.mrb[0].mxu0
      %v3933 = vadd.f32 %v3828, %v3932
      %v3934 = vpop.f32.mrb[0].mxu0
      %v3935 = vadd.f32 %v3830, %v3934
      %v3936 = vpop.f32.mrb[0].mxu0
      %v3937 = vadd.f32 %v3832, %v3936
      %v3938 = vpop.f32.mrb[0].mxu0
      %v3939 = vadd.f32 %v3834, %v3938
      %3940 = vdwg.mxu0
      %v3941 = vld [vmem:[%s5 + $0x170] sm:$0xff]
      %v3942 = vld [vmem:[%s5 + $0x178] sm:$0xff]
      %v3943 = vld [vmem:[%s5 + $0x180] sm:$0xff]
      %v3944 = vld [vmem:[%s5 + $0x188] sm:$0xff]
      %v3945 = vld [vmem:[%s5 + $0x190] sm:$0xff]
      %v3946 = vld [vmem:[%s5 + $0x198] sm:$0xff]
      %v3947 = vld [vmem:[%s5 + $0x1a0] sm:$0xff]
      %v3948 = vld [vmem:[%s5 + $0x1a8] sm:$0xff]
      %3950 = vset.pattern.permute.xlu0 0
      %3951 = vperm.xlu0 %3950, %v3941
      %v3952 = vpop.permute.xlu0 %3951
      %3955 = vset.pattern.permute.xlu0 0
      %3956 = vperm.xlu0 %3955, %v3942
      %v3957 = vpop.permute.xlu0 %3956
      %3960 = vset.pattern.permute.xlu0 0
      %3961 = vperm.xlu0 %3960, %v3943
      %v3962 = vpop.permute.xlu0 %3961
      %3965 = vset.pattern.permute.xlu0 0
      %3966 = vperm.xlu0 %3965, %v3944
      %v3967 = vpop.permute.xlu0 %3966
      %3970 = vset.pattern.permute.xlu0 0
      %3971 = vperm.xlu0 %3970, %v3945
      %v3972 = vpop.permute.xlu0 %3971
      %3975 = vset.pattern.permute.xlu0 0
      %3976 = vperm.xlu0 %3975, %v3946
      %v3977 = vpop.permute.xlu0 %3976
      %3980 = vset.pattern.permute.xlu0 0
      %3981 = vperm.xlu0 %3980, %v3947
      %v3982 = vpop.permute.xlu0 %3981
      %3985 = vset.pattern.permute.xlu0 0
      %3986 = vperm.xlu0 %3985, %v3948
      %v3987 = vpop.permute.xlu0 %3986
      %v3989 = vadd.f32 %v3903, %v3952
      %v3990 = vadd.f32 %v3905, %v3952
      %v3991 = vadd.f32 %v3907, %v3957
      %v3992 = vadd.f32 %v3909, %v3957
      %v3993 = vadd.f32 %v3913, %v3962
      %v3994 = vadd.f32 %v3915, %v3962
      %v3995 = vadd.f32 %v3917, %v3967
      %v3996 = vadd.f32 %v3919, %v3967
      %v3997 = vadd.f32 %v3923, %v3972
      %v3998 = vadd.f32 %v3925, %v3972
      %v3999 = vadd.f32 %v3927, %v3977
      %v4000 = vadd.f32 %v3929, %v3977
      %v4001 = vadd.f32 %v3933, %v3982
      %v4002 = vadd.f32 %v3935, %v3982
      %v4003 = vadd.f32 %v3937, %v3987
      %v4004 = vadd.f32 %v3939, %v3987
      %v4005 = vld [vmem:[%s4 + $0x78] sm:$0xf]
      %v4006 = vld [vmem:[%s4 + $0x7c] sm:$0xf]
      %v4007 = vld [vmem:[%s4 + $0x80] sm:$0xf]
      %v4008 = vld [vmem:[%s4 + $0x84] sm:$0xf]
      %v4009 = vld [vmem:[%s4 + $0x88] sm:$0xf]
      %v4010 = vld [vmem:[%s4 + $0x8c] sm:$0xf]
      %v4011 = vld [vmem:[%s4 + $0x90] sm:$0xf]
      %v4012 = vld [vmem:[%s4 + $0x94] sm:$0xf]
      %v4013 = vld [vmem:[%s4 + $0x98] sm:$0xf]
      %v4014 = vld [vmem:[%s4 + $0x9c] sm:$0xf]
      %v4015 = vld [vmem:[%s4 + $0xa0] sm:$0xf]
      %v4016 = vld [vmem:[%s4 + $0xa4] sm:$0xf]
      %v4017 = vpack.c.bf16 %v3991, %v3989
      %v4018 = vpack.c.bf16 %v3992, %v3990
      %v4019 = vpack.c.bf16 %v3995, %v3993
      %v4020 = vpack.c.bf16 %v3996, %v3994
      %v4021 = vpack.c.bf16 %v3999, %v3997
      %v4022 = vpack.c.bf16 %v4000, %v3998
      %v4023 = vpack.c.bf16 %v4003, %v4001
      %v4024 = vpack.c.bf16 %v4004, %v4002
      %v4025 = vld [vmem:[%s4 + $0xa8] sm:$0xf]
      %v4026 = vld [vmem:[%s4 + $0xac] sm:$0xf]
      %v4027 = vld [vmem:[%s4 + $0xb0] sm:$0xf]
      %v4028 = vld [vmem:[%s4 + $0xb4] sm:$0xf]
      %v4029 = vld [vmem:[%s4 + $0xb8] sm:$0xf]
      %v4030 = vld [vmem:[%s4 + $0xbc] sm:$0xf]
      %v4031 = vld [vmem:[%s4 + $0xc0] sm:$0xf]
      %v4032 = vld [vmem:[%s4 + $0xc4] sm:$0xf]
      %v4033 = vld [vmem:[%s4 + $0xc8] sm:$0xf]
      %v4034 = vld [vmem:[%s4 + $0xcc] sm:$0xf]
      %v4035 = vld [vmem:[%s4 + $0xd0] sm:$0xf]
      %v4036 = vld [vmem:[%s4 + $0xd4] sm:$0xf]
      %v4049 = vunpack.c.l.b16 %v4025
      %v4050 = vunpack.c.l.b16 %v4026
      %v4051 = vunpack.c.l.b16 %v4027
      %v4052 = vunpack.c.l.b16 %v4028
      %v4053 = vunpack.c.l.b16 %v4029
      %v4054 = vunpack.c.l.b16 %v4030
      %v4055 = vunpack.c.l.b16 %v4031
      %v4056 = vunpack.c.l.b16 %v4032
      %v4057 = vunpack.c.l.b16 %v4033
      %v4058 = vunpack.c.l.b16 %v4034
      %v4059 = vunpack.c.l.b16 %v4035
      %v4060 = vunpack.c.l.b16 %v4036
      %v4061 = vpack.c.b16 %v4050, %v4049
      %v4062 = vpack.c.b16 %v4052, %v4051
      %v4063 = vpack.c.b16 %v4054, %v4053
      %v4064 = vpack.c.b16 %v4056, %v4055
      %v4065 = vpack.c.b16 %v4058, %v4057
      %v4066 = vpack.c.b16 %v4060, %v4059
      %v4068 = vsel %vm1835, %v4061, 0
      %v4071 = vsel %vm1835, %v4062, 0
      %v4074 = vsel %vm1835, %v4063, 0
      %v4077 = vsel %vm1835, %v4064, 0
      %v4080 = vsel %vm1835, %v4065, 0
      %v4083 = vsel %vm1835, %v4066, 0
      %4085 = vmatprep.subr.bf16.mxu0 %v1752
      %4086 = vmatpush1.bf16.msra.mxu0 %v1751
      %4087 = vmatprep.subr.bf16.mxu0 %v1754
      %4088 = vmatpush1.bf16.msra.mxu0 %v1753
      %4089 = vmatprep.subr.bf16.mxu0 0
      %4090 = vmatpush1.bf16.msra.mxu0 0
      %4091 = vmatprep.subr.bf16.mxu0 0
      %4092 = vmatpush1.bf16.msra.mxu0 0
      %4093 = vmatprep.subr.bf16.mxu0 0
      %4094 = vmatpush1.bf16.msra.mxu0 0
      %4095 = vmatprep.subr.bf16.mxu0 0
      %4096 = vmatpush1.bf16.msra.mxu0 0
      %4097 = vmatprep.subr.bf16.mxu0 0
      %4098 = vmatpush1.bf16.msra.mxu0 0
      %4099 = vmatprep.subr.bf16.mxu0 0
      %4100 = vmatpush1.bf16.msra.mxu0 0
      %4101 = vmatprep.subr.bf16.mxu0 0
      %4102 = vmatpush1.bf16.msra.mxu0 0
      %4103 = vmatprep.subr.bf16.mxu0 0
      %4104 = vmatpush1.bf16.msra.mxu0 0
      %4105 = vmatprep.subr.bf16.mxu0 0
      %4106 = vmatpush1.bf16.msra.mxu0 0
      %4107 = vmatprep.subr.bf16.mxu0 0
      %4108 = vmatpush1.bf16.msra.mxu0 0
      %4109 = vmatprep.subr.bf16.mxu0 0
      %4110 = vmatpush1.bf16.msra.mxu0 0
      %4111 = vmatprep.subr.bf16.mxu0 0
      %4112 = vmatpush1.bf16.msra.mxu0 0
      %4113 = vmatprep.subr.bf16.mxu0 0
      %4114 = vmatpush1.bf16.msra.mxu0 0
      %4115 = vmatprep.subr.bf16.mxu0 0
      %4116 = vmatpush1.bf16.msra.mxu0 0
      %4117 = vmatprep.mubr.bf16.mxu0 0
      %4118 = vmatmul.mubr.bf16.gmra.mrb[0].mxu0 %v4068
      %v4119 = vpop.f32.mrb[0].mxu0
      %v4120 = vadd.f32 0.0, %v4119
      %v4121 = vpop.f32.mrb[0].mxu0
      %v4122 = vadd.f32 0.0, %v4121
      %v4123 = vpop.f32.mrb[0].mxu0
      %v4124 = vadd.f32 0.0, %v4123
      %v4125 = vpop.f32.mrb[0].mxu0
      %v4126 = vadd.f32 0.0, %v4125
      %4127 = vmatprep.mubr.bf16.mxu0 0
      %4128 = vmatmul.mubr.bf16.gmra.mrb[0].mxu0 %v4071
      %v4129 = vpop.f32.mrb[0].mxu0
      %v4130 = vadd.f32 0.0, %v4129
      %v4131 = vpop.f32.mrb[0].mxu0
      %v4132 = vadd.f32 0.0, %v4131
      %v4133 = vpop.f32.mrb[0].mxu0
      %v4134 = vadd.f32 0.0, %v4133
      %v4135 = vpop.f32.mrb[0].mxu0
      %v4136 = vadd.f32 0.0, %v4135
      %4137 = vmatprep.mubr.bf16.mxu0 0
      %4138 = vmatmul.mubr.bf16.gmra.mrb[0].mxu0 %v4074
      %v4139 = vpop.f32.mrb[0].mxu0
      %v4140 = vadd.f32 0.0, %v4139
      %v4141 = vpop.f32.mrb[0].mxu0
      %v4142 = vadd.f32 0.0, %v4141
      %v4143 = vpop.f32.mrb[0].mxu0
      %v4144 = vadd.f32 0.0, %v4143
      %v4145 = vpop.f32.mrb[0].mxu0
      %v4146 = vadd.f32 0.0, %v4145
      %4147 = vmatprep.mubr.bf16.mxu0 0
      %4148 = vmatmul.mubr.bf16.gmra.mrb[0].mxu0 %v4077
      %v4149 = vpop.f32.mrb[0].mxu0
      %v4150 = vadd.f32 0.0, %v4149
      %v4151 = vpop.f32.mrb[0].mxu0
      %v4152 = vadd.f32 0.0, %v4151
      %v4153 = vpop.f32.mrb[0].mxu0
      %v4154 = vadd.f32 0.0, %v4153
      %v4155 = vpop.f32.mrb[0].mxu0
      %v4156 = vadd.f32 0.0, %v4155
      %4157 = vmatprep.mubr.bf16.mxu0 0
      %4158 = vmatmul.mubr.bf16.gmra.mrb[0].mxu0 %v4080
      %v4159 = vpop.f32.mrb[0].mxu0
      %v4160 = vadd.f32 0.0, %v4159
      %v4161 = vpop.f32.mrb[0].mxu0
      %v4162 = vadd.f32 0.0, %v4161
      %v4163 = vpop.f32.mrb[0].mxu0
      %v4164 = vadd.f32 0.0, %v4163
      %v4165 = vpop.f32.mrb[0].mxu0
      %v4166 = vadd.f32 0.0, %v4165
      %4167 = vmatprep.mubr.bf16.mxu0 0
      %4168 = vmatmul.mubr.bf16.gmra.mrb[0].mxu0 %v4083
      %v4169 = vpop.f32.mrb[0].mxu0
      %v4170 = vadd.f32 0.0, %v4169
      %v4171 = vpop.f32.mrb[0].mxu0
      %v4172 = vadd.f32 0.0, %v4171
      %v4173 = vpop.f32.mrb[0].mxu0
      %v4174 = vadd.f32 0.0, %v4173
      %v4175 = vpop.f32.mrb[0].mxu0
      %v4176 = vadd.f32 0.0, %v4175
      %4177 = vdwg.mxu0
      %v4190 = vunpack.c.l.b16 %v4005
      %v4191 = vunpack.c.l.b16 %v4006
      %v4192 = vunpack.c.l.b16 %v4007
      %v4193 = vunpack.c.l.b16 %v4008
      %v4194 = vunpack.c.l.b16 %v4009
      %v4195 = vunpack.c.l.b16 %v4010
      %v4196 = vunpack.c.l.b16 %v4011
      %v4197 = vunpack.c.l.b16 %v4012
      %v4198 = vunpack.c.l.b16 %v4013
      %v4199 = vunpack.c.l.b16 %v4014
      %v4200 = vunpack.c.l.b16 %v4015
      %v4201 = vunpack.c.l.b16 %v4016
      %v4202 = vpack.c.b16 %v4191, %v4190
      %v4203 = vpack.c.b16 %v4193, %v4192
      %v4204 = vpack.c.b16 %v4195, %v4194
      %v4205 = vpack.c.b16 %v4197, %v4196
      %v4206 = vpack.c.b16 %v4199, %v4198
      %v4207 = vpack.c.b16 %v4201, %v4200
      %vm4208 = vcmask 523264
      %v4210 = vsel %vm4208, %v4202, 0
      %v4213 = vsel %vm4208, %v4203, 0
      %v4216 = vsel %vm4208, %v4204, 0
      %v4219 = vsel %vm4208, %v4205, 0
      %v4222 = vsel %vm4208, %v4206, 0
      %v4225 = vsel %vm4208, %v4207, 0
      %4227 = vmatprep.subr.bf16.mxu0 %v4018
      %4228 = vmatpush1.bf16.msra.mxu0 %v4017
      %4229 = vmatprep.subr.bf16.mxu0 %v4020
      %4230 = vmatpush1.bf16.msra.mxu0 %v4019
      %4231 = vmatprep.subr.bf16.mxu0 %v4022
      %4232 = vmatpush1.bf16.msra.mxu0 %v4021
      %4233 = vmatprep.subr.bf16.mxu0 %v4024
      %4234 = vmatpush1.bf16.msra.mxu0 %v4023
      %4235 = vmatprep.subr.bf16.mxu0 0
      %4236 = vmatpush1.bf16.msra.mxu0 0
      %4237 = vmatprep.subr.bf16.mxu0 0
      %4238 = vmatpush1.bf16.msra.mxu0 0
      %4239 = vmatprep.subr.bf16.mxu0 0
      %4240 = vmatpush1.bf16.msra.mxu0 0
      %4241 = vmatprep.subr.bf16.mxu0 0
      %4242 = vmatpush1.bf16.msra.mxu0 0
      %4243 = vmatprep.subr.bf16.mxu0 0
      %4244 = vmatpush1.bf16.msra.mxu0 0
      %4245 = vmatprep.subr.bf16.mxu0 0
      %4246 = vmatpush1.bf16.msra.mxu0 0
      %4247 = vmatprep.subr.bf16.mxu0 0
      %4248 = vmatpush1.bf16.msra.mxu0 0
      %4249 = vmatprep.subr.bf16.mxu0 0
      %4250 = vmatpush1.bf16.msra.mxu0 0
      %4251 = vmatprep.subr.bf16.mxu0 0
      %4252 = vmatpush1.bf16.msra.mxu0 0
      %4253 = vmatprep.subr.bf16.mxu0 0
      %4254 = vmatpush1.bf16.msra.mxu0 0
      %4255 = vmatprep.subr.bf16.mxu0 0
      %4256 = vmatpush1.bf16.msra.mxu0 0
      %4257 = vmatprep.subr.bf16.mxu0 0
      %4258 = vmatpush1.bf16.msra.mxu0 0
      %4259 = vmatprep.mubr.bf16.mxu0 0
      %4260 = vmatmul.mubr.bf16.gmra.mrb[0].mxu0 %v4210
      %v4261 = vpop.f32.mrb[0].mxu0
      %v4262 = vadd.f32 %v4120, %v4261
      %v4263 = vpop.f32.mrb[0].mxu0
      %v4264 = vadd.f32 %v4122, %v4263
      %v4265 = vpop.f32.mrb[0].mxu0
      %v4266 = vadd.f32 %v4124, %v4265
      %v4267 = vpop.f32.mrb[0].mxu0
      %v4268 = vadd.f32 %v4126, %v4267
      %4269 = vmatprep.mubr.bf16.mxu0 0
      %4270 = vmatmul.mubr.bf16.gmra.mrb[0].mxu0 %v4213
      %v4271 = vpop.f32.mrb[0].mxu0
      %v4272 = vadd.f32 %v4130, %v4271
      %v4273 = vpop.f32.mrb[0].mxu0
      %v4274 = vadd.f32 %v4132, %v4273
      %v4275 = vpop.f32.mrb[0].mxu0
      %v4276 = vadd.f32 %v4134, %v4275
      %v4277 = vpop.f32.mrb[0].mxu0
      %v4278 = vadd.f32 %v4136, %v4277
      %4279 = vmatprep.mubr.bf16.mxu0 0
      %4280 = vmatmul.mubr.bf16.gmra.mrb[0].mxu0 %v4216
      %v4281 = vpop.f32.mrb[0].mxu0
      %v4282 = vadd.f32 %v4140, %v4281
      %v4283 = vpop.f32.mrb[0].mxu0
      %v4284 = vadd.f32 %v4142, %v4283
      %v4285 = vpop.f32.mrb[0].mxu0
      %v4286 = vadd.f32 %v4144, %v4285
      %v4287 = vpop.f32.mrb[0].mxu0
      %v4288 = vadd.f32 %v4146, %v4287
      %4289 = vmatprep.mubr.bf16.mxu0 0
      %4290 = vmatmul.mubr.bf16.gmra.mrb[0].mxu0 %v4219
      %v4291 = vpop.f32.mrb[0].mxu0
      %v4292 = vadd.f32 %v4150, %v4291
      %v4293 = vpop.f32.mrb[0].mxu0
      %v4294 = vadd.f32 %v4152, %v4293
      %v4295 = vpop.f32.mrb[0].mxu0
      %v4296 = vadd.f32 %v4154, %v4295
      %v4297 = vpop.f32.mrb[0].mxu0
      %v4298 = vadd.f32 %v4156, %v4297
      %4299 = vmatprep.mubr.bf16.mxu0 0
      %4300 = vmatmul.mubr.bf16.gmra.mrb[0].mxu0 %v4222
      %v4301 = vpop.f32.mrb[0].mxu0
      %v4302 = vadd.f32 %v4160, %v4301
      %v4303 = vpop.f32.mrb[0].mxu0
      %v4304 = vadd.f32 %v4162, %v4303
      %v4305 = vpop.f32.mrb[0].mxu0
      %v4306 = vadd.f32 %v4164, %v4305
      %v4307 = vpop.f32.mrb[0].mxu0
      %v4308 = vadd.f32 %v4166, %v4307
      %4309 = vmatprep.mubr.bf16.mxu0 0
      %4310 = vmatmul.mubr.bf16.gmra.mrb[0].mxu0 %v4225
      %v4311 = vpop.f32.mrb[0].mxu0
      %v4312 = vadd.f32 %v4170, %v4311
      %v4313 = vpop.f32.mrb[0].mxu0
      %v4314 = vadd.f32 %v4172, %v4313
      %v4315 = vpop.f32.mrb[0].mxu0
      %v4316 = vadd.f32 %v4174, %v4315
      %v4317 = vpop.f32.mrb[0].mxu0
      %v4318 = vadd.f32 %v4176, %v4317
      %4319 = vdwg.mxu0
      %v4320 = vld [vmem:[%s5 + $0x1b0] sm:$0xff]
      %v4321 = vld [vmem:[%s5 + $0x1b8] sm:$0xff]
      %v4322 = vld [vmem:[%s5 + $0x1c0] sm:$0xff]
      %v4323 = vld [vmem:[%s5 + $0x1c8] sm:$0xff]
      %v4324 = vld [vmem:[%s5 + $0x1d0] sm:$0xff]
      %v4325 = vld [vmem:[%s5 + $0x1d8] sm:$0xff]
      %v4326 = vld [vmem:[%s5 + $0x1e0] sm:$0xff]
      %v4327 = vld [vmem:[%s5 + $0x1e8] sm:$0xff]
      %v4328 = vld [vmem:[%s5 + $0x1f0] sm:$0xff]
      %v4329 = vld [vmem:[%s5 + $0x1f8] sm:$0xff]
      %v4330 = vld [vmem:[%s5 + $0x200] sm:$0xff]
      %v4331 = vld [vmem:[%s5 + $0x208] sm:$0xff]
      %4333 = vset.pattern.permute.xlu0 0
      %4334 = vperm.xlu0 %4333, %v4320
      %v4335 = vpop.permute.xlu0 %4334
      %4338 = vset.pattern.permute.xlu0 0
      %4339 = vperm.xlu0 %4338, %v4321
      %v4340 = vpop.permute.xlu0 %4339
      %4343 = vset.pattern.permute.xlu0 0
      %4344 = vperm.xlu0 %4343, %v4322
      %v4345 = vpop.permute.xlu0 %4344
      %4348 = vset.pattern.permute.xlu0 0
      %4349 = vperm.xlu0 %4348, %v4323
      %v4350 = vpop.permute.xlu0 %4349
      %4353 = vset.pattern.permute.xlu0 0
      %4354 = vperm.xlu0 %4353, %v4324
      %v4355 = vpop.permute.xlu0 %4354
      %4358 = vset.pattern.permute.xlu0 0
      %4359 = vperm.xlu0 %4358, %v4325
      %v4360 = vpop.permute.xlu0 %4359
      %4363 = vset.pattern.permute.xlu0 0
      %4364 = vperm.xlu0 %4363, %v4326
      %v4365 = vpop.permute.xlu0 %4364
      %4368 = vset.pattern.permute.xlu0 0
      %4369 = vperm.xlu0 %4368, %v4327
      %v4370 = vpop.permute.xlu0 %4369
      %4373 = vset.pattern.permute.xlu0 0
      %4374 = vperm.xlu0 %4373, %v4328
      %v4375 = vpop.permute.xlu0 %4374
      %4378 = vset.pattern.permute.xlu0 0
      %4379 = vperm.xlu0 %4378, %v4329
      %v4380 = vpop.permute.xlu0 %4379
      %4383 = vset.pattern.permute.xlu0 0
      %4384 = vperm.xlu0 %4383, %v4330
      %v4385 = vpop.permute.xlu0 %4384
      %4388 = vset.pattern.permute.xlu0 0
      %4389 = vperm.xlu0 %4388, %v4331
      %v4390 = vpop.permute.xlu0 %4389
      %v4392 = vadd.f32 %v4262, %v4335
      %v4393 = vadd.f32 %v4264, %v4335
      %v4394 = vadd.f32 %v4266, %v4340
      %v4395 = vadd.f32 %v4268, %v4340
      %v4396 = vadd.f32 %v4272, %v4345
      %v4397 = vadd.f32 %v4274, %v4345
      %v4398 = vadd.f32 %v4276, %v4350
      %v4399 = vadd.f32 %v4278, %v4350
      %v4400 = vadd.f32 %v4282, %v4355
      %v4401 = vadd.f32 %v4284, %v4355
      %v4402 = vadd.f32 %v4286, %v4360
      %v4403 = vadd.f32 %v4288, %v4360
      %v4404 = vadd.f32 %v4292, %v4365
      %v4405 = vadd.f32 %v4294, %v4365
      %v4406 = vadd.f32 %v4296, %v4370
      %v4407 = vadd.f32 %v4298, %v4370
      %v4408 = vadd.f32 %v4302, %v4375
      %v4409 = vadd.f32 %v4304, %v4375
      %v4410 = vadd.f32 %v4306, %v4380
      %v4411 = vadd.f32 %v4308, %v4380
      %v4412 = vadd.f32 %v4312, %v4385
      %v4413 = vadd.f32 %v4314, %v4385
      %v4414 = vadd.f32 %v4316, %v4390
      %v4415 = vadd.f32 %v4318, %v4390
      %v4416 = vxor.u32 %v4408, 2147483648
      %v4417 = vxor.u32 %v4409, 2147483648
      %v4418 = vxor.u32 %v4410, 2147483648
      %v4419 = vxor.u32 %v4411, 2147483648
      %v4420 = vxor.u32 %v4412, 2147483648
      %v4421 = vxor.u32 %v4413, 2147483648
      %v4422 = vxor.u32 %v4414, 2147483648
      %v4423 = vxor.u32 %v4415, 2147483648
      %v4424 = vmul.f32 %v4416, 1.442695
      %v4425 = vpow.pop %v4424
      %v4426 = vmul.f32 %v4417, 1.442695
      %v4427 = vpow.pop %v4426
      %v4428 = vmul.f32 %v4418, 1.442695
      %v4429 = vpow.pop %v4428
      %v4430 = vmul.f32 %v4419, 1.442695
      %v4431 = vpow.pop %v4430
      %v4432 = vmul.f32 %v4420, 1.442695
      %v4433 = vpow.pop %v4432
      %v4434 = vmul.f32 %v4421, 1.442695
      %v4435 = vpow.pop %v4434
      %v4436 = vmul.f32 %v4422, 1.442695
      %v4437 = vpow.pop %v4436
      %v4438 = vmul.f32 %v4423, 1.442695
      %v4439 = vpow.pop %v4438
      %v4440 = vadd.f32 %v4425, 1.0
      %v4441 = vadd.f32 %v4427, 1.0
      %v4442 = vadd.f32 %v4429, 1.0
      %v4443 = vadd.f32 %v4431, 1.0
      %v4444 = vadd.f32 %v4433, 1.0
      %v4445 = vadd.f32 %v4435, 1.0
      %v4446 = vadd.f32 %v4437, 1.0
      %v4447 = vadd.f32 %v4439, 1.0
      %v4448 = vrcp.pop %v4440
      %v4449 = vmul.f32 1.0, %v4448
      %v4450 = vrcp.pop %v4441
      %v4451 = vmul.f32 1.0, %v4450
      %v4452 = vrcp.pop %v4442
      %v4453 = vmul.f32 1.0, %v4452
      %v4454 = vrcp.pop %v4443
      %v4455 = vmul.f32 1.0, %v4454
      %v4456 = vrcp.pop %v4444
      %v4457 = vmul.f32 1.0, %v4456
      %v4458 = vrcp.pop %v4445
      %v4459 = vmul.f32 1.0, %v4458
      %v4460 = vrcp.pop %v4446
      %v4461 = vmul.f32 1.0, %v4460
      %v4462 = vrcp.pop %v4447
      %v4463 = vmul.f32 1.0, %v4462
      %v4464 = vsub.f32 1.0, %v4449
      %v4465 = vsub.f32 1.0, %v4451
      %v4466 = vsub.f32 1.0, %v4453
      %v4467 = vsub.f32 1.0, %v4455
      %v4468 = vsub.f32 1.0, %v4457
      %v4469 = vsub.f32 1.0, %v4459
      %v4470 = vsub.f32 1.0, %v4461
      %v4471 = vsub.f32 1.0, %v4463
      %v4472 = vmul.f32 %v4464, %v1703
      %v4473 = vmul.f32 %v4465, %v1704
      %v4474 = vmul.f32 %v4466, %v1705
      %v4475 = vmul.f32 %v4467, %v1706
      %v4476 = vmul.f32 %v4468, %v1707
      %v4477 = vmul.f32 %v4469, %v1708
      %v4478 = vmul.f32 %v4470, %v1709
      %v4479 = vmul.f32 %v4471, %v1710
      %v4480 = vtanh.pop %v4400
      %v4481 = vtanh.pop %v4401
      %v4482 = vtanh.pop %v4402
      %v4483 = vtanh.pop %v4403
      %v4484 = vtanh.pop %v4404
      %v4485 = vtanh.pop %v4405
      %v4486 = vtanh.pop %v4406
      %v4487 = vtanh.pop %v4407
      %v4488 = vmul.f32 %v4449, %v4480
      %v4489 = vmul.f32 %v4451, %v4481
      %v4490 = vmul.f32 %v4453, %v4482
      %v4491 = vmul.f32 %v4455, %v4483
      %v4492 = vmul.f32 %v4457, %v4484
      %v4493 = vmul.f32 %v4459, %v4485
      %v4494 = vmul.f32 %v4461, %v4486
      %v4495 = vmul.f32 %v4463, %v4487
      %v4496 = vadd.f32 %v4472, %v4488
      %v4497 = vadd.f32 %v4473, %v4489
      %v4498 = vadd.f32 %v4474, %v4490
      %v4499 = vadd.f32 %v4475, %v4491
      %v4500 = vadd.f32 %v4476, %v4492
      %v4501 = vadd.f32 %v4477, %v4493
      %v4502 = vadd.f32 %v4478, %v4494
      %v4503 = vadd.f32 %v4479, %v4495
      %v4504 = vxor.u32 %v4392, 2147483648
      %v4505 = vxor.u32 %v4393, 2147483648
      %v4506 = vxor.u32 %v4394, 2147483648
      %v4507 = vxor.u32 %v4395, 2147483648
      %v4508 = vxor.u32 %v4396, 2147483648
      %v4509 = vxor.u32 %v4397, 2147483648
      %v4510 = vxor.u32 %v4398, 2147483648
      %v4511 = vxor.u32 %v4399, 2147483648
      %v4512 = vmul.f32 %v4504, 1.442695
      %v4513 = vpow.pop %v4512
      %v4514 = vmul.f32 %v4505, 1.442695
      %v4515 = vpow.pop %v4514
      %v4516 = vmul.f32 %v4506, 1.442695
      %v4517 = vpow.pop %v4516
      %v4518 = vmul.f32 %v4507, 1.442695
      %v4519 = vpow.pop %v4518
      %v4520 = vmul.f32 %v4508, 1.442695
      %v4521 = vpow.pop %v4520
      %v4522 = vmul.f32 %v4509, 1.442695
      %v4523 = vpow.pop %v4522
      %v4524 = vmul.f32 %v4510, 1.442695
      %v4525 = vpow.pop %v4524
      %v4526 = vmul.f32 %v4511, 1.442695
      %v4527 = vpow.pop %v4526
      %v4528 = vadd.f32 %v4513, 1.0
      %v4529 = vadd.f32 %v4515, 1.0
      %v4530 = vadd.f32 %v4517, 1.0
      %v4531 = vadd.f32 %v4519, 1.0
      %v4532 = vadd.f32 %v4521, 1.0
      %v4533 = vadd.f32 %v4523, 1.0
      %v4534 = vadd.f32 %v4525, 1.0
      %v4535 = vadd.f32 %v4527, 1.0
      %v4536 = vrcp.pop %v4528
      %v4537 = vmul.f32 1.0, %v4536
      %v4538 = vrcp.pop %v4529
      %v4539 = vmul.f32 1.0, %v4538
      %v4540 = vrcp.pop %v4530
      %v4541 = vmul.f32 1.0, %v4540
      %v4542 = vrcp.pop %v4531
      %v4543 = vmul.f32 1.0, %v4542
      %v4544 = vrcp.pop %v4532
      %v4545 = vmul.f32 1.0, %v4544
      %v4546 = vrcp.pop %v4533
      %v4547 = vmul.f32 1.0, %v4546
      %v4548 = vrcp.pop %v4534
      %v4549 = vmul.f32 1.0, %v4548
      %v4550 = vrcp.pop %v4535
      %v4551 = vmul.f32 1.0, %v4550
      %v4552 = vmul.f32 %v4537, %v4496
      %v4553 = vmul.f32 %v4539, %v4497
      %v4554 = vmul.f32 %v4541, %v4498
      %v4555 = vmul.f32 %v4543, %v4499
      %v4556 = vmul.f32 %v4545, %v4500
      %v4557 = vmul.f32 %v4547, %v4501
      %v4558 = vmul.f32 %v4549, %v4502
      %v4559 = vmul.f32 %v4551, %v4503
      %4560 = vst [vmem:[%s360] sm:$0xff] %v4552
      %4561 = vst [vmem:[%s360 + $0x8] sm:$0xff] %v4553
      %4562 = vst [vmem:[%s360 + $0x10] sm:$0xff] %v4554
      %4563 = vst [vmem:[%s360 + $0x18] sm:$0xff] %v4555
      %4564 = vst [vmem:[%s360 + $0x20] sm:$0xff] %v4556
      %4565 = vst [vmem:[%s360 + $0x28] sm:$0xff] %v4557
      %4566 = vst [vmem:[%s360 + $0x30] sm:$0xff] %v4558
      %4567 = vst [vmem:[%s360 + $0x38] sm:$0xff] %v4559
      %4568 = vst [vmem:[%s365] sm:$0xff] %v1727
      %4569 = vst [vmem:[%s365 + $0x8] sm:$0xff] %v1728
      %4570 = vst [vmem:[%s365 + $0x10] sm:$0xff] %v1729
      %4571 = vst [vmem:[%s365 + $0x18] sm:$0xff] %v1730
      %4572 = vst [vmem:[%s365 + $0x20] sm:$0xff] %v1731
      %4573 = vst [vmem:[%s365 + $0x28] sm:$0xff] %v1732
      %4574 = vst [vmem:[%s365 + $0x30] sm:$0xff] %v1733
      %4575 = vst [vmem:[%s365 + $0x38] sm:$0xff] %v1734
      %4576 = vst [vmem:[%s370] sm:$0xff] %v4496
      %4577 = vst [vmem:[%s370 + $0x8] sm:$0xff] %v4497
      %4578 = vst [vmem:[%s370 + $0x10] sm:$0xff] %v4498
      %4579 = vst [vmem:[%s370 + $0x18] sm:$0xff] %v4499
      %4580 = vst [vmem:[%s370 + $0x20] sm:$0xff] %v4500
      %4581 = vst [vmem:[%s370 + $0x28] sm:$0xff] %v4501
      %4582 = vst [vmem:[%s370 + $0x30] sm:$0xff] %v4502
      %4583 = vst [vmem:[%s370 + $0x38] sm:$0xff] %v4503
      %p4584 = scmp.lt.s32.totalorder %s20, 1
      %s4585 = scalar_select %p4584, %s20, 1
      %s4586 = smul.addr %s4585, 8
      %s4587 = smul.addr %s4586, 8
      %s4588 = scalar_lea.vmem %s6, %s4587
      %p4589 = scmp.lt.s32.totalorder %s20, 1
      %s4590 = scalar_select %p4589, %s20, 1
      %s4591 = smul.addr %s4590, 8
      %s4592 = smul.addr %s4591, 8
      %s4593 = scalar_lea.vmem %s7, %s4592
      %p4594 = scmp.lt.s32.totalorder %s20, 1
      %s4595 = scalar_select %p4594, %s20, 1
      %s4596 = smul.addr %s4595, 8
      %s4597 = smul.addr %s4596, 8
      %s4598 = scalar_lea.vmem %s8, %s4597
      // Predicated region
      $region45: #{sa_convlstm_cell_forward.1} parent=43 // pred_check
        %p4599 = pneg %p179
      $region46: #{sa_convlstm_cell_forward.1} parent=43 // pred_check_branch
        %4601 = sbr.rel (%p4599) target = $region48
      $region47: #{sa_convlstm_cell_forward.1} parent=43 // pred_region
        _
      $region48: #{sa_convlstm_cell_forward.1} parent=43 // pred_fallthru
        _
      // Predicated region
      $region49: #{sa_convlstm_cell_forward.1} parent=43 // pred_check
        %p4602 = pneg %p205
      $region50: #{sa_convlstm_cell_forward.1} parent=43 // pred_check_branch
        %4604 = sbr.rel (%p4602) target = $region52
      $region51: #{sa_convlstm_cell_forward.1} parent=43 // pred_region
        _
      $region52: #{sa_convlstm_cell_forward.1} parent=43 // pred_fallthru
        _
      // Predicated region
      $region53: #{sa_convlstm_cell_forward.1} parent=43 // pred_check
        %p4605 = pneg %p231
      $region54: #{sa_convlstm_cell_forward.1} parent=43 // pred_check_branch
        %4607 = sbr.rel (%p4605) target = $region56
      $region55: #{sa_convlstm_cell_forward.1} parent=43 // pred_region
        _
      $region56: #{sa_convlstm_cell_forward.1} parent=43 // pred_fallthru
        _
    $region44: #{sa_convlstm_cell_forward.1} parent=5 // pred_fallthru
      _
    %p4608 = scmp.le.s32.totalorder 2, %s15
    // Predicated region
    $region57: #{sa_convlstm_cell_forward.1} parent=5 // pred_check
      %p4609 = pneg %p4608
    $region58: #{sa_convlstm_cell_forward.1} parent=5 // pred_check_branch
      %4611 = sbr.rel (%p4609) target = $region60
    $region59: #{sa_convlstm_cell_forward.1} parent=5 // pred_region
      %s4612 = ssub.s32 %s15, 2
      // Predicated region
      $region61: #{sa_convlstm_cell_forward.1} parent=59 // pred_check
        %p4613 = pneg %p185
      $region62: #{sa_convlstm_cell_forward.1} parent=59 // pred_check_branch
        %4615 = sbr.rel (%p4613) target = $region64
      $region63: #{sa_convlstm_cell_forward.1} parent=59 // pred_region
        %p4616 = scmp.lt.s32.totalorder %s21, 1
        %s4617 = scalar_select %p4616, %s21, 1
        %s4618 = smul.addr %s4617, 8
        %s4619 = smul.addr %s4618, 8
        %s4620 = scalar_lea.vmem %s6, %s4619
      $region64: #{sa_convlstm_cell_forward.1} parent=59 // pred_fallthru
        _
      // Predicated region
      $region65: #{sa_convlstm_cell_forward.1} parent=59 // pred_check
        %p4621 = pneg %p211
      $region66: #{sa_convlstm_cell_forward.1} parent=59 // pred_check_branch
        %4623 = sbr.rel (%p4621) target = $region68
      $region67: #{sa_convlstm_cell_forward.1} parent=59 // pred_region
        %p4624 = scmp.lt.s32.totalorder %s21, 1
        %s4625 = scalar_select %p4624, %s21, 1
        %s4626 = smul.addr %s4625, 8
        %s4627 = smul.addr %s4626, 8
        %s4628 = scalar_lea.vmem %s7, %s4627
      $region68: #{sa_convlstm_cell_forward.1} parent=59 // pred_fallthru
        _
      // Predicated region
      $region69: #{sa_convlstm_cell_forward.1} parent=59 // pred_check
        %p4629 = pneg %p237
      $region70: #{sa_convlstm_cell_forward.1} parent=59 // pred_check_branch
        %4631 = sbr.rel (%p4629) target = $region72
      $region71: #{sa_convlstm_cell_forward.1} parent=59 // pred_region
        %p4632 = scmp.lt.s32.totalorder %s21, 1
        %s4633 = scalar_select %p4632, %s21, 1
        %s4634 = smul.addr %s4633, 8
        %s4635 = smul.addr %s4634, 8
        %s4636 = scalar_lea.vmem %s8, %s4635
      $region72: #{sa_convlstm_cell_forward.1} parent=59 // pred_fallthru
        _
    $region60: #{sa_convlstm_cell_forward.1} parent=5 // pred_fallthru
      _
  $region6: #{sa_convlstm_cell_forward.1} parent=0 // loop_footer
    %s19 = sadd.s32 1, %s15
  $region7: #{sa_convlstm_cell_forward.1} parent=0 // loop_footer_branch
    %14 = sbr.rel target = $region3
  $region8: #{sa_convlstm_cell_forward.1} parent=0 // loop_exit
    _

</llo_original>
